<compile_context>
chip_gen: v6e
topology: v6e:2x2x1
jax: 0.10.0
libtpu: 0.0.40
codegen_flags: <defaults>
</compile_context>

<pallas_src>
import jax
import jax.numpy as jnp
from jax.experimental import pallas as pl
from jax.experimental.pallas import tpu as pltpu

EPS = 1e-5
NUM_GROUPS = 32


def _vmem_limit_bytes():
    # Generation-dependent scoped-VMEM limit (~75% of physical, capped at 100 MiB):
    # v5e/v6e (128 MiB) -> 96 MiB, v7x (64 MiB) -> 48 MiB.  Falls back to 48 MiB if the query fails.
    try:
        info = pltpu.get_tpu_info()
        cap = int(getattr(info, "vmem_capacity_bytes", 0)) or 64 * 1024 * 1024
    except Exception:
        cap = 64 * 1024 * 1024
    return int(min(cap * 3 // 4, 100 * 1024 * 1024))


_VMEM_LIMIT = _vmem_limit_bytes()


# ----------------------------- in-kernel helpers -----------------------------
def _gn_silu(x2, gamma, beta):
    """GroupNorm (two-pass, biased variance) + SiLU over a (N, C) block.  All f32.

    gamma/beta: (1, C).  Group stats are per-channel sums folded into per-group means/vars via
    tiny one-hot matmuls whose one-hots are built in-kernel with iota (no HBM input, no int div).
    """
    N, C = x2.shape
    G = NUM_GROUPS
    k = C // G
    inv_cnt = 1.0 / float(N * k)

    ci = jax.lax.broadcasted_iota(jnp.int32, (C, G), 0)
    gl = jax.lax.broadcasted_iota(jnp.int32, (C, G), 1) * k
    m = ((ci >= gl) & (ci < gl + k)).astype(jnp.float32)          # (C, G) channel -> group
    cj = jax.lax.broadcasted_iota(jnp.int32, (G, C), 1)
    gr = jax.lax.broadcasted_iota(jnp.int32, (G, C), 0) * k
    mt = ((cj >= gr) & (cj < gr + k)).astype(jnp.float32)         # (G, C) group -> channel

    s = jnp.sum(x2, axis=0, keepdims=True)                        # (1, C) per-channel sums
    mean = jnp.dot(jnp.dot(s, m, preferred_element_type=jnp.float32) * inv_cnt,
                   mt, preferred_element_type=jnp.float32)        # (1, C) group mean per channel
    d = x2 - mean
    ssq = jnp.sum(d * d, axis=0, keepdims=True)                   # (1, C)
    var = jnp.dot(jnp.dot(ssq, m, preferred_element_type=jnp.float32) * inv_cnt,
                  mt, preferred_element_type=jnp.float32)         # (1, C) group var per channel
    y = d * jax.lax.rsqrt(var + EPS) * gamma + beta
    # SiLU: exp on the EUP; approximate reciprocal also on the EUP (keeps the VALU slot free).
    return y * pl.reciprocal(1.0 + jnp.exp(-y), approx=True)


def _conv3x3(y2d, wm, H, W):
    """3x3 'same' conv with kw merged into the contraction.

    y2d: (H*W, C) f32 activation (zero padding assumed outside the image).
    wm:  (3, 3*C, Cout) bf16 with wm[kh, kw*C + c, o] == conv_w[kh, kw, c, o].
    Returns (H*W, Cout) f32.
    """
    C = y2d.shape[-1]
    Cout = wm.shape[-1]
    y = y2d.reshape(H, W, C)

    # Zero halo built in-kernel (no wrapper jnp.pad, no HBM mask).  The W halo is 8 columns wide so
    # every axis-1 concat operand is aligned to the f32 sublane tile; only the +/-1 column is read.
    zc = jnp.zeros((H, 8, C), y.dtype)
    yp = jnp.concatenate([zc, y, zc], axis=1)                     # (H,   W+16, C)
    zr = jnp.zeros((1, W + 16, C), y.dtype)
    yp = jnp.concatenate([zr, yp, zr], axis=0)                    # (H+2, W+16, C)

    # kw merged into the contraction (K = 3*C); cast to bf16 ONCE after the lane concat.
    # TODO(synk): for C >= MXU depth (256 on v6e/v7x, 128 on v5e) skip the kw merge (9 K=C matmuls)
    #             to avoid tripling the activation footprint.
    M = jnp.concatenate([yp[:, 7:7 + W, :], yp[:, 8:8 + W, :], yp[:, 9:9 + W, :]],
                        axis=-1).astype(jnp.bfloat16)             # (H+2, W, 3C)

    acc = jnp.zeros((H * W, Cout), jnp.float32)
    for kh in range(3):                                           # 3 big-K bf16 MXU matmuls
        acc = acc + jnp.dot(M[kh:kh + H].reshape(H * W, 3 * C), wm[kh],
                            preferred_element_type=jnp.float32)
    return acc


# ----------------------------- fused kernel -----------------------------
def _block_body(x_ref, g1, b1, w1, bias1, g2, b2, w2, cb2, scw, scb, o_ref):
    H, W, Cin = x_ref.shape
    Cout = o_ref.shape[-1]
    x2 = x_ref[...].reshape(H * W, Cin)                           # f32 residual / GN1 input

    # GN1 + SiLU + conv1 + (conv1_b + temb_proj[b])
    h = _conv3x3(_gn_silu(x2, g1[...], b1[...]), w1[...], H, W) + bias1[...]      # (H*W, Cout)

    # GN2 + SiLU + conv2 + conv2_b  (h never leaves VMEM)
    out = _conv3x3(_gn_silu(h, g2[...], b2[...]), w2[...], H, W) + cb2[...]       # (H*W, Cout)

    # shortcut
    if scw is None:                                               # identity: plain elementwise add
        out = out + x2
    else:                                                         # 1x1 conv shortcut: bf16 matmul
        out = out + (jnp.dot(x2.astype(jnp.bfloat16), scw[...],
                             preferred_element_type=jnp.float32) + scb[...])

    o_ref[...] = out.reshape(H, W, Cout)


def _resnet_id_kernel(x_ref, g1, b1, w1, bias1, g2, b2, w2, cb2, o_ref):
    _block_body(x_ref, g1, b1, w1, bias1, g2, b2, w2, cb2, None, None, o_ref)


def _resnet_proj_kernel(x_ref, g1, b1, w1, bias1, g2, b2, w2, cb2, scw, scb, o_ref):
    _block_body(x_ref, g1, b1, w1, bias1, g2, b2, w2, cb2, scw, scb, o_ref)


# ----------------------------- wrapper -----------------------------
@jax.jit
def resnet_block_2d(x_nchw, temb, params):
    B, Cin, H, W = x_nchw.shape
    Cout = params["conv1_w"].shape[-1]
    f32 = jnp.float32

    x = jnp.transpose(x_nchw, (0, 2, 3, 1)).astype(f32)           # NHWC (channels on lanes)

    # time-embedding projection: tiny matmul -> plain XLA, folded into conv1's per-batch bias
    tproj = jax.nn.silu(temb.astype(f32)) @ params["temb_w"] + params["temb_b"]   # (B, Cout)
    bias1 = (tproj + params["conv1_b"][None, :]).reshape(B, 1, Cout)

    # conv weights with kw merged into the contraction dim, bf16 for the MXU
    w1m = params["conv1_w"].reshape(3, 3 * Cin, Cout).astype(jnp.bfloat16)
    w2m = params["conv2_w"].reshape(3, 3 * Cout, Cout).astype(jnp.bfloat16)

    in_specs = [
        pl.BlockSpec((None, H, W, Cin), lambda b: (b, 0, 0, 0)),          # x (unpadded)
        pl.BlockSpec((1, Cin), lambda b: (0, 0)),                         # gn1 gamma
        pl.BlockSpec((1, Cin), lambda b: (0, 0)),                         # gn1 beta
        pl.BlockSpec((3, 3 * Cin, Cout), lambda b: (0, 0, 0)),            # conv1 w (kw-merged)
        pl.BlockSpec((None, 1, Cout), lambda b: (b, 0, 0)),               # conv1_b + temb[b]
        pl.BlockSpec((1, Cout), lambda b: (0, 0)),                        # gn2 gamma
        pl.BlockSpec((1, Cout), lambda b: (0, 0)),                        # gn2 beta
        pl.BlockSpec((3, 3 * Cout, Cout), lambda b: (0, 0, 0)),           # conv2 w (kw-merged)
        pl.BlockSpec((1, Cout), lambda b: (0, 0)),                        # conv2 b
    ]
    args = [x,
            params["gn1_gamma"].reshape(1, Cin), params["gn1_beta"].reshape(1, Cin),
            w1m, bias1,
            params["gn2_gamma"].reshape(1, Cout), params["gn2_beta"].reshape(1, Cout),
            w2m, params["conv2_b"].reshape(1, Cout)]

    if Cin != Cout:                                                # 1x1 conv shortcut, fused
        kernel = _resnet_proj_kernel
        in_specs += [pl.BlockSpec((Cin, Cout), lambda b: (0, 0)),
                     pl.BlockSpec((1, Cout), lambda b: (0, 0))]
        args += [params["sc_w"].astype(jnp.bfloat16), params["sc_b"].reshape(1, Cout)]
    else:                                                          # identity shortcut
        kernel = _resnet_id_kernel

    out = pl.pallas_call(
        kernel,
        out_shape=jax.ShapeDtypeStruct((B, H, W, Cout), f32),
        grid=(B,),
        in_specs=in_specs,
        out_specs=pl.BlockSpec((None, H, W, Cout), lambda b: (b, 0, 0, 0)),
        compiler_params=pltpu.CompilerParams(dimension_semantics=("parallel",),
                                             vmem_limit_bytes=_VMEM_LIMIT),
    )(*args)

    return jnp.transpose(out, (0, 3, 1, 2))                        # back to NCHW


# ----------------------------- pure-JAX reference -----------------------------
def ref_forward(x_nchw, temb, params):
    G = NUM_GROUPS

    def silu(v):
        return v * jax.nn.sigmoid(v)

    def gn(v, gamma, beta):
        B, C, H, W = v.shape
        vg = v.reshape(B, G, (C // G) * H * W)
        mean = vg.mean(axis=2, keepdims=True)
        var = vg.var(axis=2, keepdims=True)
        vn = ((vg - mean) / jnp.sqrt(var + EPS)).reshape(B, C, H, W)
        return vn * gamma[None, :, None, None] + beta[None, :, None, None]

    def conv(v, w, b):
        o = jax.lax.conv_general_dilated(v, w, (1, 1), ((1, 1), (1, 1)),
                                         dimension_numbers=("NCHW", "HWIO", "NCHW"))
        return o + b[None, :, None, None]

    h = silu(gn(x_nchw, params["gn1_gamma"], params["gn1_beta"]))
    h = conv(h, params["conv1_w"], params["conv1_b"])
    t = silu(temb) @ params["temb_w"] + params["temb_b"]
    h = h + t[:, :, None, None]
    h = silu(gn(h, params["gn2_gamma"], params["gn2_beta"]))
    h = conv(h, params["conv2_w"], params["conv2_b"])
    Cin, Cout = x_nchw.shape[1], params["conv1_w"].shape[-1]
    if Cin != Cout:
        sc = jnp.einsum("bchw,cd->bdhw", x_nchw, params["sc_w"]) + params["sc_b"][None, :, None, None]
    else:
        sc = x_nchw
    return sc + h


# ----------------------------- test -----------------------------
def make_params(key, Cin, Cout, T):
    ks = jax.random.split(key, 12)
    s = 0.1
    p = {
        "gn1_gamma": 1.0 + s * jax.random.normal(ks[0], (Cin,), jnp.float32),
        "gn1_beta": s * jax.random.normal(ks[1], (Cin,), jnp.float32),
        "conv1_w": s * jax.random.normal(ks[2], (3, 3, Cin, Cout), jnp.float32),   # HWIO
        "conv1_b": s * jax.random.normal(ks[3], (Cout,), jnp.float32),
        "temb_w": s * jax.random.normal(ks[4], (T, Cout), jnp.float32),
        "temb_b": s * jax.random.normal(ks[5], (Cout,), jnp.float32),
        "gn2_gamma": 1.0 + s * jax.random.normal(ks[6], (Cout,), jnp.float32),
        "gn2_beta": s * jax.random.normal(ks[7], (Cout,), jnp.float32),
        "conv2_w": s * jax.random.normal(ks[8], (3, 3, Cout, Cout), jnp.float32),
        "conv2_b": s * jax.random.normal(ks[9], (Cout,), jnp.float32),
    }
    if Cin != Cout:
        p["sc_w"] = s * jax.random.normal(ks[10], (Cin, Cout), jnp.float32)        # 1x1 conv
        p["sc_b"] = s * jax.random.normal(ks[11], (Cout,), jnp.float32)
    return p


def run_case(key, B, Cin, Cout, H, W, T):
    kp, kx, kt = jax.random.split(key, 3)
    params = make_params(kp, Cin, Cout, T)
    x = jax.random.normal(kx, (B, Cin, H, W), jnp.float32)      # NCHW, like PyTorch
    temb = jax.random.normal(kt, (B, T), jnp.float32)
    out = jax.block_until_ready(resnet_block_2d(x, temb, params))
    ref = jax.block_until_ready(ref_forward(x, temb, params))
    assert out.shape == (B, Cout, H, W)
    return float(jnp.max(jnp.abs(out - ref)))


if __name__ == "__main__":
    key = jax.random.PRNGKey(0)
    k1, k2 = jax.random.split(key)
    err_proj = run_case(k1, B=2, Cin=32, Cout=64, H=16, W=16, T=64)   # conv-shortcut path
    err_id = run_case(k2, B=2, Cin=64, Cout=64, H=16, W=16, T=64)     # identity-shortcut path
    # bf16 MXU operands + approx EUP reciprocal (f32 accumulation) -> tolerance vs f32 reference.
    if err_proj < 5e-2 and err_id < 5e-2:
        print("KERNEL_OK")
    else:
        print(f"MISMATCH err_proj={err_proj} err_identity={err_id}")
</pallas_src>

<mosaic_0001>
module attributes {stable_mosaic.version = 11 : i64} {
  func.func @_resnet_proj_kernel(%arg0: i32, %arg1: memref<1x16x16x32xf32, #tpu.memory_space<vmem>>, %arg2: memref<1x32xf32, #tpu.memory_space<vmem>>, %arg3: memref<1x32xf32, #tpu.memory_space<vmem>>, %arg4: memref<3x96x64xbf16, #tpu.memory_space<vmem>>, %arg5: memref<1x1x64xf32, #tpu.memory_space<vmem>>, %arg6: memref<1x64xf32, #tpu.memory_space<vmem>>, %arg7: memref<1x64xf32, #tpu.memory_space<vmem>>, %arg8: memref<3x192x64xbf16, #tpu.memory_space<vmem>>, %arg9: memref<1x64xf32, #tpu.memory_space<vmem>>, %arg10: memref<32x64xbf16, #tpu.memory_space<vmem>>, %arg11: memref<1x64xf32, #tpu.memory_space<vmem>>, %arg12: memref<1x16x16x64xf32, #tpu.memory_space<vmem>>) attributes {dimension_semantics = [#tpu.dimension_semantics<parallel>], iteration_bounds = array<i64: 2>, scalar_prefetch = 0 : i64, scratch_operands = 0 : i64, tpu.core_type = #tpu.core_type<tc>, window_params = [{transform_indices = @transform_0, window_bounds = array<i64: 1, 16, 16, 32>}, {pipeline_mode = #tpu.pipeline_mode<synchronous>, transform_indices = @transform_1, window_bounds = array<i64: 1, 32>}, {pipeline_mode = #tpu.pipeline_mode<synchronous>, transform_indices = @transform_2, window_bounds = array<i64: 1, 32>}, {pipeline_mode = #tpu.pipeline_mode<synchronous>, transform_indices = @transform_3, window_bounds = array<i64: 3, 96, 64>}, {transform_indices = @transform_4, window_bounds = array<i64: 1, 1, 64>}, {pipeline_mode = #tpu.pipeline_mode<synchronous>, transform_indices = @transform_5, window_bounds = array<i64: 1, 64>}, {pipeline_mode = #tpu.pipeline_mode<synchronous>, transform_indices = @transform_6, window_bounds = array<i64: 1, 64>}, {pipeline_mode = #tpu.pipeline_mode<synchronous>, transform_indices = @transform_7, window_bounds = array<i64: 3, 192, 64>}, {pipeline_mode = #tpu.pipeline_mode<synchronous>, transform_indices = @transform_8, window_bounds = array<i64: 1, 64>}, {pipeline_mode = #tpu.pipeline_mode<synchronous>, transform_indices = @transform_9, window_bounds = array<i64: 32, 64>}, {pipeline_mode = #tpu.pipeline_mode<synchronous>, transform_indices = @transform_10, window_bounds = array<i64: 1, 64>}, {transform_indices = @transform_11, window_bounds = array<i64: 1, 16, 16, 64>}]} {
    %c0 = arith.constant 0 : index
    %c0_0 = arith.constant 0 : index
    %c0_1 = arith.constant 0 : index
    %c0_2 = arith.constant 0 : index
    %0 = vector.load %arg1[%c0, %c0_0, %c0_1, %c0_2] : memref<1x16x16x32xf32, #tpu.memory_space<vmem>>, vector<1x16x16x32xf32>
    %1 = vector.shape_cast %0 : vector<1x16x16x32xf32> to vector<16x16x32xf32>
    %2 = vector.shape_cast %1 : vector<16x16x32xf32> to vector<256x32xf32>
    %c0_3 = arith.constant 0 : index
    %c0_4 = arith.constant 0 : index
    %3 = vector.load %arg2[%c0_3, %c0_4] : memref<1x32xf32, #tpu.memory_space<vmem>>, vector<1x32xf32>
    %c0_5 = arith.constant 0 : index
    %c0_6 = arith.constant 0 : index
    %4 = vector.load %arg3[%c0_5, %c0_6] : memref<1x32xf32, #tpu.memory_space<vmem>>, vector<1x32xf32>
    %5 = tpu.iota {dimensions = array<i32: 0>} : vector<32x32xi32>
    %6 = tpu.iota {dimensions = array<i32: 1>} : vector<32x32xi32>
    %c1_i32 = arith.constant 1 : i32
    %7 = vector.broadcast %c1_i32 : i32 to vector<32x32xi32>
    %8 = arith.muli %6, %7 : vector<32x32xi32>
    %9 = arith.cmpi sge, %5, %8 : vector<32x32xi32>
    %c1_i32_7 = arith.constant 1 : i32
    %10 = vector.broadcast %c1_i32_7 : i32 to vector<32x32xi32>
    %11 = arith.addi %8, %10 : vector<32x32xi32>
    %12 = arith.cmpi slt, %5, %11 : vector<32x32xi32>
    %13 = arith.andi %9, %12 : vector<32x32xi1>
    %14 = arith.extui %13 : vector<32x32xi1> to vector<32x32xi32>
    %15 = arith.sitofp %14 : vector<32x32xi32> to vector<32x32xf32>
    %16 = tpu.iota {dimensions = array<i32: 1>} : vector<32x32xi32>
    %17 = tpu.iota {dimensions = array<i32: 0>} : vector<32x32xi32>
    %c1_i32_8 = arith.constant 1 : i32
    %18 = vector.broadcast %c1_i32_8 : i32 to vector<32x32xi32>
    %19 = arith.muli %17, %18 : vector<32x32xi32>
    %20 = arith.cmpi sge, %16, %19 : vector<32x32xi32>
    %c1_i32_9 = arith.constant 1 : i32
    %21 = vector.broadcast %c1_i32_9 : i32 to vector<32x32xi32>
    %22 = arith.addi %19, %21 : vector<32x32xi32>
    %23 = arith.cmpi slt, %16, %22 : vector<32x32xi32>
    %24 = arith.andi %20, %23 : vector<32x32xi1>
    %25 = arith.extui %24 : vector<32x32xi1> to vector<32x32xi32>
    %26 = arith.sitofp %25 : vector<32x32xi32> to vector<32x32xf32>
    %cst = arith.constant dense<0.000000e+00> : vector<32xf32>
    %27 = vector.multi_reduction <add>, %2, %cst [0] : vector<256x32xf32> to vector<32xf32>
    %28 = vector.shape_cast %27 : vector<32xf32> to vector<1x32xf32>
    %cst_10 = arith.constant dense<0.000000e+00> : vector<1x32xf32>
    %29 = tpu.matmul %28, %15, %cst_10 {dimension_numbers = #tpu.dot_dimension_numbers<[1], [0], [0], [1], [0, 0, 1, 1], [], []>} : vector<1x32xf32>, vector<32x32xf32>, vector<1x32xf32> -> vector<1x32xf32>
    %cst_11 = arith.constant 3.906250e-03 : f32
    %30 = vector.broadcast %cst_11 : f32 to vector<1x32xf32>
    %31 = arith.mulf %29, %30 : vector<1x32xf32>
    %cst_12 = arith.constant dense<0.000000e+00> : vector<1x32xf32>
    %32 = tpu.matmul %31, %26, %cst_12 {dimension_numbers = #tpu.dot_dimension_numbers<[1], [0], [0], [1], [0, 0, 1, 1], [], []>} : vector<1x32xf32>, vector<32x32xf32>, vector<1x32xf32> -> vector<1x32xf32>
    %33 = vector.broadcast %32 : vector<1x32xf32> to vector<256x32xf32>
    %34 = arith.subf %2, %33 : vector<256x32xf32>
    %35 = arith.mulf %34, %34 : vector<256x32xf32>
    %cst_13 = arith.constant dense<0.000000e+00> : vector<32xf32>
    %36 = vector.multi_reduction <add>, %35, %cst_13 [0] : vector<256x32xf32> to vector<32xf32>
    %37 = vector.shape_cast %36 : vector<32xf32> to vector<1x32xf32>
    %cst_14 = arith.constant dense<0.000000e+00> : vector<1x32xf32>
    %38 = tpu.matmul %37, %15, %cst_14 {dimension_numbers = #tpu.dot_dimension_numbers<[1], [0], [0], [1], [0, 0, 1, 1], [], []>} : vector<1x32xf32>, vector<32x32xf32>, vector<1x32xf32> -> vector<1x32xf32>
    %cst_15 = arith.constant 3.906250e-03 : f32
    %39 = vector.broadcast %cst_15 : f32 to vector<1x32xf32>
    %40 = arith.mulf %38, %39 : vector<1x32xf32>
    %cst_16 = arith.constant dense<0.000000e+00> : vector<1x32xf32>
    %41 = tpu.matmul %40, %26, %cst_16 {dimension_numbers = #tpu.dot_dimension_numbers<[1], [0], [0], [1], [0, 0, 1, 1], [], []>} : vector<1x32xf32>, vector<32x32xf32>, vector<1x32xf32> -> vector<1x32xf32>
    %cst_17 = arith.constant 9.99999974E-6 : f32
    %42 = vector.broadcast %cst_17 : f32 to vector<1x32xf32>
    %43 = arith.addf %41, %42 : vector<1x32xf32>
    %44 = math.rsqrt %43 : vector<1x32xf32>
    %45 = vector.broadcast %44 : vector<1x32xf32> to vector<256x32xf32>
    %46 = arith.mulf %34, %45 : vector<256x32xf32>
    %47 = vector.broadcast %3 : vector<1x32xf32> to vector<256x32xf32>
    %48 = arith.mulf %46, %47 : vector<256x32xf32>
    %49 = vector.broadcast %4 : vector<1x32xf32> to vector<256x32xf32>
    %50 = arith.addf %48, %49 : vector<256x32xf32>
    %cst_18 = arith.constant 0.000000e+00 : f32
    %51 = vector.broadcast %cst_18 : f32 to vector<256x32xf32>
    %52 = arith.subf %51, %50 : vector<256x32xf32>
    %53 = math.exp %52 : vector<256x32xf32>
    %cst_19 = arith.constant 1.000000e+00 : f32
    %54 = vector.broadcast %cst_19 : f32 to vector<256x32xf32>
    %55 = arith.addf %54, %53 : vector<256x32xf32>
    %56 = tpu.reciprocal %55 {approx = true} : vector<256x32xf32> -> vector<256x32xf32>
    %57 = arith.mulf %50, %56 : vector<256x32xf32>
    %c0_20 = arith.constant 0 : index
    %c0_21 = arith.constant 0 : index
    %c0_22 = arith.constant 0 : index
    %58 = vector.load %arg4[%c0_20, %c0_21, %c0_22] : memref<3x96x64xbf16, #tpu.memory_space<vmem>>, vector<3x96x64xbf16>
    %59 = vector.shape_cast %57 : vector<256x32xf32> to vector<16x16x32xf32>
    %cst_23 = arith.constant 0.000000e+00 : f32
    %60 = vector.broadcast %cst_23 : f32 to vector<16x8x32xf32>
    %61 = tpu.concatenate %60, %59, %60 in 1 : vector<16x8x32xf32>, vector<16x16x32xf32>, vector<16x8x32xf32> -> vector<16x32x32xf32>
    %cst_24 = arith.constant 0.000000e+00 : f32
    %62 = vector.broadcast %cst_24 : f32 to vector<1x32x32xf32>
    %63 = tpu.concatenate %62, %61, %62 in 0 : vector<1x32x32xf32>, vector<16x32x32xf32>, vector<1x32x32xf32> -> vector<18x32x32xf32>
    %64 = vector.extract_strided_slice %63 {offsets = [0, 7, 0], sizes = [18, 16, 32], strides = [1, 1, 1]} : vector<18x32x32xf32> to vector<18x16x32xf32>
    %65 = vector.extract_strided_slice %63 {offsets = [0, 8, 0], sizes = [18, 16, 32], strides = [1, 1, 1]} : vector<18x32x32xf32> to vector<18x16x32xf32>
    %66 = vector.extract_strided_slice %63 {offsets = [0, 9, 0], sizes = [18, 16, 32], strides = [1, 1, 1]} : vector<18x32x32xf32> to vector<18x16x32xf32>
    %67 = tpu.concatenate %64, %65, %66 in 2 : vector<18x16x32xf32>, vector<18x16x32xf32>, vector<18x16x32xf32> -> vector<18x16x96xf32>
    %68 = arith.truncf %67 : vector<18x16x96xf32> to vector<18x16x96xbf16>
    %cst_25 = arith.constant 0.000000e+00 : f32
    %69 = vector.broadcast %cst_25 : f32 to vector<256x64xf32>
    %70 = vector.extract_strided_slice %68 {offsets = [0, 0, 0], sizes = [16, 16, 96], strides = [1, 1, 1]} : vector<18x16x96xbf16> to vector<16x16x96xbf16>
    %71 = vector.shape_cast %70 : vector<16x16x96xbf16> to vector<256x96xbf16>
    %72 = vector.extract_strided_slice %58 {offsets = [0, 0, 0], sizes = [1, 96, 64], strides = [1, 1, 1]} : vector<3x96x64xbf16> to vector<1x96x64xbf16>
    %73 = vector.shape_cast %72 : vector<1x96x64xbf16> to vector<96x64xbf16>
    %cst_26 = arith.constant dense<0.000000e+00> : vector<256x64xf32>
    %74 = tpu.matmul %71, %73, %cst_26 {dimension_numbers = #tpu.dot_dimension_numbers<[1], [0], [0], [1], [0, 0, 1, 1], [], []>} : vector<256x96xbf16>, vector<96x64xbf16>, vector<256x64xf32> -> vector<256x64xf32>
    %75 = arith.addf %69, %74 : vector<256x64xf32>
    %76 = vector.extract_strided_slice %68 {offsets = [1, 0, 0], sizes = [16, 16, 96], strides = [1, 1, 1]} : vector<18x16x96xbf16> to vector<16x16x96xbf16>
    %77 = vector.shape_cast %76 : vector<16x16x96xbf16> to vector<256x96xbf16>
    %78 = vector.extract_strided_slice %58 {offsets = [1, 0, 0], sizes = [1, 96, 64], strides = [1, 1, 1]} : vector<3x96x64xbf16> to vector<1x96x64xbf16>
    %79 = vector.shape_cast %78 : vector<1x96x64xbf16> to vector<96x64xbf16>
    %cst_27 = arith.constant dense<0.000000e+00> : vector<256x64xf32>
    %80 = tpu.matmul %77, %79, %cst_27 {dimension_numbers = #tpu.dot_dimension_numbers<[1], [0], [0], [1], [0, 0, 1, 1], [], []>} : vector<256x96xbf16>, vector<96x64xbf16>, vector<256x64xf32> -> vector<256x64xf32>
    %81 = arith.addf %75, %80 : vector<256x64xf32>
    %82 = vector.extract_strided_slice %68 {offsets = [2, 0, 0], sizes = [16, 16, 96], strides = [1, 1, 1]} : vector<18x16x96xbf16> to vector<16x16x96xbf16>
    %83 = vector.shape_cast %82 : vector<16x16x96xbf16> to vector<256x96xbf16>
    %84 = vector.extract_strided_slice %58 {offsets = [2, 0, 0], sizes = [1, 96, 64], strides = [1, 1, 1]} : vector<3x96x64xbf16> to vector<1x96x64xbf16>
    %85 = vector.shape_cast %84 : vector<1x96x64xbf16> to vector<96x64xbf16>
    %cst_28 = arith.constant dense<0.000000e+00> : vector<256x64xf32>
    %86 = tpu.matmul %83, %85, %cst_28 {dimension_numbers = #tpu.dot_dimension_numbers<[1], [0], [0], [1], [0, 0, 1, 1], [], []>} : vector<256x96xbf16>, vector<96x64xbf16>, vector<256x64xf32> -> vector<256x64xf32>
    %87 = arith.addf %81, %86 : vector<256x64xf32>
    %c0_29 = arith.constant 0 : index
    %c0_30 = arith.constant 0 : index
    %c0_31 = arith.constant 0 : index
    %88 = vector.load %arg5[%c0_29, %c0_30, %c0_31] : memref<1x1x64xf32, #tpu.memory_space<vmem>>, vector<1x1x64xf32>
    %89 = vector.shape_cast %88 : vector<1x1x64xf32> to vector<1x64xf32>
    %90 = vector.broadcast %89 : vector<1x64xf32> to vector<256x64xf32>
    %91 = arith.addf %87, %90 : vector<256x64xf32>
    %c0_32 = arith.constant 0 : index
    %c0_33 = arith.constant 0 : index
    %92 = vector.load %arg6[%c0_32, %c0_33] : memref<1x64xf32, #tpu.memory_space<vmem>>, vector<1x64xf32>
    %c0_34 = arith.constant 0 : index
    %c0_35 = arith.constant 0 : index
    %93 = vector.load %arg7[%c0_34, %c0_35] : memref<1x64xf32, #tpu.memory_space<vmem>>, vector<1x64xf32>
    %94 = tpu.iota {dimensions = array<i32: 0>} : vector<64x32xi32>
    %95 = tpu.iota {dimensions = array<i32: 1>} : vector<64x32xi32>
    %c2_i32 = arith.constant 2 : i32
    %96 = vector.broadcast %c2_i32 : i32 to vector<64x32xi32>
    %97 = arith.muli %95, %96 : vector<64x32xi32>
    %98 = arith.cmpi sge, %94, %97 : vector<64x32xi32>
    %c2_i32_36 = arith.constant 2 : i32
    %99 = vector.broadcast %c2_i32_36 : i32 to vector<64x32xi32>
    %100 = arith.addi %97, %99 : vector<64x32xi32>
    %101 = arith.cmpi slt, %94, %100 : vector<64x32xi32>
    %102 = arith.andi %98, %101 : vector<64x32xi1>
    %103 = arith.extui %102 : vector<64x32xi1> to vector<64x32xi32>
    %104 = arith.sitofp %103 : vector<64x32xi32> to vector<64x32xf32>
    %105 = tpu.iota {dimensions = array<i32: 1>} : vector<32x64xi32>
    %106 = tpu.iota {dimensions = array<i32: 0>} : vector<32x64xi32>
    %c2_i32_37 = arith.constant 2 : i32
    %107 = vector.broadcast %c2_i32_37 : i32 to vector<32x64xi32>
    %108 = arith.muli %106, %107 : vector<32x64xi32>
    %109 = arith.cmpi sge, %105, %108 : vector<32x64xi32>
    %c2_i32_38 = arith.constant 2 : i32
    %110 = vector.broadcast %c2_i32_38 : i32 to vector<32x64xi32>
    %111 = arith.addi %108, %110 : vector<32x64xi32>
    %112 = arith.cmpi slt, %105, %111 : vector<32x64xi32>
    %113 = arith.andi %109, %112 : vector<32x64xi1>
    %114 = arith.extui %113 : vector<32x64xi1> to vector<32x64xi32>
    %115 = arith.sitofp %114 : vector<32x64xi32> to vector<32x64xf32>
    %cst_39 = arith.constant dense<0.000000e+00> : vector<64xf32>
    %116 = vector.multi_reduction <add>, %91, %cst_39 [0] : vector<256x64xf32> to vector<64xf32>
    %117 = vector.shape_cast %116 : vector<64xf32> to vector<1x64xf32>
    %cst_40 = arith.constant dense<0.000000e+00> : vector<1x32xf32>
    %118 = tpu.matmul %117, %104, %cst_40 {dimension_numbers = #tpu.dot_dimension_numbers<[1], [0], [0], [1], [0, 0, 1, 1], [], []>} : vector<1x64xf32>, vector<64x32xf32>, vector<1x32xf32> -> vector<1x32xf32>
    %cst_41 = arith.constant 0.001953125 : f32
    %119 = vector.broadcast %cst_41 : f32 to vector<1x32xf32>
    %120 = arith.mulf %118, %119 : vector<1x32xf32>
    %cst_42 = arith.constant dense<0.000000e+00> : vector<1x64xf32>
    %121 = tpu.matmul %120, %115, %cst_42 {dimension_numbers = #tpu.dot_dimension_numbers<[1], [0], [0], [1], [0, 0, 1, 1], [], []>} : vector<1x32xf32>, vector<32x64xf32>, vector<1x64xf32> -> vector<1x64xf32>
    %122 = vector.broadcast %121 : vector<1x64xf32> to vector<256x64xf32>
    %123 = arith.subf %91, %122 : vector<256x64xf32>
    %124 = arith.mulf %123, %123 : vector<256x64xf32>
    %cst_43 = arith.constant dense<0.000000e+00> : vector<64xf32>
    %125 = vector.multi_reduction <add>, %124, %cst_43 [0] : vector<256x64xf32> to vector<64xf32>
    %126 = vector.shape_cast %125 : vector<64xf32> to vector<1x64xf32>
    %cst_44 = arith.constant dense<0.000000e+00> : vector<1x32xf32>
    %127 = tpu.matmul %126, %104, %cst_44 {dimension_numbers = #tpu.dot_dimension_numbers<[1], [0], [0], [1], [0, 0, 1, 1], [], []>} : vector<1x64xf32>, vector<64x32xf32>, vector<1x32xf32> -> vector<1x32xf32>
    %cst_45 = arith.constant 0.001953125 : f32
    %128 = vector.broadcast %cst_45 : f32 to vector<1x32xf32>
    %129 = arith.mulf %127, %128 : vector<1x32xf32>
    %cst_46 = arith.constant dense<0.000000e+00> : vector<1x64xf32>
    %130 = tpu.matmul %129, %115, %cst_46 {dimension_numbers = #tpu.dot_dimension_numbers<[1], [0], [0], [1], [0, 0, 1, 1], [], []>} : vector<1x32xf32>, vector<32x64xf32>, vector<1x64xf32> -> vector<1x64xf32>
    %cst_47 = arith.constant 9.99999974E-6 : f32
    %131 = vector.broadcast %cst_47 : f32 to vector<1x64xf32>
    %132 = arith.addf %130, %131 : vector<1x64xf32>
    %133 = math.rsqrt %132 : vector<1x64xf32>
    %134 = vector.broadcast %133 : vector<1x64xf32> to vector<256x64xf32>
    %135 = arith.mulf %123, %134 : vector<256x64xf32>
    %136 = vector.broadcast %92 : vector<1x64xf32> to vector<256x64xf32>
    %137 = arith.mulf %135, %136 : vector<256x64xf32>
    %138 = vector.broadcast %93 : vector<1x64xf32> to vector<256x64xf32>
    %139 = arith.addf %137, %138 : vector<256x64xf32>
    %cst_48 = arith.constant 0.000000e+00 : f32
    %140 = vector.broadcast %cst_48 : f32 to vector<256x64xf32>
    %141 = arith.subf %140, %139 : vector<256x64xf32>
    %142 = math.exp %141 : vector<256x64xf32>
    %cst_49 = arith.constant 1.000000e+00 : f32
    %143 = vector.broadcast %cst_49 : f32 to vector<256x64xf32>
    %144 = arith.addf %143, %142 : vector<256x64xf32>
    %145 = tpu.reciprocal %144 {approx = true} : vector<256x64xf32> -> vector<256x64xf32>
    %146 = arith.mulf %139, %145 : vector<256x64xf32>
    %c0_50 = arith.constant 0 : index
    %c0_51 = arith.constant 0 : index
    %c0_52 = arith.constant 0 : index
    %147 = vector.load %arg8[%c0_50, %c0_51, %c0_52] : memref<3x192x64xbf16, #tpu.memory_space<vmem>>, vector<3x192x64xbf16>
    %148 = vector.shape_cast %146 : vector<256x64xf32> to vector<16x16x64xf32>
    %cst_53 = arith.constant 0.000000e+00 : f32
    %149 = vector.broadcast %cst_53 : f32 to vector<16x8x64xf32>
    %150 = tpu.concatenate %149, %148, %149 in 1 : vector<16x8x64xf32>, vector<16x16x64xf32>, vector<16x8x64xf32> -> vector<16x32x64xf32>
    %cst_54 = arith.constant 0.000000e+00 : f32
    %151 = vector.broadcast %cst_54 : f32 to vector<1x32x64xf32>
    %152 = tpu.concatenate %151, %150, %151 in 0 : vector<1x32x64xf32>, vector<16x32x64xf32>, vector<1x32x64xf32> -> vector<18x32x64xf32>
    %153 = vector.extract_strided_slice %152 {offsets = [0, 7, 0], sizes = [18, 16, 64], strides = [1, 1, 1]} : vector<18x32x64xf32> to vector<18x16x64xf32>
    %154 = vector.extract_strided_slice %152 {offsets = [0, 8, 0], sizes = [18, 16, 64], strides = [1, 1, 1]} : vector<18x32x64xf32> to vector<18x16x64xf32>
    %155 = vector.extract_strided_slice %152 {offsets = [0, 9, 0], sizes = [18, 16, 64], strides = [1, 1, 1]} : vector<18x32x64xf32> to vector<18x16x64xf32>
    %156 = tpu.concatenate %153, %154, %155 in 2 : vector<18x16x64xf32>, vector<18x16x64xf32>, vector<18x16x64xf32> -> vector<18x16x192xf32>
    %157 = arith.truncf %156 : vector<18x16x192xf32> to vector<18x16x192xbf16>
    %cst_55 = arith.constant 0.000000e+00 : f32
    %158 = vector.broadcast %cst_55 : f32 to vector<256x64xf32>
    %159 = vector.extract_strided_slice %157 {offsets = [0, 0, 0], sizes = [16, 16, 192], strides = [1, 1, 1]} : vector<18x16x192xbf16> to vector<16x16x192xbf16>
    %160 = vector.shape_cast %159 : vector<16x16x192xbf16> to vector<256x192xbf16>
    %161 = vector.extract_strided_slice %147 {offsets = [0, 0, 0], sizes = [1, 192, 64], strides = [1, 1, 1]} : vector<3x192x64xbf16> to vector<1x192x64xbf16>
    %162 = vector.shape_cast %161 : vector<1x192x64xbf16> to vector<192x64xbf16>
    %cst_56 = arith.constant dense<0.000000e+00> : vector<256x64xf32>
    %163 = tpu.matmul %160, %162, %cst_56 {dimension_numbers = #tpu.dot_dimension_numbers<[1], [0], [0], [1], [0, 0, 1, 1], [], []>} : vector<256x192xbf16>, vector<192x64xbf16>, vector<256x64xf32> -> vector<256x64xf32>
    %164 = arith.addf %158, %163 : vector<256x64xf32>
    %165 = vector.extract_strided_slice %157 {offsets = [1, 0, 0], sizes = [16, 16, 192], strides = [1, 1, 1]} : vector<18x16x192xbf16> to vector<16x16x192xbf16>
    %166 = vector.shape_cast %165 : vector<16x16x192xbf16> to vector<256x192xbf16>
    %167 = vector.extract_strided_slice %147 {offsets = [1, 0, 0], sizes = [1, 192, 64], strides = [1, 1, 1]} : vector<3x192x64xbf16> to vector<1x192x64xbf16>
    %168 = vector.shape_cast %167 : vector<1x192x64xbf16> to vector<192x64xbf16>
    %cst_57 = arith.constant dense<0.000000e+00> : vector<256x64xf32>
    %169 = tpu.matmul %166, %168, %cst_57 {dimension_numbers = #tpu.dot_dimension_numbers<[1], [0], [0], [1], [0, 0, 1, 1], [], []>} : vector<256x192xbf16>, vector<192x64xbf16>, vector<256x64xf32> -> vector<256x64xf32>
    %170 = arith.addf %164, %169 : vector<256x64xf32>
    %171 = vector.extract_strided_slice %157 {offsets = [2, 0, 0], sizes = [16, 16, 192], strides = [1, 1, 1]} : vector<18x16x192xbf16> to vector<16x16x192xbf16>
    %172 = vector.shape_cast %171 : vector<16x16x192xbf16> to vector<256x192xbf16>
    %173 = vector.extract_strided_slice %147 {offsets = [2, 0, 0], sizes = [1, 192, 64], strides = [1, 1, 1]} : vector<3x192x64xbf16> to vector<1x192x64xbf16>
    %174 = vector.shape_cast %173 : vector<1x192x64xbf16> to vector<192x64xbf16>
    %cst_58 = arith.constant dense<0.000000e+00> : vector<256x64xf32>
    %175 = tpu.matmul %172, %174, %cst_58 {dimension_numbers = #tpu.dot_dimension_numbers<[1], [0], [0], [1], [0, 0, 1, 1], [], []>} : vector<256x192xbf16>, vector<192x64xbf16>, vector<256x64xf32> -> vector<256x64xf32>
    %176 = arith.addf %170, %175 : vector<256x64xf32>
    %c0_59 = arith.constant 0 : index
    %c0_60 = arith.constant 0 : index
    %177 = vector.load %arg9[%c0_59, %c0_60] : memref<1x64xf32, #tpu.memory_space<vmem>>, vector<1x64xf32>
    %178 = vector.broadcast %177 : vector<1x64xf32> to vector<256x64xf32>
    %179 = arith.addf %176, %178 : vector<256x64xf32>
    %180 = arith.truncf %2 : vector<256x32xf32> to vector<256x32xbf16>
    %c0_61 = arith.constant 0 : index
    %c0_62 = arith.constant 0 : index
    %181 = vector.load %arg10[%c0_61, %c0_62] : memref<32x64xbf16, #tpu.memory_space<vmem>>, vector<32x64xbf16>
    %cst_63 = arith.constant dense<0.000000e+00> : vector<256x64xf32>
    %182 = tpu.matmul %180, %181, %cst_63 {dimension_numbers = #tpu.dot_dimension_numbers<[1], [0], [0], [1], [0, 0, 1, 1], [], []>} : vector<256x32xbf16>, vector<32x64xbf16>, vector<256x64xf32> -> vector<256x64xf32>
    %c0_64 = arith.constant 0 : index
    %c0_65 = arith.constant 0 : index
    %183 = vector.load %arg11[%c0_64, %c0_65] : memref<1x64xf32, #tpu.memory_space<vmem>>, vector<1x64xf32>
    %184 = vector.broadcast %183 : vector<1x64xf32> to vector<256x64xf32>
    %185 = arith.addf %182, %184 : vector<256x64xf32>
    %186 = arith.addf %179, %185 : vector<256x64xf32>
    %187 = vector.shape_cast %186 : vector<256x64xf32> to vector<16x16x64xf32>
    %c0_66 = arith.constant 0 : index
    %c0_67 = arith.constant 0 : index
    %c0_68 = arith.constant 0 : index
    %c0_69 = arith.constant 0 : index
    %188 = vector.load %arg12[%c0_66, %c0_67, %c0_68, %c0_69] : memref<1x16x16x64xf32, #tpu.memory_space<vmem>>, vector<1x16x16x64xf32>
    %189 = vector.shape_cast %188 : vector<1x16x16x64xf32> to vector<16x16x64xf32>
    %190 = vector.shape_cast %187 : vector<16x16x64xf32> to vector<1x16x16x64xf32>
    tpu.vector_store %arg12[%c0_66, %c0_67, %c0_68, %c0_69], %190 {strides = array<i32>} : memref<1x16x16x64xf32, #tpu.memory_space<vmem>>, vector<1x16x16x64xf32>,
    return
  }
  func.func @transform_0(%arg0: i32) -> (i32, i32, i32, i32) {
    %c0_i32 = arith.constant 0 : i32
    %c0_i32_0 = arith.constant 0 : i32
    %c0_i32_1 = arith.constant 0 : i32
    %c0_i32_2 = arith.constant 0 : i32
    return %arg0, %c0_i32, %c0_i32_0, %c0_i32_1 : i32, i32, i32, i32
  }
  func.func @transform_1(%arg0: i32) -> (i32, i32) {
    %c0_i32 = arith.constant 0 : i32
    %c0_i32_0 = arith.constant 0 : i32
    %c0_i32_1 = arith.constant 0 : i32
    return %c0_i32, %c0_i32_0 : i32, i32
  }
  func.func @transform_2(%arg0: i32) -> (i32, i32) {
    %c0_i32 = arith.constant 0 : i32
    %c0_i32_0 = arith.constant 0 : i32
    %c0_i32_1 = arith.constant 0 : i32
    return %c0_i32, %c0_i32_0 : i32, i32
  }
  func.func @transform_3(%arg0: i32) -> (i32, i32, i32) {
    %c0_i32 = arith.constant 0 : i32
    %c0_i32_0 = arith.constant 0 : i32
    %c0_i32_1 = arith.constant 0 : i32
    %c0_i32_2 = arith.constant 0 : i32
    return %c0_i32, %c0_i32_0, %c0_i32_1 : i32, i32, i32
  }
  func.func @transform_4(%arg0: i32) -> (i32, i32, i32) {
    %c0_i32 = arith.constant 0 : i32
    %c0_i32_0 = arith.constant 0 : i32
    %c0_i32_1 = arith.constant 0 : i32
    return %arg0, %c0_i32, %c0_i32_0 : i32, i32, i32
  }
  func.func @transform_5(%arg0: i32) -> (i32, i32) {
    %c0_i32 = arith.constant 0 : i32
    %c0_i32_0 = arith.constant 0 : i32
    %c0_i32_1 = arith.constant 0 : i32
    return %c0_i32, %c0_i32_0 : i32, i32
  }
  func.func @transform_6(%arg0: i32) -> (i32, i32) {
    %c0_i32 = arith.constant 0 : i32
    %c0_i32_0 = arith.constant 0 : i32
    %c0_i32_1 = arith.constant 0 : i32
    return %c0_i32, %c0_i32_0 : i32, i32
  }
  func.func @transform_7(%arg0: i32) -> (i32, i32, i32) {
    %c0_i32 = arith.constant 0 : i32
    %c0_i32_0 = arith.constant 0 : i32
    %c0_i32_1 = arith.constant 0 : i32
    %c0_i32_2 = arith.constant 0 : i32
    return %c0_i32, %c0_i32_0, %c0_i32_1 : i32, i32, i32
  }
  func.func @transform_8(%arg0: i32) -> (i32, i32) {
    %c0_i32 = arith.constant 0 : i32
    %c0_i32_0 = arith.constant 0 : i32
    %c0_i32_1 = arith.constant 0 : i32
    return %c0_i32, %c0_i32_0 : i32, i32
  }
  func.func @transform_9(%arg0: i32) -> (i32, i32) {
    %c0_i32 = arith.constant 0 : i32
    %c0_i32_0 = arith.constant 0 : i32
    %c0_i32_1 = arith.constant 0 : i32
    return %c0_i32, %c0_i32_0 : i32, i32
  }
  func.func @transform_10(%arg0: i32) -> (i32, i32) {
    %c0_i32 = arith.constant 0 : i32
    %c0_i32_0 = arith.constant 0 : i32
    %c0_i32_1 = arith.constant 0 : i32
    return %c0_i32, %c0_i32_0 : i32, i32
  }
  func.func @transform_11(%arg0: i32) -> (i32, i32, i32, i32) {
    %c0_i32 = arith.constant 0 : i32
    %c0_i32_0 = arith.constant 0 : i32
    %c0_i32_1 = arith.constant 0 : i32
    %c0_i32_2 = arith.constant 0 : i32
    return %arg0, %c0_i32, %c0_i32_0, %c0_i32_1 : i32, i32, i32, i32
  }
}

</mosaic_0001>

<llo_original>
// kernel: resnet_block_2d.1
$region0: #{resnet_block_2d.1}
  #allocation0 [shape = 'u32[]', space=smem, size = 0x4, offset = 0x4, fixed_abs, tag = 'smem constant byte address 0x4 - core index']
  #allocation1 [shape = 'u32[144,128]{1,0:T(1,128)}', space=vmem, size = 0x12000, scoped, tag = 'internal scratch']
  %s0 = inlined_call_operand.vmem [shape: f32[2,16,16,32], index: 0, kind: input, shape index: {}]
  %s1 = inlined_call_operand.vmem [shape: f32[1,32], index: 1, kind: input, shape index: {}]
  %s2 = inlined_call_operand.vmem [shape: f32[1,32], index: 2, kind: input, shape index: {}]
  %s3 = inlined_call_operand.vmem [shape: bf16[3,96,64], index: 3, kind: input, shape index: {}]
  %s4 = inlined_call_operand.vmem [shape: f32[2,1,64], index: 4, kind: input, shape index: {}]
  %s5 = inlined_call_operand.vmem [shape: f32[1,64], index: 5, kind: input, shape index: {}]
  %s6 = inlined_call_operand.vmem [shape: f32[1,64], index: 6, kind: input, shape index: {}]
  %s7 = inlined_call_operand.vmem [shape: bf16[3,192,64], index: 7, kind: input, shape index: {}]
  %s8 = inlined_call_operand.vmem [shape: f32[1,64], index: 8, kind: input, shape index: {}]
  %s9 = inlined_call_operand.vmem [shape: bf16[32,64], index: 9, kind: input, shape index: {}]
  %s10 = inlined_call_operand.vmem [shape: f32[1,64], index: 10, kind: input, shape index: {}]
  %s11 = inlined_call_operand.hbm [shape: f32[2,16,16,64], index: 11, kind: output, shape index: {}]
  %s12 = sld [smem:[#allocation0]]
  $region77: #{resnet_block_2d.1} parent=0
    _
  %s14 = ssub.s32 1, %s12
  %s15 = scalar_select 0, %s14, %s12
  $region1: #{resnet_block_2d.1} parent=0
    #allocation2 [shape = 'u8[262144]{0}', space=vmem, size = 0x40000, scoped, tag = 'output window, operand 0']
    #allocation3 [shape = 's32[2]{0}', space=sflag, size = 0x8, scoped, tag = 'scoped memory for resnet_block_2d.1']
    %16 = vsyncpa [#allocation3], 0
    %s17 = scalar_lea.sflag [#allocation3], 1
    %18 = vsyncpa %s17, 0
    loop: start=0, step=1, limit=4
    $region2: #{resnet_block_2d.1} parent=1 // loop_pre_header
      _
    $region3: #{resnet_block_2d.1} parent=1 // loop_header
      %s20 = sphi 0, %s24
      %p21 = scmp.ge.s32.totalorder %s20, 4
      %s30 = sphi 0, %s32
      %s33 = sphi 0, %s30
      %s34 = sphi 0, %s33
      %s50 = sphi 0, %s34
      %s54 = sphi 0, %s54
      %s56 = sphi 0, %s54
      %s57 = sphi 0, %s56
      %s71 = sphi 0, %s57
      %s75 = sphi 0, %s75
      %s77 = sphi 0, %s75
      %s78 = sphi 0, %s77
      %s92 = sphi 0, %s78
      %s96 = sphi 0, %s96
      %s98 = sphi 0, %s96
      %s99 = sphi 0, %s98
      %s113 = sphi 0, %s99
      %s119 = sphi 0, %s121
      %s122 = sphi 0, %s119
      %s123 = sphi 0, %s122
      %s139 = sphi 0, %s123
      %s143 = sphi 0, %s143
      %s145 = sphi 0, %s143
      %s146 = sphi 0, %s145
      %s160 = sphi 0, %s146
      %s164 = sphi 0, %s164
      %s166 = sphi 0, %s164
      %s167 = sphi 0, %s166
      %s181 = sphi 0, %s167
      %s185 = sphi 0, %s185
      %s187 = sphi 0, %s185
      %s188 = sphi 0, %s187
      %s202 = sphi 0, %s188
      %s206 = sphi 0, %s206
      %s208 = sphi 0, %s206
      %s209 = sphi 0, %s208
      %s223 = sphi 0, %s209
      %s227 = sphi 0, %s227
      %s229 = sphi 0, %s227
      %s230 = sphi 0, %s229
      %s244 = sphi 0, %s230
      %s248 = sphi 0, %s248
      %s250 = sphi 0, %s248
      %s251 = sphi 0, %s250
      %s265 = sphi 0, %s251
      %s271 = sphi 0, %s273
      %s274 = sphi 0, %s271
      %s275 = sphi 0, %s274
      %s291 = sphi 0, %s275
    $region4: #{resnet_block_2d.1} parent=1 // loop_header_branch
      %23 = sbr.rel (%p21) target = $region8
    $region5: #{resnet_block_2d.1} parent=1 // loop_body
      %s25 = ssub.s32 %s20, 1
      %s26 = ssub.s32 %s20, 2
      %s27 = sadd.s32 %s20, 1
      %s28 = ssub.s32 %s20, %s27
      %p29 = scmp.eq.s32.totalorder %s28, 0
      %s31 = sadd.s32 %s30, 1
      %s32 = scalar_select %p29, %s30, %s31
      %p35 = pneg %p29
      %p36 = scmp.eq.s32.totalorder %s20, 1
      %p37 = por %p35, %p36
      %p38 = scmp.ne.s32.totalorder %s30, %s33
      %p39 = scmp.eq.s32.totalorder %s20, 0
      %p40 = por %p38, %p39
      %p41 = scmp.ne.s32.totalorder %s30, %s33
      %p42 = scmp.eq.s32.totalorder %s25, 1
      %p43 = por %p41, %p42
      %p44 = scmp.ne.s32.totalorder %s33, %s34
      %p45 = scmp.eq.s32.totalorder %s25, 0
      %p46 = por %p44, %p45
      %p47 = scmp.ne.s32.totalorder %s33, %s34
      %p48 = scmp.eq.s32.totalorder %s26, 1
      %p49 = por %p47, %p48
      %p51 = scmp.ne.s32.totalorder %s34, %s50
      %p52 = scmp.eq.s32.totalorder %s26, 0
      %p53 = por %p51, %p52
      %s55 = sadd.s32 %s54, 1
      %p58 = scmp.eq.s32.totalorder %s20, 1
      %p59 = scmp.ne.s32.totalorder %s54, %s56
      %p60 = scmp.eq.s32.totalorder %s20, 0
      %p61 = por %p59, %p60
      %p62 = scmp.ne.s32.totalorder %s54, %s56
      %p63 = scmp.eq.s32.totalorder %s25, 1
      %p64 = por %p62, %p63
      %p65 = scmp.ne.s32.totalorder %s56, %s57
      %p66 = scmp.eq.s32.totalorder %s25, 0
      %p67 = por %p65, %p66
      %p68 = scmp.ne.s32.totalorder %s56, %s57
      %p69 = scmp.eq.s32.totalorder %s26, 1
      %p70 = por %p68, %p69
      %p72 = scmp.ne.s32.totalorder %s57, %s71
      %p73 = scmp.eq.s32.totalorder %s26, 0
      %p74 = por %p72, %p73
      %s76 = sadd.s32 %s75, 1
      %p79 = scmp.eq.s32.totalorder %s20, 1
      %p80 = scmp.ne.s32.totalorder %s75, %s77
      %p81 = scmp.eq.s32.totalorder %s20, 0
      %p82 = por %p80, %p81
      %p83 = scmp.ne.s32.totalorder %s75, %s77
      %p84 = scmp.eq.s32.totalorder %s25, 1
      %p85 = por %p83, %p84
      %p86 = scmp.ne.s32.totalorder %s77, %s78
      %p87 = scmp.eq.s32.totalorder %s25, 0
      %p88 = por %p86, %p87
      %p89 = scmp.ne.s32.totalorder %s77, %s78
      %p90 = scmp.eq.s32.totalorder %s26, 1
      %p91 = por %p89, %p90
      %p93 = scmp.ne.s32.totalorder %s78, %s92
      %p94 = scmp.eq.s32.totalorder %s26, 0
      %p95 = por %p93, %p94
      %s97 = sadd.s32 %s96, 1
      %p100 = scmp.eq.s32.totalorder %s20, 1
      %p101 = scmp.ne.s32.totalorder %s96, %s98
      %p102 = scmp.eq.s32.totalorder %s20, 0
      %p103 = por %p101, %p102
      %p104 = scmp.ne.s32.totalorder %s96, %s98
      %p105 = scmp.eq.s32.totalorder %s25, 1
      %p106 = por %p104, %p105
      %p107 = scmp.ne.s32.totalorder %s98, %s99
      %p108 = scmp.eq.s32.totalorder %s25, 0
      %p109 = por %p107, %p108
      %p110 = scmp.ne.s32.totalorder %s98, %s99
      %p111 = scmp.eq.s32.totalorder %s26, 1
      %p112 = por %p110, %p111
      %p114 = scmp.ne.s32.totalorder %s99, %s113
      %p115 = scmp.eq.s32.totalorder %s26, 0
      %p116 = por %p114, %p115
      %s117 = ssub.s32 %s20, %s27
      %p118 = scmp.eq.s32.totalorder %s117, 0
      %s120 = sadd.s32 %s119, 1
      %s121 = scalar_select %p118, %s119, %s120
      %p124 = pneg %p118
      %p125 = scmp.eq.s32.totalorder %s20, 1
      %p126 = por %p124, %p125
      %p127 = scmp.ne.s32.totalorder %s119, %s122
      %p128 = scmp.eq.s32.totalorder %s20, 0
      %p129 = por %p127, %p128
      %p130 = scmp.ne.s32.totalorder %s119, %s122
      %p131 = scmp.eq.s32.totalorder %s25, 1
      %p132 = por %p130, %p131
      %p133 = scmp.ne.s32.totalorder %s122, %s123
      %p134 = scmp.eq.s32.totalorder %s25, 0
      %p135 = por %p133, %p134
      %p136 = scmp.ne.s32.totalorder %s122, %s123
      %p137 = scmp.eq.s32.totalorder %s26, 1
      %p138 = por %p136, %p137
      %p140 = scmp.ne.s32.totalorder %s123, %s139
      %p141 = scmp.eq.s32.totalorder %s26, 0
      %p142 = por %p140, %p141
      %s144 = sadd.s32 %s143, 1
      %p147 = scmp.eq.s32.totalorder %s20, 1
      %p148 = scmp.ne.s32.totalorder %s143, %s145
      %p149 = scmp.eq.s32.totalorder %s20, 0
      %p150 = por %p148, %p149
      %p151 = scmp.ne.s32.totalorder %s143, %s145
      %p152 = scmp.eq.s32.totalorder %s25, 1
      %p153 = por %p151, %p152
      %p154 = scmp.ne.s32.totalorder %s145, %s146
      %p155 = scmp.eq.s32.totalorder %s25, 0
      %p156 = por %p154, %p155
      %p157 = scmp.ne.s32.totalorder %s145, %s146
      %p158 = scmp.eq.s32.totalorder %s26, 1
      %p159 = por %p157, %p158
      %p161 = scmp.ne.s32.totalorder %s146, %s160
      %p162 = scmp.eq.s32.totalorder %s26, 0
      %p163 = por %p161, %p162
      %s165 = sadd.s32 %s164, 1
      %p168 = scmp.eq.s32.totalorder %s20, 1
      %p169 = scmp.ne.s32.totalorder %s164, %s166
      %p170 = scmp.eq.s32.totalorder %s20, 0
      %p171 = por %p169, %p170
      %p172 = scmp.ne.s32.totalorder %s164, %s166
      %p173 = scmp.eq.s32.totalorder %s25, 1
      %p174 = por %p172, %p173
      %p175 = scmp.ne.s32.totalorder %s166, %s167
      %p176 = scmp.eq.s32.totalorder %s25, 0
      %p177 = por %p175, %p176
      %p178 = scmp.ne.s32.totalorder %s166, %s167
      %p179 = scmp.eq.s32.totalorder %s26, 1
      %p180 = por %p178, %p179
      %p182 = scmp.ne.s32.totalorder %s167, %s181
      %p183 = scmp.eq.s32.totalorder %s26, 0
      %p184 = por %p182, %p183
      %s186 = sadd.s32 %s185, 1
      %p189 = scmp.eq.s32.totalorder %s20, 1
      %p190 = scmp.ne.s32.totalorder %s185, %s187
      %p191 = scmp.eq.s32.totalorder %s20, 0
      %p192 = por %p190, %p191
      %p193 = scmp.ne.s32.totalorder %s185, %s187
      %p194 = scmp.eq.s32.totalorder %s25, 1
      %p195 = por %p193, %p194
      %p196 = scmp.ne.s32.totalorder %s187, %s188
      %p197 = scmp.eq.s32.totalorder %s25, 0
      %p198 = por %p196, %p197
      %p199 = scmp.ne.s32.totalorder %s187, %s188
      %p200 = scmp.eq.s32.totalorder %s26, 1
      %p201 = por %p199, %p200
      %p203 = scmp.ne.s32.totalorder %s188, %s202
      %p204 = scmp.eq.s32.totalorder %s26, 0
      %p205 = por %p203, %p204
      %s207 = sadd.s32 %s206, 1
      %p210 = scmp.eq.s32.totalorder %s20, 1
      %p211 = scmp.ne.s32.totalorder %s206, %s208
      %p212 = scmp.eq.s32.totalorder %s20, 0
      %p213 = por %p211, %p212
      %p214 = scmp.ne.s32.totalorder %s206, %s208
      %p215 = scmp.eq.s32.totalorder %s25, 1
      %p216 = por %p214, %p215
      %p217 = scmp.ne.s32.totalorder %s208, %s209
      %p218 = scmp.eq.s32.totalorder %s25, 0
      %p219 = por %p217, %p218
      %p220 = scmp.ne.s32.totalorder %s208, %s209
      %p221 = scmp.eq.s32.totalorder %s26, 1
      %p222 = por %p220, %p221
      %p224 = scmp.ne.s32.totalorder %s209, %s223
      %p225 = scmp.eq.s32.totalorder %s26, 0
      %p226 = por %p224, %p225
      %s228 = sadd.s32 %s227, 1
      %p231 = scmp.eq.s32.totalorder %s20, 1
      %p232 = scmp.ne.s32.totalorder %s227, %s229
      %p233 = scmp.eq.s32.totalorder %s20, 0
      %p234 = por %p232, %p233
      %p235 = scmp.ne.s32.totalorder %s227, %s229
      %p236 = scmp.eq.s32.totalorder %s25, 1
      %p237 = por %p235, %p236
      %p238 = scmp.ne.s32.totalorder %s229, %s230
      %p239 = scmp.eq.s32.totalorder %s25, 0
      %p240 = por %p238, %p239
      %p241 = scmp.ne.s32.totalorder %s229, %s230
      %p242 = scmp.eq.s32.totalorder %s26, 1
      %p243 = por %p241, %p242
      %p245 = scmp.ne.s32.totalorder %s230, %s244
      %p246 = scmp.eq.s32.totalorder %s26, 0
      %p247 = por %p245, %p246
      %s249 = sadd.s32 %s248, 1
      %p252 = scmp.eq.s32.totalorder %s20, 1
      %p253 = scmp.ne.s32.totalorder %s248, %s250
      %p254 = scmp.eq.s32.totalorder %s20, 0
      %p255 = por %p253, %p254
      %p256 = scmp.ne.s32.totalorder %s248, %s250
      %p257 = scmp.eq.s32.totalorder %s25, 1
      %p258 = por %p256, %p257
      %p259 = scmp.ne.s32.totalorder %s250, %s251
      %p260 = scmp.eq.s32.totalorder %s25, 0
      %p261 = por %p259, %p260
      %p262 = scmp.ne.s32.totalorder %s250, %s251
      %p263 = scmp.eq.s32.totalorder %s26, 1
      %p264 = por %p262, %p263
      %p266 = scmp.ne.s32.totalorder %s251, %s265
      %p267 = scmp.eq.s32.totalorder %s26, 0
      %p268 = por %p266, %p267
      %s269 = ssub.s32 %s20, %s27
      %p270 = scmp.eq.s32.totalorder %s269, 0
      %s272 = sadd.s32 %s271, 1
      %s273 = scalar_select %p270, %s271, %s272
      %p276 = pneg %p270
      %p277 = scmp.eq.s32.totalorder %s20, 1
      %p278 = por %p276, %p277
      %p279 = scmp.ne.s32.totalorder %s271, %s274
      %p280 = scmp.eq.s32.totalorder %s20, 0
      %p281 = por %p279, %p280
      %p282 = scmp.ne.s32.totalorder %s271, %s274
      %p283 = scmp.eq.s32.totalorder %s25, 1
      %p284 = por %p282, %p283
      %p285 = scmp.ne.s32.totalorder %s274, %s275
      %p286 = scmp.eq.s32.totalorder %s25, 0
      %p287 = por %p285, %p286
      %p288 = scmp.ne.s32.totalorder %s274, %s275
      %p289 = scmp.eq.s32.totalorder %s26, 1
      %p290 = por %p288, %p289
      %p292 = scmp.ne.s32.totalorder %s275, %s291
      %p293 = scmp.eq.s32.totalorder %s26, 0
      %p294 = por %p292, %p293
      %p295 = scmp.le.s32.totalorder 1, %s20
      %p296 = scmp.lt.s32.totalorder %s20, 3
      %p297 = pnand %p295, %p296
      %p298 = pneg %p297
      // Predicated region
      $region9: #{resnet_block_2d.1} parent=5 // pred_check
        _
      $region10: #{resnet_block_2d.1} parent=5 // pred_check_branch
        %300 = sbr.rel (%p297) target = $region12
      $region11: #{resnet_block_2d.1} parent=5 // pred_region
        %s301 = ssub.s32 %s20, 1
        // Predicated region
        $region13: #{resnet_block_2d.1} parent=11 // pred_check
          %p302 = pneg %p67
        $region14: #{resnet_block_2d.1} parent=11 // pred_check_branch
          %304 = sbr.rel (%p302) target = $region16
        $region15: #{resnet_block_2d.1} parent=11 // pred_region
          _
        $region16: #{resnet_block_2d.1} parent=11 // pred_fallthru
          _
        // Predicated region
        $region17: #{resnet_block_2d.1} parent=11 // pred_check
          %p305 = pneg %p88
        $region18: #{resnet_block_2d.1} parent=11 // pred_check_branch
          %307 = sbr.rel (%p305) target = $region20
        $region19: #{resnet_block_2d.1} parent=11 // pred_region
          _
        $region20: #{resnet_block_2d.1} parent=11 // pred_fallthru
          _
        // Predicated region
        $region21: #{resnet_block_2d.1} parent=11 // pred_check
          %p308 = pneg %p109
        $region22: #{resnet_block_2d.1} parent=11 // pred_check_branch
          %310 = sbr.rel (%p308) target = $region24
        $region23: #{resnet_block_2d.1} parent=11 // pred_region
          _
        $region24: #{resnet_block_2d.1} parent=11 // pred_fallthru
          _
        // Predicated region
        $region25: #{resnet_block_2d.1} parent=11 // pred_check
          %p311 = pneg %p156
        $region26: #{resnet_block_2d.1} parent=11 // pred_check_branch
          %313 = sbr.rel (%p311) target = $region28
        $region27: #{resnet_block_2d.1} parent=11 // pred_region
          _
        $region28: #{resnet_block_2d.1} parent=11 // pred_fallthru
          _
        // Predicated region
        $region29: #{resnet_block_2d.1} parent=11 // pred_check
          %p314 = pneg %p177
        $region30: #{resnet_block_2d.1} parent=11 // pred_check_branch
          %316 = sbr.rel (%p314) target = $region32
        $region31: #{resnet_block_2d.1} parent=11 // pred_region
          _
        $region32: #{resnet_block_2d.1} parent=11 // pred_fallthru
          _
        // Predicated region
        $region33: #{resnet_block_2d.1} parent=11 // pred_check
          %p317 = pneg %p198
        $region34: #{resnet_block_2d.1} parent=11 // pred_check_branch
          %319 = sbr.rel (%p317) target = $region36
        $region35: #{resnet_block_2d.1} parent=11 // pred_region
          _
        $region36: #{resnet_block_2d.1} parent=11 // pred_fallthru
          _
        // Predicated region
        $region37: #{resnet_block_2d.1} parent=11 // pred_check
          %p320 = pneg %p219
        $region38: #{resnet_block_2d.1} parent=11 // pred_check_branch
          %322 = sbr.rel (%p320) target = $region40
        $region39: #{resnet_block_2d.1} parent=11 // pred_region
          _
        $region40: #{resnet_block_2d.1} parent=11 // pred_fallthru
          _
        // Predicated region
        $region41: #{resnet_block_2d.1} parent=11 // pred_check
          %p323 = pneg %p240
        $region42: #{resnet_block_2d.1} parent=11 // pred_check_branch
          %325 = sbr.rel (%p323) target = $region44
        $region43: #{resnet_block_2d.1} parent=11 // pred_region
          _
        $region44: #{resnet_block_2d.1} parent=11 // pred_fallthru
          _
        // Predicated region
        $region45: #{resnet_block_2d.1} parent=11 // pred_check
          %p326 = pneg %p261
        $region46: #{resnet_block_2d.1} parent=11 // pred_check_branch
          %328 = sbr.rel (%p326) target = $region48
        $region47: #{resnet_block_2d.1} parent=11 // pred_region
          _
        $region48: #{resnet_block_2d.1} parent=11 // pred_fallthru
          _
      $region12: #{resnet_block_2d.1} parent=5 // pred_fallthru
        _
      %p329 = scmp.lt.s32.totalorder %s20, 2
      // Predicated region
      $region49: #{resnet_block_2d.1} parent=5 // pred_check
        %p330 = pneg %p329
      $region50: #{resnet_block_2d.1} parent=5 // pred_check_branch
        %332 = sbr.rel (%p330) target = $region52
      $region51: #{resnet_block_2d.1} parent=5 // pred_region
        // Predicated region
        $region53: #{resnet_block_2d.1} parent=51 // pred_check
          %p333 = pneg %p40
        $region54: #{resnet_block_2d.1} parent=51 // pred_check_branch
          %335 = sbr.rel (%p333) target = $region56
        $region55: #{resnet_block_2d.1} parent=51 // pred_region
          %p336 = scmp.lt.s32.totalorder %s20, 1
          %s337 = scalar_select %p336, %s20, 1
          %s338 = smul.addr %s337, 32
          %s339 = smul.addr %s338, 8
          %s340 = scalar_lea.vmem %s0, %s339
        $region56: #{resnet_block_2d.1} parent=51 // pred_fallthru
          _
        // Predicated region
        $region57: #{resnet_block_2d.1} parent=51 // pred_check
          %p341 = pneg %p129
        $region58: #{resnet_block_2d.1} parent=51 // pred_check_branch
          %343 = sbr.rel (%p341) target = $region60
        $region59: #{resnet_block_2d.1} parent=51 // pred_region
          %p344 = scmp.lt.s32.totalorder %s20, 1
          %s345 = scalar_select %p344, %s20, 1
          %s346 = scalar_lea.vmem %s4, %s345
        $region60: #{resnet_block_2d.1} parent=51 // pred_fallthru
          _
      $region52: #{resnet_block_2d.1} parent=5 // pred_fallthru
        _
      %p347 = scmp.le.s32.totalorder 1, %s20
      %p348 = scmp.lt.s32.totalorder %s20, 3
      %p349 = pnand %p347, %p348
      %p350 = pneg %p349
      // Predicated region
      $region61: #{resnet_block_2d.1} parent=5 // pred_check
        _
      $region62: #{resnet_block_2d.1} parent=5 // pred_check_branch
        %352 = sbr.rel (%p349) target = $region64
      $region63: #{resnet_block_2d.1} parent=5 // pred_region
        %s353 = ssub.s32 %s20, 1
        %p354 = scmp.lt.s32.totalorder %s25, 1
        %s355 = scalar_select %p354, %s25, 1
        %s356 = smul.addr %s355, 32
        %s357 = smul.addr %s356, 8
        %s358 = scalar_lea.vmem %s0, %s357
        %p359 = pneg %p46
        %p360 = pneg %p43
        %p361 = pneg %p67
        %p362 = pneg %p64
        %p363 = pneg %p88
        %p364 = pneg %p85
        %p365 = pneg %p109
        %p366 = pneg %p106
        %p367 = scmp.lt.s32.totalorder %s25, 1
        %s368 = scalar_select %p367, %s25, 1
        %s369 = scalar_lea.vmem %s4, %s368
        %p370 = pneg %p135
        %p371 = pneg %p132
        %p372 = pneg %p156
        %p373 = pneg %p153
        %p374 = pneg %p177
        %p375 = pneg %p174
        %p376 = pneg %p198
        %p377 = pneg %p195
        %p378 = pneg %p219
        %p379 = pneg %p216
        %p380 = pneg %p240
        %p381 = pneg %p237
        %p382 = pneg %p261
        %p383 = pneg %p258
        %p384 = pneg %p287
        %p385 = pneg %p284
        %s386 = sand.u32 %s274, 1
        %s387 = scalar_lea.sflag [#allocation3], %s386
        %s388 = sand.u32 %s274, 1
        %s389 = smul.addr %s388, 256
        %s390 = scalar_lea.vmem [#allocation2], %s389
        %p391 = scmp.lt.s32.totalorder %s25, 1
        %s392 = scalar_select %p391, %s25, 1
        %s393 = smul.addr %s392, 32
        %s394 = smul.addr %s393, 8
        %s395 = scalar_lea.vmem %s0, %s394
        %p396 = scmp.lt.s32.totalorder %s25, 1
        %s397 = scalar_select %p396, %s25, 1
        %s398 = scalar_lea.vmem %s4, %s397
        %v400 = vld [vmem:[%s395] sm:$0xff]
        %v401 = vld [vmem:[%s395 + $0x8] sm:$0xff]
        %v402 = vld [vmem:[%s395 + $0x10] sm:$0xff]
        %v403 = vld [vmem:[%s395 + $0x18] sm:$0xff]
        %v404 = vld [vmem:[%s395 + $0x20] sm:$0xff]
        %v405 = vld [vmem:[%s395 + $0x28] sm:$0xff]
        %v406 = vld [vmem:[%s395 + $0x30] sm:$0xff]
        %v407 = vld [vmem:[%s395 + $0x38] sm:$0xff]
        %v408 = vld [vmem:[%s395 + $0x40] sm:$0xff]
        %v409 = vld [vmem:[%s395 + $0x48] sm:$0xff]
        %v410 = vld [vmem:[%s395 + $0x50] sm:$0xff]
        %v411 = vld [vmem:[%s395 + $0x58] sm:$0xff]
        %v412 = vld [vmem:[%s395 + $0x60] sm:$0xff]
        %v413 = vld [vmem:[%s395 + $0x68] sm:$0xff]
        %v414 = vld [vmem:[%s395 + $0x70] sm:$0xff]
        %v415 = vld [vmem:[%s395 + $0x78] sm:$0xff]
        %v416 = vld [vmem:[%s395 + $0x80] sm:$0xff]
        %v417 = vld [vmem:[%s395 + $0x88] sm:$0xff]
        %v418 = vld [vmem:[%s395 + $0x90] sm:$0xff]
        %v419 = vld [vmem:[%s395 + $0x98] sm:$0xff]
        %v420 = vld [vmem:[%s395 + $0xa0] sm:$0xff]
        %v421 = vld [vmem:[%s395 + $0xa8] sm:$0xff]
        %v422 = vld [vmem:[%s395 + $0xb0] sm:$0xff]
        %v423 = vld [vmem:[%s395 + $0xb8] sm:$0xff]
        %v424 = vld [vmem:[%s395 + $0xc0] sm:$0xff]
        %v425 = vld [vmem:[%s395 + $0xc8] sm:$0xff]
        %v426 = vld [vmem:[%s395 + $0xd0] sm:$0xff]
        %v427 = vld [vmem:[%s395 + $0xd8] sm:$0xff]
        %v428 = vld [vmem:[%s395 + $0xe0] sm:$0xff]
        %v429 = vld [vmem:[%s395 + $0xe8] sm:$0xff]
        %v430 = vld [vmem:[%s395 + $0xf0] sm:$0xff]
        %v431 = vld [vmem:[%s395 + $0xf8] sm:$0xff]
        %v432 = vld [vmem:[%s1] sm:$0x1]
        %v433 = vld [vmem:[%s2] sm:$0x1]
        %v434 = vlaneseq
        %v435 = vshrl.u32 %v434, 7
        %v436 = vadd.s32 %v435, 8
        %v437 = vadd.s32 %v435, 16
        %v438 = vadd.s32 %v435, 24
        %v439 = vlaneseq
        %v440 = vand.u32 %v439, 127
        %vm441 = vcmp.ge.s32.totalorder %v435, %v440
        %vm442 = vcmp.ge.s32.totalorder %v436, %v440
        %vm443 = vcmp.ge.s32.totalorder %v437, %v440
        %vm444 = vcmp.ge.s32.totalorder %v438, %v440
        %v445 = vadd.s32 %v440, 1
        %vm446 = vcmp.lt.s32.totalorder %v435, %v445
        %vm447 = vcmp.lt.s32.totalorder %v436, %v445
        %vm448 = vcmp.lt.s32.totalorder %v437, %v445
        %vm449 = vcmp.lt.s32.totalorder %v438, %v445
        %vm450 = vmand %vm441, %vm446
        %vm451 = vmand %vm442, %vm447
        %vm452 = vmand %vm443, %vm448
        %vm453 = vmand %vm444, %vm449
        %v454 = vsel %vm450, 1, 0
        %v455 = vsel %vm451, 1, 0
        %v456 = vsel %vm452, 1, 0
        %v457 = vsel %vm453, 1, 0
        %v458 = vcvt.s32.f32 %v454
        %v459 = vcvt.s32.f32 %v455
        %v460 = vcvt.s32.f32 %v456
        %v461 = vcvt.s32.f32 %v457
        %vm462 = vcmp.ge.s32.totalorder %v440, %v435
        %vm463 = vcmp.ge.s32.totalorder %v440, %v436
        %vm464 = vcmp.ge.s32.totalorder %v440, %v437
        %vm465 = vcmp.ge.s32.totalorder %v440, %v438
        %v466 = vadd.s32 %v435, 1
        %v467 = vadd.s32 %v436, 1
        %v468 = vadd.s32 %v437, 1
        %v469 = vadd.s32 %v438, 1
        %vm470 = vcmp.lt.s32.totalorder %v440, %v466
        %vm471 = vcmp.lt.s32.totalorder %v440, %v467
        %vm472 = vcmp.lt.s32.totalorder %v440, %v468
        %vm473 = vcmp.lt.s32.totalorder %v440, %v469
        %vm474 = vmand %vm462, %vm470
        %vm475 = vmand %vm463, %vm471
        %vm476 = vmand %vm464, %vm472
        %vm477 = vmand %vm465, %vm473
        %v478 = vsel %vm474, 1, 0
        %v479 = vsel %vm475, 1, 0
        %v480 = vsel %vm476, 1, 0
        %v481 = vsel %vm477, 1, 0
        %v482 = vcvt.s32.f32 %v478
        %v483 = vcvt.s32.f32 %v479
        %v484 = vcvt.s32.f32 %v480
        %v485 = vcvt.s32.f32 %v481
        %vm486 = vcmask 261120
        %v487 = vsel %vm486, %v400, 0.0
        %v488 = vsel %vm486, %v401, 0.0
        %v489 = vadd.f32 %v487, %v488
        %v490 = vsel %vm486, %v402, 0.0
        %v491 = vadd.f32 %v489, %v490
        %v492 = vsel %vm486, %v403, 0.0
        %v493 = vadd.f32 %v491, %v492
        %v494 = vsel %vm486, %v404, 0.0
        %v495 = vadd.f32 %v493, %v494
        %v496 = vsel %vm486, %v405, 0.0
        %v497 = vadd.f32 %v495, %v496
        %v498 = vsel %vm486, %v406, 0.0
        %v499 = vadd.f32 %v497, %v498
        %v500 = vsel %vm486, %v407, 0.0
        %v501 = vadd.f32 %v499, %v500
        %v502 = vsel %vm486, %v408, 0.0
        %v503 = vadd.f32 %v501, %v502
        %v504 = vsel %vm486, %v409, 0.0
        %v505 = vadd.f32 %v503, %v504
        %v506 = vsel %vm486, %v410, 0.0
        %v507 = vadd.f32 %v505, %v506
        %v508 = vsel %vm486, %v411, 0.0
        %v509 = vadd.f32 %v507, %v508
        %v510 = vsel %vm486, %v412, 0.0
        %v511 = vadd.f32 %v509, %v510
        %v512 = vsel %vm486, %v413, 0.0
        %v513 = vadd.f32 %v511, %v512
        %v514 = vsel %vm486, %v414, 0.0
        %v515 = vadd.f32 %v513, %v514
        %v516 = vsel %vm486, %v415, 0.0
        %v517 = vadd.f32 %v515, %v516
        %v518 = vsel %vm486, %v416, 0.0
        %v519 = vadd.f32 %v517, %v518
        %v520 = vsel %vm486, %v417, 0.0
        %v521 = vadd.f32 %v519, %v520
        %v522 = vsel %vm486, %v418, 0.0
        %v523 = vadd.f32 %v521, %v522
        %v524 = vsel %vm486, %v419, 0.0
        %v525 = vadd.f32 %v523, %v524
        %v526 = vsel %vm486, %v420, 0.0
        %v527 = vadd.f32 %v525, %v526
        %v528 = vsel %vm486, %v421, 0.0
        %v529 = vadd.f32 %v527, %v528
        %v530 = vsel %vm486, %v422, 0.0
        %v531 = vadd.f32 %v529, %v530
        %v532 = vsel %vm486, %v423, 0.0
        %v533 = vadd.f32 %v531, %v532
        %v534 = vsel %vm486, %v424, 0.0
        %v535 = vadd.f32 %v533, %v534
        %v536 = vsel %vm486, %v425, 0.0
        %v537 = vadd.f32 %v535, %v536
        %v538 = vsel %vm486, %v426, 0.0
        %v539 = vadd.f32 %v537, %v538
        %v540 = vsel %vm486, %v427, 0.0
        %v541 = vadd.f32 %v539, %v540
        %v542 = vsel %vm486, %v428, 0.0
        %v543 = vadd.f32 %v541, %v542
        %v544 = vsel %vm486, %v429, 0.0
        %v545 = vadd.f32 %v543, %v544
        %v546 = vsel %vm486, %v430, 0.0
        %v547 = vadd.f32 %v545, %v546
        %v548 = vsel %vm486, %v431, 0.0
        %v549 = vadd.f32 %v547, %v548
        %v550 = vrot.slane %v549, 4
        %v551 = vadd.f32 %v549, %v550
        %v552 = vrot.slane %v551, 2
        %v553 = vadd.f32 %v551, %v552
        %v554 = vrot.slane %v553, 1
        %v555 = vadd.f32 %v553, %v554
        %v557 = vsel %vm486, %v555, 0
        %559 = vmatprep.subr.mxu0 0.0
        %560 = vmatpush1.msra.mxu0 0.0
        %561 = vmatprep.subr.mxu0 0.0
        %562 = vmatpush1.msra.mxu0 0.0
        %563 = vmatprep.subr.mxu0 0.0
        %564 = vmatpush1.msra.mxu0 0.0
        %565 = vmatprep.subr.mxu0 0.0
        %566 = vmatpush1.msra.mxu0 0.0
        %567 = vmatprep.subr.mxu0 0.0
        %568 = vmatpush1.msra.mxu0 0.0
        %569 = vmatprep.subr.mxu0 0.0
        %570 = vmatpush1.msra.mxu0 0.0
        %571 = vmatprep.subr.mxu0 0.0
        %572 = vmatpush1.msra.mxu0 0.0
        %573 = vmatprep.subr.mxu0 0.0
        %574 = vmatpush1.msra.mxu0 0.0
        %575 = vmatprep.subr.mxu0 0.0
        %576 = vmatpush1.msra.mxu0 0.0
        %577 = vmatprep.subr.mxu0 0.0
        %578 = vmatpush1.msra.mxu0 0.0
        %579 = vmatprep.subr.mxu0 0.0
        %580 = vmatpush1.msra.mxu0 0.0
        %581 = vmatprep.subr.mxu0 0.0
        %582 = vmatpush1.msra.mxu0 0.0
        %583 = vmatprep.subr.mxu0 0.0
        %584 = vmatpush1.msra.mxu0 %v461
        %585 = vmatprep.subr.mxu0 0.0
        %586 = vmatpush1.msra.mxu0 %v460
        %587 = vmatprep.subr.mxu0 0.0
        %588 = vmatpush1.msra.mxu0 %v459
        %589 = vmatprep.subr.mxu0 0.0
        %590 = vmatpush1.msra.mxu0 %v458
        %591 = vmatprep.subr.mxu0 0.0
        %592 = vmatpush2.msra.mxu0 0.0
        %593 = vmatprep.subr.mxu0 0.0
        %594 = vmatpush2.msra.mxu0 0.0
        %595 = vmatprep.subr.mxu0 0.0
        %596 = vmatpush2.msra.mxu0 0.0
        %597 = vmatprep.subr.mxu0 0.0
        %598 = vmatpush2.msra.mxu0 0.0
        %599 = vmatprep.subr.mxu0 0.0
        %600 = vmatpush2.msra.mxu0 0.0
        %601 = vmatprep.subr.mxu0 0.0
        %602 = vmatpush2.msra.mxu0 0.0
        %603 = vmatprep.subr.mxu0 0.0
        %604 = vmatpush2.msra.mxu0 0.0
        %605 = vmatprep.subr.mxu0 0.0
        %606 = vmatpush2.msra.mxu0 0.0
        %607 = vmatprep.subr.mxu0 0.0
        %608 = vmatpush2.msra.mxu0 0.0
        %609 = vmatprep.subr.mxu0 0.0
        %610 = vmatpush2.msra.mxu0 0.0
        %611 = vmatprep.subr.mxu0 0.0
        %612 = vmatpush2.msra.mxu0 0.0
        %613 = vmatprep.subr.mxu0 0.0
        %614 = vmatpush2.msra.mxu0 0.0
        %615 = vmatprep.subr.mxu0 0.0
        %616 = vmatpush2.msra.mxu0 0.0
        %617 = vmatprep.subr.mxu0 0.0
        %618 = vmatpush2.msra.mxu0 0.0
        %619 = vmatprep.subr.mxu0 0.0
        %620 = vmatpush2.msra.mxu0 0.0
        %621 = vmatprep.subr.mxu0 0.0
        %622 = vmatpush2.msra.mxu0 0.0
        %623 = vmatprep.mubr.f32.mxu0 0.0
        %624 = vmatmul.mubr.f32.gmra.mxu0 %v557
        %v625 = vpop.f32.mrf.mxu0
        %v626 = vadd.f32 0.0, %v625
        %v627 = vpop.f32.mrf.mxu0
        %628 = vdwg.mxu0
        %v629 = vmul.f32 %v626, 0.00390625
        %v631 = vsel %vm486, %v629, 0
        %633 = vmatprep.subr.mxu0 0.0
        %634 = vmatpush1.msra.mxu0 0.0
        %635 = vmatprep.subr.mxu0 0.0
        %636 = vmatpush1.msra.mxu0 0.0
        %637 = vmatprep.subr.mxu0 0.0
        %638 = vmatpush1.msra.mxu0 0.0
        %639 = vmatprep.subr.mxu0 0.0
        %640 = vmatpush1.msra.mxu0 0.0
        %641 = vmatprep.subr.mxu0 0.0
        %642 = vmatpush1.msra.mxu0 0.0
        %643 = vmatprep.subr.mxu0 0.0
        %644 = vmatpush1.msra.mxu0 0.0
        %645 = vmatprep.subr.mxu0 0.0
        %646 = vmatpush1.msra.mxu0 0.0
        %647 = vmatprep.subr.mxu0 0.0
        %648 = vmatpush1.msra.mxu0 0.0
        %649 = vmatprep.subr.mxu0 0.0
        %650 = vmatpush1.msra.mxu0 0.0
        %651 = vmatprep.subr.mxu0 0.0
        %652 = vmatpush1.msra.mxu0 0.0
        %653 = vmatprep.subr.mxu0 0.0
        %654 = vmatpush1.msra.mxu0 0.0
        %655 = vmatprep.subr.mxu0 0.0
        %656 = vmatpush1.msra.mxu0 0.0
        %657 = vmatprep.subr.mxu0 0.0
        %658 = vmatpush1.msra.mxu0 %v485
        %659 = vmatprep.subr.mxu0 0.0
        %660 = vmatpush1.msra.mxu0 %v484
        %661 = vmatprep.subr.mxu0 0.0
        %662 = vmatpush1.msra.mxu0 %v483
        %663 = vmatprep.subr.mxu0 0.0
        %664 = vmatpush1.msra.mxu0 %v482
        %665 = vmatprep.subr.mxu0 0.0
        %666 = vmatpush2.msra.mxu0 0.0
        %667 = vmatprep.subr.mxu0 0.0
        %668 = vmatpush2.msra.mxu0 0.0
        %669 = vmatprep.subr.mxu0 0.0
        %670 = vmatpush2.msra.mxu0 0.0
        %671 = vmatprep.subr.mxu0 0.0
        %672 = vmatpush2.msra.mxu0 0.0
        %673 = vmatprep.subr.mxu0 0.0
        %674 = vmatpush2.msra.mxu0 0.0
        %675 = vmatprep.subr.mxu0 0.0
        %676 = vmatpush2.msra.mxu0 0.0
        %677 = vmatprep.subr.mxu0 0.0
        %678 = vmatpush2.msra.mxu0 0.0
        %679 = vmatprep.subr.mxu0 0.0
        %680 = vmatpush2.msra.mxu0 0.0
        %681 = vmatprep.subr.mxu0 0.0
        %682 = vmatpush2.msra.mxu0 0.0
        %683 = vmatprep.subr.mxu0 0.0
        %684 = vmatpush2.msra.mxu0 0.0
        %685 = vmatprep.subr.mxu0 0.0
        %686 = vmatpush2.msra.mxu0 0.0
        %687 = vmatprep.subr.mxu0 0.0
        %688 = vmatpush2.msra.mxu0 0.0
        %689 = vmatprep.subr.mxu0 0.0
        %690 = vmatpush2.msra.mxu0 0.0
        %691 = vmatprep.subr.mxu0 0.0
        %692 = vmatpush2.msra.mxu0 0.0
        %693 = vmatprep.subr.mxu0 0.0
        %694 = vmatpush2.msra.mxu0 0.0
        %695 = vmatprep.subr.mxu0 0.0
        %696 = vmatpush2.msra.mxu0 0.0
        %697 = vmatprep.mubr.f32.mxu0 0.0
        %698 = vmatmul.mubr.f32.gmra.mxu0 %v631
        %v699 = vpop.f32.mrf.mxu0
        %v700 = vadd.f32 0.0, %v699
        %v701 = vpop.f32.mrf.mxu0
        %702 = vdwg.mxu0
        %v703 = vlaneseq
        %v704 = vshrl.u32 %v703, 7
        %v705 = vsub.s32 0, %v704
        %v706 = vrot.slane %v700, %v705
        %v707 = vsub.f32 %v400, %v706
        %v708 = vsub.f32 %v401, %v706
        %v709 = vsub.f32 %v402, %v706
        %v710 = vsub.f32 %v403, %v706
        %v711 = vsub.f32 %v404, %v706
        %v712 = vsub.f32 %v405, %v706
        %v713 = vsub.f32 %v406, %v706
        %v714 = vsub.f32 %v407, %v706
        %v715 = vsub.f32 %v408, %v706
        %v716 = vsub.f32 %v409, %v706
        %v717 = vsub.f32 %v410, %v706
        %v718 = vsub.f32 %v411, %v706
        %v719 = vsub.f32 %v412, %v706
        %v720 = vsub.f32 %v413, %v706
        %v721 = vsub.f32 %v414, %v706
        %v722 = vsub.f32 %v415, %v706
        %v723 = vsub.f32 %v416, %v706
        %v724 = vsub.f32 %v417, %v706
        %v725 = vsub.f32 %v418, %v706
        %v726 = vsub.f32 %v419, %v706
        %v727 = vsub.f32 %v420, %v706
        %v728 = vsub.f32 %v421, %v706
        %v729 = vsub.f32 %v422, %v706
        %v730 = vsub.f32 %v423, %v706
        %v731 = vsub.f32 %v424, %v706
        %v732 = vsub.f32 %v425, %v706
        %v733 = vsub.f32 %v426, %v706
        %v734 = vsub.f32 %v427, %v706
        %v735 = vsub.f32 %v428, %v706
        %v736 = vsub.f32 %v429, %v706
        %v737 = vsub.f32 %v430, %v706
        %v738 = vsub.f32 %v431, %v706
        %v739 = vmul.f32 %v707, %v707
        %v740 = vmul.f32 %v708, %v708
        %v741 = vmul.f32 %v709, %v709
        %v742 = vmul.f32 %v710, %v710
        %v743 = vmul.f32 %v711, %v711
        %v744 = vmul.f32 %v712, %v712
        %v745 = vmul.f32 %v713, %v713
        %v746 = vmul.f32 %v714, %v714
        %v747 = vmul.f32 %v715, %v715
        %v748 = vmul.f32 %v716, %v716
        %v749 = vmul.f32 %v717, %v717
        %v750 = vmul.f32 %v718, %v718
        %v751 = vmul.f32 %v719, %v719
        %v752 = vmul.f32 %v720, %v720
        %v753 = vmul.f32 %v721, %v721
        %v754 = vmul.f32 %v722, %v722
        %v755 = vmul.f32 %v723, %v723
        %v756 = vmul.f32 %v724, %v724
        %v757 = vmul.f32 %v725, %v725
        %v758 = vmul.f32 %v726, %v726
        %v759 = vmul.f32 %v727, %v727
        %v760 = vmul.f32 %v728, %v728
        %v761 = vmul.f32 %v729, %v729
        %v762 = vmul.f32 %v730, %v730
        %v763 = vmul.f32 %v731, %v731
        %v764 = vmul.f32 %v732, %v732
        %v765 = vmul.f32 %v733, %v733
        %v766 = vmul.f32 %v734, %v734
        %v767 = vmul.f32 %v735, %v735
        %v768 = vmul.f32 %v736, %v736
        %v769 = vmul.f32 %v737, %v737
        %v770 = vmul.f32 %v738, %v738
        %v771 = vsel %vm486, %v739, 0.0
        %v772 = vsel %vm486, %v740, 0.0
        %v773 = vadd.f32 %v771, %v772
        %v774 = vsel %vm486, %v741, 0.0
        %v775 = vadd.f32 %v773, %v774
        %v776 = vsel %vm486, %v742, 0.0
        %v777 = vadd.f32 %v775, %v776
        %v778 = vsel %vm486, %v743, 0.0
        %v779 = vadd.f32 %v777, %v778
        %v780 = vsel %vm486, %v744, 0.0
        %v781 = vadd.f32 %v779, %v780
        %v782 = vsel %vm486, %v745, 0.0
        %v783 = vadd.f32 %v781, %v782
        %v784 = vsel %vm486, %v746, 0.0
        %v785 = vadd.f32 %v783, %v784
        %v786 = vsel %vm486, %v747, 0.0
        %v787 = vadd.f32 %v785, %v786
        %v788 = vsel %vm486, %v748, 0.0
        %v789 = vadd.f32 %v787, %v788
        %v790 = vsel %vm486, %v749, 0.0
        %v791 = vadd.f32 %v789, %v790
        %v792 = vsel %vm486, %v750, 0.0
        %v793 = vadd.f32 %v791, %v792
        %v794 = vsel %vm486, %v751, 0.0
        %v795 = vadd.f32 %v793, %v794
        %v796 = vsel %vm486, %v752, 0.0
        %v797 = vadd.f32 %v795, %v796
        %v798 = vsel %vm486, %v753, 0.0
        %v799 = vadd.f32 %v797, %v798
        %v800 = vsel %vm486, %v754, 0.0
        %v801 = vadd.f32 %v799, %v800
        %v802 = vsel %vm486, %v755, 0.0
        %v803 = vadd.f32 %v801, %v802
        %v804 = vsel %vm486, %v756, 0.0
        %v805 = vadd.f32 %v803, %v804
        %v806 = vsel %vm486, %v757, 0.0
        %v807 = vadd.f32 %v805, %v806
        %v808 = vsel %vm486, %v758, 0.0
        %v809 = vadd.f32 %v807, %v808
        %v810 = vsel %vm486, %v759, 0.0
        %v811 = vadd.f32 %v809, %v810
        %v812 = vsel %vm486, %v760, 0.0
        %v813 = vadd.f32 %v811, %v812
        %v814 = vsel %vm486, %v761, 0.0
        %v815 = vadd.f32 %v813, %v814
        %v816 = vsel %vm486, %v762, 0.0
        %v817 = vadd.f32 %v815, %v816
        %v818 = vsel %vm486, %v763, 0.0
        %v819 = vadd.f32 %v817, %v818
        %v820 = vsel %vm486, %v764, 0.0
        %v821 = vadd.f32 %v819, %v820
        %v822 = vsel %vm486, %v765, 0.0
        %v823 = vadd.f32 %v821, %v822
        %v824 = vsel %vm486, %v766, 0.0
        %v825 = vadd.f32 %v823, %v824
        %v826 = vsel %vm486, %v767, 0.0
        %v827 = vadd.f32 %v825, %v826
        %v828 = vsel %vm486, %v768, 0.0
        %v829 = vadd.f32 %v827, %v828
        %v830 = vsel %vm486, %v769, 0.0
        %v831 = vadd.f32 %v829, %v830
        %v832 = vsel %vm486, %v770, 0.0
        %v833 = vadd.f32 %v831, %v832
        %v834 = vrot.slane %v833, 4
        %v835 = vadd.f32 %v833, %v834
        %v836 = vrot.slane %v835, 2
        %v837 = vadd.f32 %v835, %v836
        %v838 = vrot.slane %v837, 1
        %v839 = vadd.f32 %v837, %v838
        %v841 = vsel %vm486, %v839, 0
        %843 = vmatprep.subr.mxu0 0.0
        %844 = vmatpush1.msra.mxu0 0.0
        %845 = vmatprep.subr.mxu0 0.0
        %846 = vmatpush1.msra.mxu0 0.0
        %847 = vmatprep.subr.mxu0 0.0
        %848 = vmatpush1.msra.mxu0 0.0
        %849 = vmatprep.subr.mxu0 0.0
        %850 = vmatpush1.msra.mxu0 0.0
        %851 = vmatprep.subr.mxu0 0.0
        %852 = vmatpush1.msra.mxu0 0.0
        %853 = vmatprep.subr.mxu0 0.0
        %854 = vmatpush1.msra.mxu0 0.0
        %855 = vmatprep.subr.mxu0 0.0
        %856 = vmatpush1.msra.mxu0 0.0
        %857 = vmatprep.subr.mxu0 0.0
        %858 = vmatpush1.msra.mxu0 0.0
        %859 = vmatprep.subr.mxu0 0.0
        %860 = vmatpush1.msra.mxu0 0.0
        %861 = vmatprep.subr.mxu0 0.0
        %862 = vmatpush1.msra.mxu0 0.0
        %863 = vmatprep.subr.mxu0 0.0
        %864 = vmatpush1.msra.mxu0 0.0
        %865 = vmatprep.subr.mxu0 0.0
        %866 = vmatpush1.msra.mxu0 0.0
        %867 = vmatprep.subr.mxu0 0.0
        %868 = vmatpush1.msra.mxu0 %v461
        %869 = vmatprep.subr.mxu0 0.0
        %870 = vmatpush1.msra.mxu0 %v460
        %871 = vmatprep.subr.mxu0 0.0
        %872 = vmatpush1.msra.mxu0 %v459
        %873 = vmatprep.subr.mxu0 0.0
        %874 = vmatpush1.msra.mxu0 %v458
        %875 = vmatprep.subr.mxu0 0.0
        %876 = vmatpush2.msra.mxu0 0.0
        %877 = vmatprep.subr.mxu0 0.0
        %878 = vmatpush2.msra.mxu0 0.0
        %879 = vmatprep.subr.mxu0 0.0
        %880 = vmatpush2.msra.mxu0 0.0
        %881 = vmatprep.subr.mxu0 0.0
        %882 = vmatpush2.msra.mxu0 0.0
        %883 = vmatprep.subr.mxu0 0.0
        %884 = vmatpush2.msra.mxu0 0.0
        %885 = vmatprep.subr.mxu0 0.0
        %886 = vmatpush2.msra.mxu0 0.0
        %887 = vmatprep.subr.mxu0 0.0
        %888 = vmatpush2.msra.mxu0 0.0
        %889 = vmatprep.subr.mxu0 0.0
        %890 = vmatpush2.msra.mxu0 0.0
        %891 = vmatprep.subr.mxu0 0.0
        %892 = vmatpush2.msra.mxu0 0.0
        %893 = vmatprep.subr.mxu0 0.0
        %894 = vmatpush2.msra.mxu0 0.0
        %895 = vmatprep.subr.mxu0 0.0
        %896 = vmatpush2.msra.mxu0 0.0
        %897 = vmatprep.subr.mxu0 0.0
        %898 = vmatpush2.msra.mxu0 0.0
        %899 = vmatprep.subr.mxu0 0.0
        %900 = vmatpush2.msra.mxu0 0.0
        %901 = vmatprep.subr.mxu0 0.0
        %902 = vmatpush2.msra.mxu0 0.0
        %903 = vmatprep.subr.mxu0 0.0
        %904 = vmatpush2.msra.mxu0 0.0
        %905 = vmatprep.subr.mxu0 0.0
        %906 = vmatpush2.msra.mxu0 0.0
        %907 = vmatprep.mubr.f32.mxu0 0.0
        %908 = vmatmul.mubr.f32.gmra.mxu0 %v841
        %v909 = vpop.f32.mrf.mxu0
        %v910 = vadd.f32 0.0, %v909
        %v911 = vpop.f32.mrf.mxu0
        %912 = vdwg.mxu0
        %v913 = vmul.f32 %v910, 0.00390625
        %v915 = vsel %vm486, %v913, 0
        %917 = vmatprep.subr.mxu0 0.0
        %918 = vmatpush1.msra.mxu0 0.0
        %919 = vmatprep.subr.mxu0 0.0
        %920 = vmatpush1.msra.mxu0 0.0
        %921 = vmatprep.subr.mxu0 0.0
        %922 = vmatpush1.msra.mxu0 0.0
        %923 = vmatprep.subr.mxu0 0.0
        %924 = vmatpush1.msra.mxu0 0.0
        %925 = vmatprep.subr.mxu0 0.0
        %926 = vmatpush1.msra.mxu0 0.0
        %927 = vmatprep.subr.mxu0 0.0
        %928 = vmatpush1.msra.mxu0 0.0
        %929 = vmatprep.subr.mxu0 0.0
        %930 = vmatpush1.msra.mxu0 0.0
        %931 = vmatprep.subr.mxu0 0.0
        %932 = vmatpush1.msra.mxu0 0.0
        %933 = vmatprep.subr.mxu0 0.0
        %934 = vmatpush1.msra.mxu0 0.0
        %935 = vmatprep.subr.mxu0 0.0
        %936 = vmatpush1.msra.mxu0 0.0
        %937 = vmatprep.subr.mxu0 0.0
        %938 = vmatpush1.msra.mxu0 0.0
        %939 = vmatprep.subr.mxu0 0.0
        %940 = vmatpush1.msra.mxu0 0.0
        %941 = vmatprep.subr.mxu0 0.0
        %942 = vmatpush1.msra.mxu0 %v485
        %943 = vmatprep.subr.mxu0 0.0
        %944 = vmatpush1.msra.mxu0 %v484
        %945 = vmatprep.subr.mxu0 0.0
        %946 = vmatpush1.msra.mxu0 %v483
        %947 = vmatprep.subr.mxu0 0.0
        %948 = vmatpush1.msra.mxu0 %v482
        %949 = vmatprep.subr.mxu0 0.0
        %950 = vmatpush2.msra.mxu0 0.0
        %951 = vmatprep.subr.mxu0 0.0
        %952 = vmatpush2.msra.mxu0 0.0
        %953 = vmatprep.subr.mxu0 0.0
        %954 = vmatpush2.msra.mxu0 0.0
        %955 = vmatprep.subr.mxu0 0.0
        %956 = vmatpush2.msra.mxu0 0.0
        %957 = vmatprep.subr.mxu0 0.0
        %958 = vmatpush2.msra.mxu0 0.0
        %959 = vmatprep.subr.mxu0 0.0
        %960 = vmatpush2.msra.mxu0 0.0
        %961 = vmatprep.subr.mxu0 0.0
        %962 = vmatpush2.msra.mxu0 0.0
        %963 = vmatprep.subr.mxu0 0.0
        %964 = vmatpush2.msra.mxu0 0.0
        %965 = vmatprep.subr.mxu0 0.0
        %966 = vmatpush2.msra.mxu0 0.0
        %967 = vmatprep.subr.mxu0 0.0
        %968 = vmatpush2.msra.mxu0 0.0
        %969 = vmatprep.subr.mxu0 0.0
        %970 = vmatpush2.msra.mxu0 0.0
        %971 = vmatprep.subr.mxu0 0.0
        %972 = vmatpush2.msra.mxu0 0.0
        %973 = vmatprep.subr.mxu0 0.0
        %974 = vmatpush2.msra.mxu0 0.0
        %975 = vmatprep.subr.mxu0 0.0
        %976 = vmatpush2.msra.mxu0 0.0
        %977 = vmatprep.subr.mxu0 0.0
        %978 = vmatpush2.msra.mxu0 0.0
        %979 = vmatprep.subr.mxu0 0.0
        %980 = vmatpush2.msra.mxu0 0.0
        %981 = vmatprep.mubr.f32.mxu0 0.0
        %982 = vmatmul.mubr.f32.gmra.mxu0 %v915
        %v983 = vpop.f32.mrf.mxu0
        %v984 = vadd.f32 1e-05, %v983
        %v985 = vpop.f32.mrf.mxu0
        %986 = vdwg.mxu0
        %v987 = vrsqrt.pop %v984
        %v988 = vlaneseq
        %v989 = vshrl.u32 %v988, 7
        %v990 = vsub.s32 0, %v989
        %v991 = vrot.slane %v987, %v990
        %v992 = vmul.f32 %v707, %v991
        %v993 = vmul.f32 %v708, %v991
        %v994 = vmul.f32 %v709, %v991
        %v995 = vmul.f32 %v710, %v991
        %v996 = vmul.f32 %v711, %v991
        %v997 = vmul.f32 %v712, %v991
        %v998 = vmul.f32 %v713, %v991
        %v999 = vmul.f32 %v714, %v991
        %v1000 = vmul.f32 %v715, %v991
        %v1001 = vmul.f32 %v716, %v991
        %v1002 = vmul.f32 %v717, %v991
        %v1003 = vmul.f32 %v718, %v991
        %v1004 = vmul.f32 %v719, %v991
        %v1005 = vmul.f32 %v720, %v991
        %v1006 = vmul.f32 %v721, %v991
        %v1007 = vmul.f32 %v722, %v991
        %v1008 = vmul.f32 %v723, %v991
        %v1009 = vmul.f32 %v724, %v991
        %v1010 = vmul.f32 %v725, %v991
        %v1011 = vmul.f32 %v726, %v991
        %v1012 = vmul.f32 %v727, %v991
        %v1013 = vmul.f32 %v728, %v991
        %v1014 = vmul.f32 %v729, %v991
        %v1015 = vmul.f32 %v730, %v991
        %v1016 = vmul.f32 %v731, %v991
        %v1017 = vmul.f32 %v732, %v991
        %v1018 = vmul.f32 %v733, %v991
        %v1019 = vmul.f32 %v734, %v991
        %v1020 = vmul.f32 %v735, %v991
        %v1021 = vmul.f32 %v736, %v991
        %v1022 = vmul.f32 %v737, %v991
        %v1023 = vmul.f32 %v738, %v991
        %v1025 = vlaneseq
        %v1026 = vshrl.u32 %v1025, 7
        %v1027 = vsub.s32 0, %v1026
        %v1028 = vrot.slane %v432, %v1027
        %v1030 = vmul.f32 %v992, %v1028
        %v1031 = vmul.f32 %v993, %v1028
        %v1032 = vmul.f32 %v994, %v1028
        %v1033 = vmul.f32 %v995, %v1028
        %v1034 = vmul.f32 %v996, %v1028
        %v1035 = vmul.f32 %v997, %v1028
        %v1036 = vmul.f32 %v998, %v1028
        %v1037 = vmul.f32 %v999, %v1028
        %v1038 = vmul.f32 %v1000, %v1028
        %v1039 = vmul.f32 %v1001, %v1028
        %v1040 = vmul.f32 %v1002, %v1028
        %v1041 = vmul.f32 %v1003, %v1028
        %v1042 = vmul.f32 %v1004, %v1028
        %v1043 = vmul.f32 %v1005, %v1028
        %v1044 = vmul.f32 %v1006, %v1028
        %v1045 = vmul.f32 %v1007, %v1028
        %v1046 = vmul.f32 %v1008, %v1028
        %v1047 = vmul.f32 %v1009, %v1028
        %v1048 = vmul.f32 %v1010, %v1028
        %v1049 = vmul.f32 %v1011, %v1028
        %v1050 = vmul.f32 %v1012, %v1028
        %v1051 = vmul.f32 %v1013, %v1028
        %v1052 = vmul.f32 %v1014, %v1028
        %v1053 = vmul.f32 %v1015, %v1028
        %v1054 = vmul.f32 %v1016, %v1028
        %v1055 = vmul.f32 %v1017, %v1028
        %v1056 = vmul.f32 %v1018, %v1028
        %v1057 = vmul.f32 %v1019, %v1028
        %v1058 = vmul.f32 %v1020, %v1028
        %v1059 = vmul.f32 %v1021, %v1028
        %v1060 = vmul.f32 %v1022, %v1028
        %v1061 = vmul.f32 %v1023, %v1028
        %v1063 = vlaneseq
        %v1064 = vshrl.u32 %v1063, 7
        %v1065 = vsub.s32 0, %v1064
        %v1066 = vrot.slane %v433, %v1065
        %v1068 = vadd.f32 %v1030, %v1066
        %v1069 = vadd.f32 %v1031, %v1066
        %v1070 = vadd.f32 %v1032, %v1066
        %v1071 = vadd.f32 %v1033, %v1066
        %v1072 = vadd.f32 %v1034, %v1066
        %v1073 = vadd.f32 %v1035, %v1066
        %v1074 = vadd.f32 %v1036, %v1066
        %v1075 = vadd.f32 %v1037, %v1066
        %v1076 = vadd.f32 %v1038, %v1066
        %v1077 = vadd.f32 %v1039, %v1066
        %v1078 = vadd.f32 %v1040, %v1066
        %v1079 = vadd.f32 %v1041, %v1066
        %v1080 = vadd.f32 %v1042, %v1066
        %v1081 = vadd.f32 %v1043, %v1066
        %v1082 = vadd.f32 %v1044, %v1066
        %v1083 = vadd.f32 %v1045, %v1066
        %v1084 = vadd.f32 %v1046, %v1066
        %v1085 = vadd.f32 %v1047, %v1066
        %v1086 = vadd.f32 %v1048, %v1066
        %v1087 = vadd.f32 %v1049, %v1066
        %v1088 = vadd.f32 %v1050, %v1066
        %v1089 = vadd.f32 %v1051, %v1066
        %v1090 = vadd.f32 %v1052, %v1066
        %v1091 = vadd.f32 %v1053, %v1066
        %v1092 = vadd.f32 %v1054, %v1066
        %v1093 = vadd.f32 %v1055, %v1066
        %v1094 = vadd.f32 %v1056, %v1066
        %v1095 = vadd.f32 %v1057, %v1066
        %v1096 = vadd.f32 %v1058, %v1066
        %v1097 = vadd.f32 %v1059, %v1066
        %v1098 = vadd.f32 %v1060, %v1066
        %v1099 = vadd.f32 %v1061, %v1066
        %v1100 = vsub.f32 0.0, %v1068
        %v1101 = vsub.f32 0.0, %v1069
        %v1102 = vsub.f32 0.0, %v1070
        %v1103 = vsub.f32 0.0, %v1071
        %v1104 = vsub.f32 0.0, %v1072
        %v1105 = vsub.f32 0.0, %v1073
        %v1106 = vsub.f32 0.0, %v1074
        %v1107 = vsub.f32 0.0, %v1075
        %v1108 = vsub.f32 0.0, %v1076
        %v1109 = vsub.f32 0.0, %v1077
        %v1110 = vsub.f32 0.0, %v1078
        %v1111 = vsub.f32 0.0, %v1079
        %v1112 = vsub.f32 0.0, %v1080
        %v1113 = vsub.f32 0.0, %v1081
        %v1114 = vsub.f32 0.0, %v1082
        %v1115 = vsub.f32 0.0, %v1083
        %v1116 = vsub.f32 0.0, %v1084
        %v1117 = vsub.f32 0.0, %v1085
        %v1118 = vsub.f32 0.0, %v1086
        %v1119 = vsub.f32 0.0, %v1087
        %v1120 = vsub.f32 0.0, %v1088
        %v1121 = vsub.f32 0.0, %v1089
        %v1122 = vsub.f32 0.0, %v1090
        %v1123 = vsub.f32 0.0, %v1091
        %v1124 = vsub.f32 0.0, %v1092
        %v1125 = vsub.f32 0.0, %v1093
        %v1126 = vsub.f32 0.0, %v1094
        %v1127 = vsub.f32 0.0, %v1095
        %v1128 = vsub.f32 0.0, %v1096
        %v1129 = vsub.f32 0.0, %v1097
        %v1130 = vsub.f32 0.0, %v1098
        %v1131 = vsub.f32 0.0, %v1099
        %v1132 = vmul.f32 %v1100, 1.442695
        %v1133 = vpow.pop %v1132
        %v1134 = vmul.f32 %v1101, 1.442695
        %v1135 = vpow.pop %v1134
        %v1136 = vmul.f32 %v1102, 1.442695
        %v1137 = vpow.pop %v1136
        %v1138 = vmul.f32 %v1103, 1.442695
        %v1139 = vpow.pop %v1138
        %v1140 = vmul.f32 %v1104, 1.442695
        %v1141 = vpow.pop %v1140
        %v1142 = vmul.f32 %v1105, 1.442695
        %v1143 = vpow.pop %v1142
        %v1144 = vmul.f32 %v1106, 1.442695
        %v1145 = vpow.pop %v1144
        %v1146 = vmul.f32 %v1107, 1.442695
        %v1147 = vpow.pop %v1146
        %v1148 = vmul.f32 %v1108, 1.442695
        %v1149 = vpow.pop %v1148
        %v1150 = vmul.f32 %v1109, 1.442695
        %v1151 = vpow.pop %v1150
        %v1152 = vmul.f32 %v1110, 1.442695
        %v1153 = vpow.pop %v1152
        %v1154 = vmul.f32 %v1111, 1.442695
        %v1155 = vpow.pop %v1154
        %v1156 = vmul.f32 %v1112, 1.442695
        %v1157 = vpow.pop %v1156
        %v1158 = vmul.f32 %v1113, 1.442695
        %v1159 = vpow.pop %v1158
        %v1160 = vmul.f32 %v1114, 1.442695
        %v1161 = vpow.pop %v1160
        %v1162 = vmul.f32 %v1115, 1.442695
        %v1163 = vpow.pop %v1162
        %v1164 = vmul.f32 %v1116, 1.442695
        %v1165 = vpow.pop %v1164
        %v1166 = vmul.f32 %v1117, 1.442695
        %v1167 = vpow.pop %v1166
        %v1168 = vmul.f32 %v1118, 1.442695
        %v1169 = vpow.pop %v1168
        %v1170 = vmul.f32 %v1119, 1.442695
        %v1171 = vpow.pop %v1170
        %v1172 = vmul.f32 %v1120, 1.442695
        %v1173 = vpow.pop %v1172
        %v1174 = vmul.f32 %v1121, 1.442695
        %v1175 = vpow.pop %v1174
        %v1176 = vmul.f32 %v1122, 1.442695
        %v1177 = vpow.pop %v1176
        %v1178 = vmul.f32 %v1123, 1.442695
        %v1179 = vpow.pop %v1178
        %v1180 = vmul.f32 %v1124, 1.442695
        %v1181 = vpow.pop %v1180
        %v1182 = vmul.f32 %v1125, 1.442695
        %v1183 = vpow.pop %v1182
        %v1184 = vmul.f32 %v1126, 1.442695
        %v1185 = vpow.pop %v1184
        %v1186 = vmul.f32 %v1127, 1.442695
        %v1187 = vpow.pop %v1186
        %v1188 = vmul.f32 %v1128, 1.442695
        %v1189 = vpow.pop %v1188
        %v1190 = vmul.f32 %v1129, 1.442695
        %v1191 = vpow.pop %v1190
        %v1192 = vmul.f32 %v1130, 1.442695
        %v1193 = vpow.pop %v1192
        %v1194 = vmul.f32 %v1131, 1.442695
        %v1195 = vpow.pop %v1194
        %v1196 = vadd.f32 %v1133, 1.0
        %v1197 = vadd.f32 %v1135, 1.0
        %v1198 = vadd.f32 %v1137, 1.0
        %v1199 = vadd.f32 %v1139, 1.0
        %v1200 = vadd.f32 %v1141, 1.0
        %v1201 = vadd.f32 %v1143, 1.0
        %v1202 = vadd.f32 %v1145, 1.0
        %v1203 = vadd.f32 %v1147, 1.0
        %v1204 = vadd.f32 %v1149, 1.0
        %v1205 = vadd.f32 %v1151, 1.0
        %v1206 = vadd.f32 %v1153, 1.0
        %v1207 = vadd.f32 %v1155, 1.0
        %v1208 = vadd.f32 %v1157, 1.0
        %v1209 = vadd.f32 %v1159, 1.0
        %v1210 = vadd.f32 %v1161, 1.0
        %v1211 = vadd.f32 %v1163, 1.0
        %v1212 = vadd.f32 %v1165, 1.0
        %v1213 = vadd.f32 %v1167, 1.0
        %v1214 = vadd.f32 %v1169, 1.0
        %v1215 = vadd.f32 %v1171, 1.0
        %v1216 = vadd.f32 %v1173, 1.0
        %v1217 = vadd.f32 %v1175, 1.0
        %v1218 = vadd.f32 %v1177, 1.0
        %v1219 = vadd.f32 %v1179, 1.0
        %v1220 = vadd.f32 %v1181, 1.0
        %v1221 = vadd.f32 %v1183, 1.0
        %v1222 = vadd.f32 %v1185, 1.0
        %v1223 = vadd.f32 %v1187, 1.0
        %v1224 = vadd.f32 %v1189, 1.0
        %v1225 = vadd.f32 %v1191, 1.0
        %v1226 = vadd.f32 %v1193, 1.0
        %v1227 = vadd.f32 %v1195, 1.0
        %v1228 = vrcp.pop %v1196
        %v1229 = vrcp.pop %v1197
        %v1230 = vrcp.pop %v1198
        %v1231 = vrcp.pop %v1199
        %v1232 = vrcp.pop %v1200
        %v1233 = vrcp.pop %v1201
        %v1234 = vrcp.pop %v1202
        %v1235 = vrcp.pop %v1203
        %v1236 = vrcp.pop %v1204
        %v1237 = vrcp.pop %v1205
        %v1238 = vrcp.pop %v1206
        %v1239 = vrcp.pop %v1207
        %v1240 = vrcp.pop %v1208
        %v1241 = vrcp.pop %v1209
        %v1242 = vrcp.pop %v1210
        %v1243 = vrcp.pop %v1211
        %v1244 = vrcp.pop %v1212
        %v1245 = vrcp.pop %v1213
        %v1246 = vrcp.pop %v1214
        %v1247 = vrcp.pop %v1215
        %v1248 = vrcp.pop %v1216
        %v1249 = vrcp.pop %v1217
        %v1250 = vrcp.pop %v1218
        %v1251 = vrcp.pop %v1219
        %v1252 = vrcp.pop %v1220
        %v1253 = vrcp.pop %v1221
        %v1254 = vrcp.pop %v1222
        %v1255 = vrcp.pop %v1223
        %v1256 = vrcp.pop %v1224
        %v1257 = vrcp.pop %v1225
        %v1258 = vrcp.pop %v1226
        %v1259 = vrcp.pop %v1227
        %v1260 = vmul.f32 %v1068, %v1228
        %v1261 = vmul.f32 %v1069, %v1229
        %v1262 = vmul.f32 %v1070, %v1230
        %v1263 = vmul.f32 %v1071, %v1231
        %v1264 = vmul.f32 %v1072, %v1232
        %v1265 = vmul.f32 %v1073, %v1233
        %v1266 = vmul.f32 %v1074, %v1234
        %v1267 = vmul.f32 %v1075, %v1235
        %v1268 = vmul.f32 %v1076, %v1236
        %v1269 = vmul.f32 %v1077, %v1237
        %v1270 = vmul.f32 %v1078, %v1238
        %v1271 = vmul.f32 %v1079, %v1239
        %v1272 = vmul.f32 %v1080, %v1240
        %v1273 = vmul.f32 %v1081, %v1241
        %v1274 = vmul.f32 %v1082, %v1242
        %v1275 = vmul.f32 %v1083, %v1243
        %v1276 = vmul.f32 %v1084, %v1244
        %v1277 = vmul.f32 %v1085, %v1245
        %v1278 = vmul.f32 %v1086, %v1246
        %v1279 = vmul.f32 %v1087, %v1247
        %v1280 = vmul.f32 %v1088, %v1248
        %v1281 = vmul.f32 %v1089, %v1249
        %v1282 = vmul.f32 %v1090, %v1250
        %v1283 = vmul.f32 %v1091, %v1251
        %v1284 = vmul.f32 %v1092, %v1252
        %v1285 = vmul.f32 %v1093, %v1253
        %v1286 = vmul.f32 %v1094, %v1254
        %v1287 = vmul.f32 %v1095, %v1255
        %v1288 = vmul.f32 %v1096, %v1256
        %v1289 = vmul.f32 %v1097, %v1257
        %v1290 = vmul.f32 %v1098, %v1258
        %v1291 = vmul.f32 %v1099, %v1259
        %v1292 = vld [vmem:[%s3] sm:$0xf]
        %v1293 = vld [vmem:[%s3 + $0x4] sm:$0xf]
        %v1294 = vld [vmem:[%s3 + $0x8] sm:$0xf]
        %v1295 = vld [vmem:[%s3 + $0xc] sm:$0xf]
        %v1296 = vld [vmem:[%s3 + $0x10] sm:$0xf]
        %v1297 = vld [vmem:[%s3 + $0x14] sm:$0xf]
        %v1298 = vld [vmem:[%s3 + $0x18] sm:$0xf]
        %v1299 = vld [vmem:[%s3 + $0x1c] sm:$0xf]
        %v1300 = vld [vmem:[%s3 + $0x20] sm:$0xf]
        %v1301 = vld [vmem:[%s3 + $0x24] sm:$0xf]
        %v1302 = vld [vmem:[%s3 + $0x28] sm:$0xf]
        %v1303 = vld [vmem:[%s3 + $0x2c] sm:$0xf]
        %v1304 = vld [vmem:[%s3 + $0x30] sm:$0xf]
        %v1305 = vld [vmem:[%s3 + $0x34] sm:$0xf]
        %v1306 = vld [vmem:[%s3 + $0x38] sm:$0xf]
        %v1307 = vld [vmem:[%s3 + $0x3c] sm:$0xf]
        %v1308 = vld [vmem:[%s3 + $0x40] sm:$0xf]
        %v1309 = vld [vmem:[%s3 + $0x44] sm:$0xf]
        %v1310 = vld [vmem:[%s3 + $0x48] sm:$0xf]
        %v1311 = vld [vmem:[%s3 + $0x4c] sm:$0xf]
        %v1312 = vld [vmem:[%s3 + $0x50] sm:$0xf]
        %v1313 = vld [vmem:[%s3 + $0x54] sm:$0xf]
        %v1314 = vld [vmem:[%s3 + $0x58] sm:$0xf]
        %v1315 = vld [vmem:[%s3 + $0x5c] sm:$0xf]
        %v1316 = vld [vmem:[%s3 + $0x60] sm:$0xf]
        %v1317 = vld [vmem:[%s3 + $0x64] sm:$0xf]
        %v1318 = vld [vmem:[%s3 + $0x68] sm:$0xf]
        %v1319 = vld [vmem:[%s3 + $0x6c] sm:$0xf]
        %v1320 = vld [vmem:[%s3 + $0x70] sm:$0xf]
        %v1321 = vld [vmem:[%s3 + $0x74] sm:$0xf]
        %v1322 = vld [vmem:[%s3 + $0x78] sm:$0xf]
        %v1323 = vld [vmem:[%s3 + $0x7c] sm:$0xf]
        %v1324 = vld [vmem:[%s3 + $0x80] sm:$0xf]
        %v1325 = vld [vmem:[%s3 + $0x84] sm:$0xf]
        %v1326 = vld [vmem:[%s3 + $0x88] sm:$0xf]
        %v1327 = vld [vmem:[%s3 + $0x8c] sm:$0xf]
        %vm1361 = vcmask 1046528
        %v1362 = vrot.slane 0.0, 1
        %v1363 = vsel %vm1361, %v1362, %v1362
        %v1364 = vrot.slane %v1260, 1
        %v1365 = vrot.slane %v1261, 1
        %v1366 = vsel %vm1361, %v1364, %v1365
        %v1367 = vrot.slane %v1262, 1
        %v1368 = vrot.slane %v1263, 1
        %v1369 = vsel %vm1361, %v1367, %v1368
        %v1370 = vrot.slane %v1264, 1
        %v1371 = vrot.slane %v1265, 1
        %v1372 = vsel %vm1361, %v1370, %v1371
        %v1373 = vrot.slane %v1266, 1
        %v1374 = vrot.slane %v1267, 1
        %v1375 = vsel %vm1361, %v1373, %v1374
        %v1376 = vrot.slane %v1268, 1
        %v1377 = vrot.slane %v1269, 1
        %v1378 = vsel %vm1361, %v1376, %v1377
        %v1379 = vrot.slane %v1270, 1
        %v1380 = vrot.slane %v1271, 1
        %v1381 = vsel %vm1361, %v1379, %v1380
        %v1382 = vrot.slane %v1272, 1
        %v1383 = vrot.slane %v1273, 1
        %v1384 = vsel %vm1361, %v1382, %v1383
        %v1385 = vrot.slane %v1274, 1
        %v1386 = vrot.slane %v1275, 1
        %v1387 = vsel %vm1361, %v1385, %v1386
        %v1388 = vrot.slane %v1276, 1
        %v1389 = vrot.slane %v1277, 1
        %v1390 = vsel %vm1361, %v1388, %v1389
        %v1391 = vrot.slane %v1278, 1
        %v1392 = vrot.slane %v1279, 1
        %v1393 = vsel %vm1361, %v1391, %v1392
        %v1394 = vrot.slane %v1280, 1
        %v1395 = vrot.slane %v1281, 1
        %v1396 = vsel %vm1361, %v1394, %v1395
        %v1397 = vrot.slane %v1282, 1
        %v1398 = vrot.slane %v1283, 1
        %v1399 = vsel %vm1361, %v1397, %v1398
        %v1400 = vrot.slane %v1284, 1
        %v1401 = vrot.slane %v1285, 1
        %v1402 = vsel %vm1361, %v1400, %v1401
        %v1403 = vrot.slane %v1286, 1
        %v1404 = vrot.slane %v1287, 1
        %v1405 = vsel %vm1361, %v1403, %v1404
        %v1406 = vrot.slane %v1288, 1
        %v1407 = vrot.slane %v1289, 1
        %v1408 = vsel %vm1361, %v1406, %v1407
        %v1409 = vrot.slane %v1290, 1
        %v1410 = vrot.slane %v1291, 1
        %v1411 = vsel %vm1361, %v1409, %v1410
        %1412 = vrot.lane.b32.xlu0 %v1362, 32
        %v1413 = vpop.permute.xlu0 %1412
        %1414 = vrot.lane.b32.xlu0 %v1363, 32
        %v1415 = vpop.permute.xlu0 %1414
        %1416 = vrot.lane.b32.xlu0 %v1364, 32
        %v1417 = vpop.permute.xlu0 %1416
        %1418 = vrot.lane.b32.xlu0 %v1366, 32
        %v1419 = vpop.permute.xlu0 %1418
        %1420 = vrot.lane.b32.xlu0 %v1365, 32
        %v1421 = vpop.permute.xlu0 %1420
        %1422 = vrot.lane.b32.xlu0 %v1367, 32
        %v1423 = vpop.permute.xlu0 %1422
        %1424 = vrot.lane.b32.xlu0 %v1369, 32
        %v1425 = vpop.permute.xlu0 %1424
        %1426 = vrot.lane.b32.xlu0 %v1368, 32
        %v1427 = vpop.permute.xlu0 %1426
        %1428 = vrot.lane.b32.xlu0 %v1370, 32
        %v1429 = vpop.permute.xlu0 %1428
        %1430 = vrot.lane.b32.xlu0 %v1372, 32
        %v1431 = vpop.permute.xlu0 %1430
        %1432 = vrot.lane.b32.xlu0 %v1371, 32
        %v1433 = vpop.permute.xlu0 %1432
        %1434 = vrot.lane.b32.xlu0 %v1373, 32
        %v1435 = vpop.permute.xlu0 %1434
        %1436 = vrot.lane.b32.xlu0 %v1375, 32
        %v1437 = vpop.permute.xlu0 %1436
        %1438 = vrot.lane.b32.xlu0 %v1374, 32
        %v1439 = vpop.permute.xlu0 %1438
        %1440 = vrot.lane.b32.xlu0 %v1376, 32
        %v1441 = vpop.permute.xlu0 %1440
        %1442 = vrot.lane.b32.xlu0 %v1378, 32
        %v1443 = vpop.permute.xlu0 %1442
        %1444 = vrot.lane.b32.xlu0 %v1377, 32
        %v1445 = vpop.permute.xlu0 %1444
        %1446 = vrot.lane.b32.xlu0 %v1379, 32
        %v1447 = vpop.permute.xlu0 %1446
        %1448 = vrot.lane.b32.xlu0 %v1381, 32
        %v1449 = vpop.permute.xlu0 %1448
        %1450 = vrot.lane.b32.xlu0 %v1380, 32
        %v1451 = vpop.permute.xlu0 %1450
        %1452 = vrot.lane.b32.xlu0 %v1382, 32
        %v1453 = vpop.permute.xlu0 %1452
        %1454 = vrot.lane.b32.xlu0 %v1384, 32
        %v1455 = vpop.permute.xlu0 %1454
        %1456 = vrot.lane.b32.xlu0 %v1383, 32
        %v1457 = vpop.permute.xlu0 %1456
        %1458 = vrot.lane.b32.xlu0 %v1385, 32
        %v1459 = vpop.permute.xlu0 %1458
        %1460 = vrot.lane.b32.xlu0 %v1387, 32
        %v1461 = vpop.permute.xlu0 %1460
        %1462 = vrot.lane.b32.xlu0 %v1386, 32
        %v1463 = vpop.permute.xlu0 %1462
        %1464 = vrot.lane.b32.xlu0 %v1388, 32
        %v1465 = vpop.permute.xlu0 %1464
        %1466 = vrot.lane.b32.xlu0 %v1390, 32
        %v1467 = vpop.permute.xlu0 %1466
        %1468 = vrot.lane.b32.xlu0 %v1389, 32
        %v1469 = vpop.permute.xlu0 %1468
        %1470 = vrot.lane.b32.xlu0 %v1391, 32
        %v1471 = vpop.permute.xlu0 %1470
        %1472 = vrot.lane.b32.xlu0 %v1393, 32
        %v1473 = vpop.permute.xlu0 %1472
        %1474 = vrot.lane.b32.xlu0 %v1392, 32
        %v1475 = vpop.permute.xlu0 %1474
        %1476 = vrot.lane.b32.xlu0 %v1394, 32
        %v1477 = vpop.permute.xlu0 %1476
        %1478 = vrot.lane.b32.xlu0 %v1396, 32
        %v1479 = vpop.permute.xlu0 %1478
        %1480 = vrot.lane.b32.xlu0 %v1395, 32
        %v1481 = vpop.permute.xlu0 %1480
        %1482 = vrot.lane.b32.xlu0 %v1397, 32
        %v1483 = vpop.permute.xlu0 %1482
        %1484 = vrot.lane.b32.xlu0 %v1399, 32
        %v1485 = vpop.permute.xlu0 %1484
        %1486 = vrot.lane.b32.xlu0 %v1398, 32
        %v1487 = vpop.permute.xlu0 %1486
        %1488 = vrot.lane.b32.xlu0 %v1400, 32
        %v1489 = vpop.permute.xlu0 %1488
        %1490 = vrot.lane.b32.xlu0 %v1402, 32
        %v1491 = vpop.permute.xlu0 %1490
        %1492 = vrot.lane.b32.xlu0 %v1401, 32
        %v1493 = vpop.permute.xlu0 %1492
        %1494 = vrot.lane.b32.xlu0 %v1403, 32
        %v1495 = vpop.permute.xlu0 %1494
        %1496 = vrot.lane.b32.xlu0 %v1405, 32
        %v1497 = vpop.permute.xlu0 %1496
        %1498 = vrot.lane.b32.xlu0 %v1404, 32
        %v1499 = vpop.permute.xlu0 %1498
        %1500 = vrot.lane.b32.xlu0 %v1406, 32
        %v1501 = vpop.permute.xlu0 %1500
        %1502 = vrot.lane.b32.xlu0 %v1408, 32
        %v1503 = vpop.permute.xlu0 %1502
        %1504 = vrot.lane.b32.xlu0 %v1407, 32
        %v1505 = vpop.permute.xlu0 %1504
        %1506 = vrot.lane.b32.xlu0 %v1409, 32
        %v1507 = vpop.permute.xlu0 %1506
        %1508 = vrot.lane.b32.xlu0 %v1411, 32
        %v1509 = vpop.permute.xlu0 %1508
        %1510 = vrot.lane.b32.xlu0 %v1410, 32
        %v1511 = vpop.permute.xlu0 %1510
        %vm1562 = vcmask 1045504
        %v1563 = vrot.slane 0.0, 2
        %v1564 = vsel %vm1562, %v1563, %v1563
        %v1565 = vrot.slane %v1260, 2
        %v1566 = vrot.slane %v1261, 2
        %v1567 = vsel %vm1562, %v1565, %v1566
        %v1568 = vsel %vm1562, %v1566, %v1563
        %v1569 = vrot.slane %v1262, 2
        %v1570 = vrot.slane %v1263, 2
        %v1571 = vsel %vm1562, %v1569, %v1570
        %v1572 = vsel %vm1562, %v1570, %v1563
        %v1573 = vrot.slane %v1264, 2
        %v1574 = vrot.slane %v1265, 2
        %v1575 = vsel %vm1562, %v1573, %v1574
        %v1576 = vsel %vm1562, %v1574, %v1563
        %v1577 = vrot.slane %v1266, 2
        %v1578 = vrot.slane %v1267, 2
        %v1579 = vsel %vm1562, %v1577, %v1578
        %v1580 = vsel %vm1562, %v1578, %v1563
        %v1581 = vrot.slane %v1268, 2
        %v1582 = vrot.slane %v1269, 2
        %v1583 = vsel %vm1562, %v1581, %v1582
        %v1584 = vsel %vm1562, %v1582, %v1563
        %v1585 = vrot.slane %v1270, 2
        %v1586 = vrot.slane %v1271, 2
        %v1587 = vsel %vm1562, %v1585, %v1586
        %v1588 = vsel %vm1562, %v1586, %v1563
        %v1589 = vrot.slane %v1272, 2
        %v1590 = vrot.slane %v1273, 2
        %v1591 = vsel %vm1562, %v1589, %v1590
        %v1592 = vsel %vm1562, %v1590, %v1563
        %v1593 = vrot.slane %v1274, 2
        %v1594 = vrot.slane %v1275, 2
        %v1595 = vsel %vm1562, %v1593, %v1594
        %v1596 = vsel %vm1562, %v1594, %v1563
        %v1597 = vrot.slane %v1276, 2
        %v1598 = vrot.slane %v1277, 2
        %v1599 = vsel %vm1562, %v1597, %v1598
        %v1600 = vsel %vm1562, %v1598, %v1563
        %v1601 = vrot.slane %v1278, 2
        %v1602 = vrot.slane %v1279, 2
        %v1603 = vsel %vm1562, %v1601, %v1602
        %v1604 = vsel %vm1562, %v1602, %v1563
        %v1605 = vrot.slane %v1280, 2
        %v1606 = vrot.slane %v1281, 2
        %v1607 = vsel %vm1562, %v1605, %v1606
        %v1608 = vsel %vm1562, %v1606, %v1563
        %v1609 = vrot.slane %v1282, 2
        %v1610 = vrot.slane %v1283, 2
        %v1611 = vsel %vm1562, %v1609, %v1610
        %v1612 = vsel %vm1562, %v1610, %v1563
        %v1613 = vrot.slane %v1284, 2
        %v1614 = vrot.slane %v1285, 2
        %v1615 = vsel %vm1562, %v1613, %v1614
        %v1616 = vsel %vm1562, %v1614, %v1563
        %v1617 = vrot.slane %v1286, 2
        %v1618 = vrot.slane %v1287, 2
        %v1619 = vsel %vm1562, %v1617, %v1618
        %v1620 = vsel %vm1562, %v1618, %v1563
        %v1621 = vrot.slane %v1288, 2
        %v1622 = vrot.slane %v1289, 2
        %v1623 = vsel %vm1562, %v1621, %v1622
        %v1624 = vsel %vm1562, %v1622, %v1563
        %v1625 = vrot.slane %v1290, 2
        %v1626 = vrot.slane %v1291, 2
        %v1627 = vsel %vm1562, %v1625, %v1626
        %v1628 = vsel %vm1562, %v1626, %v1563
        %1629 = vrot.lane.b32.xlu0 %v1563, 64
        %v1630 = vpop.permute.xlu0 %1629
        %1631 = vrot.lane.b32.xlu0 %v1564, 64
        %v1632 = vpop.permute.xlu0 %1631
        %1633 = vrot.lane.b32.xlu0 %v1565, 64
        %v1634 = vpop.permute.xlu0 %1633
        %1635 = vrot.lane.b32.xlu0 %v1567, 64
        %v1636 = vpop.permute.xlu0 %1635
        %1637 = vrot.lane.b32.xlu0 %v1568, 64
        %v1638 = vpop.permute.xlu0 %1637
        %1639 = vrot.lane.b32.xlu0 %v1569, 64
        %v1640 = vpop.permute.xlu0 %1639
        %1641 = vrot.lane.b32.xlu0 %v1571, 64
        %v1642 = vpop.permute.xlu0 %1641
        %1643 = vrot.lane.b32.xlu0 %v1572, 64
        %v1644 = vpop.permute.xlu0 %1643
        %1645 = vrot.lane.b32.xlu0 %v1573, 64
        %v1646 = vpop.permute.xlu0 %1645
        %1647 = vrot.lane.b32.xlu0 %v1575, 64
        %v1648 = vpop.permute.xlu0 %1647
        %1649 = vrot.lane.b32.xlu0 %v1576, 64
        %v1650 = vpop.permute.xlu0 %1649
        %1651 = vrot.lane.b32.xlu0 %v1577, 64
        %v1652 = vpop.permute.xlu0 %1651
        %1653 = vrot.lane.b32.xlu0 %v1579, 64
        %v1654 = vpop.permute.xlu0 %1653
        %1655 = vrot.lane.b32.xlu0 %v1580, 64
        %v1656 = vpop.permute.xlu0 %1655
        %1657 = vrot.lane.b32.xlu0 %v1581, 64
        %v1658 = vpop.permute.xlu0 %1657
        %1659 = vrot.lane.b32.xlu0 %v1583, 64
        %v1660 = vpop.permute.xlu0 %1659
        %1661 = vrot.lane.b32.xlu0 %v1584, 64
        %v1662 = vpop.permute.xlu0 %1661
        %1663 = vrot.lane.b32.xlu0 %v1585, 64
        %v1664 = vpop.permute.xlu0 %1663
        %1665 = vrot.lane.b32.xlu0 %v1587, 64
        %v1666 = vpop.permute.xlu0 %1665
        %1667 = vrot.lane.b32.xlu0 %v1588, 64
        %v1668 = vpop.permute.xlu0 %1667
        %1669 = vrot.lane.b32.xlu0 %v1589, 64
        %v1670 = vpop.permute.xlu0 %1669
        %1671 = vrot.lane.b32.xlu0 %v1591, 64
        %v1672 = vpop.permute.xlu0 %1671
        %1673 = vrot.lane.b32.xlu0 %v1592, 64
        %v1674 = vpop.permute.xlu0 %1673
        %1675 = vrot.lane.b32.xlu0 %v1593, 64
        %v1676 = vpop.permute.xlu0 %1675
        %1677 = vrot.lane.b32.xlu0 %v1595, 64
        %v1678 = vpop.permute.xlu0 %1677
        %1679 = vrot.lane.b32.xlu0 %v1596, 64
        %v1680 = vpop.permute.xlu0 %1679
        %1681 = vrot.lane.b32.xlu0 %v1597, 64
        %v1682 = vpop.permute.xlu0 %1681
        %1683 = vrot.lane.b32.xlu0 %v1599, 64
        %v1684 = vpop.permute.xlu0 %1683
        %1685 = vrot.lane.b32.xlu0 %v1600, 64
        %v1686 = vpop.permute.xlu0 %1685
        %1687 = vrot.lane.b32.xlu0 %v1601, 64
        %v1688 = vpop.permute.xlu0 %1687
        %1689 = vrot.lane.b32.xlu0 %v1603, 64
        %v1690 = vpop.permute.xlu0 %1689
        %1691 = vrot.lane.b32.xlu0 %v1604, 64
        %v1692 = vpop.permute.xlu0 %1691
        %1693 = vrot.lane.b32.xlu0 %v1605, 64
        %v1694 = vpop.permute.xlu0 %1693
        %1695 = vrot.lane.b32.xlu0 %v1607, 64
        %v1696 = vpop.permute.xlu0 %1695
        %1697 = vrot.lane.b32.xlu0 %v1608, 64
        %v1698 = vpop.permute.xlu0 %1697
        %1699 = vrot.lane.b32.xlu0 %v1609, 64
        %v1700 = vpop.permute.xlu0 %1699
        %1701 = vrot.lane.b32.xlu0 %v1611, 64
        %v1702 = vpop.permute.xlu0 %1701
        %1703 = vrot.lane.b32.xlu0 %v1612, 64
        %v1704 = vpop.permute.xlu0 %1703
        %1705 = vrot.lane.b32.xlu0 %v1613, 64
        %v1706 = vpop.permute.xlu0 %1705
        %1707 = vrot.lane.b32.xlu0 %v1615, 64
        %v1708 = vpop.permute.xlu0 %1707
        %1709 = vrot.lane.b32.xlu0 %v1616, 64
        %v1710 = vpop.permute.xlu0 %1709
        %1711 = vrot.lane.b32.xlu0 %v1617, 64
        %v1712 = vpop.permute.xlu0 %1711
        %1713 = vrot.lane.b32.xlu0 %v1619, 64
        %v1714 = vpop.permute.xlu0 %1713
        %1715 = vrot.lane.b32.xlu0 %v1620, 64
        %v1716 = vpop.permute.xlu0 %1715
        %1717 = vrot.lane.b32.xlu0 %v1621, 64
        %v1718 = vpop.permute.xlu0 %1717
        %1719 = vrot.lane.b32.xlu0 %v1623, 64
        %v1720 = vpop.permute.xlu0 %1719
        %1721 = vrot.lane.b32.xlu0 %v1624, 64
        %v1722 = vpop.permute.xlu0 %1721
        %1723 = vrot.lane.b32.xlu0 %v1625, 64
        %v1724 = vpop.permute.xlu0 %1723
        %1725 = vrot.lane.b32.xlu0 %v1627, 64
        %v1726 = vpop.permute.xlu0 %1725
        %1727 = vrot.lane.b32.xlu0 %v1628, 64
        %v1728 = vpop.permute.xlu0 %1727
        %v1779 = vsel %vm486, 0.0, %v1413
        %v1780 = vsel %vm486, 0.0, %v1415
        %v1781 = vsel %vm486, 0.0, %v1417
        %v1782 = vsel %vm486, %v1260, %v1419
        %v1783 = vsel %vm486, %v1261, %v1421
        %v1784 = vsel %vm486, 0.0, %v1423
        %v1785 = vsel %vm486, %v1262, %v1425
        %v1786 = vsel %vm486, %v1263, %v1427
        %v1787 = vsel %vm486, 0.0, %v1429
        %v1788 = vsel %vm486, %v1264, %v1431
        %v1789 = vsel %vm486, %v1265, %v1433
        %v1790 = vsel %vm486, 0.0, %v1435
        %v1791 = vsel %vm486, %v1266, %v1437
        %v1792 = vsel %vm486, %v1267, %v1439
        %v1793 = vsel %vm486, 0.0, %v1441
        %v1794 = vsel %vm486, %v1268, %v1443
        %v1795 = vsel %vm486, %v1269, %v1445
        %v1796 = vsel %vm486, 0.0, %v1447
        %v1797 = vsel %vm486, %v1270, %v1449
        %v1798 = vsel %vm486, %v1271, %v1451
        %v1799 = vsel %vm486, 0.0, %v1453
        %v1800 = vsel %vm486, %v1272, %v1455
        %v1801 = vsel %vm486, %v1273, %v1457
        %v1802 = vsel %vm486, 0.0, %v1459
        %v1803 = vsel %vm486, %v1274, %v1461
        %v1804 = vsel %vm486, %v1275, %v1463
        %v1805 = vsel %vm486, 0.0, %v1465
        %v1806 = vsel %vm486, %v1276, %v1467
        %v1807 = vsel %vm486, %v1277, %v1469
        %v1808 = vsel %vm486, 0.0, %v1471
        %v1809 = vsel %vm486, %v1278, %v1473
        %v1810 = vsel %vm486, %v1279, %v1475
        %v1811 = vsel %vm486, 0.0, %v1477
        %v1812 = vsel %vm486, %v1280, %v1479
        %v1813 = vsel %vm486, %v1281, %v1481
        %v1814 = vsel %vm486, 0.0, %v1483
        %v1815 = vsel %vm486, %v1282, %v1485
        %v1816 = vsel %vm486, %v1283, %v1487
        %v1817 = vsel %vm486, 0.0, %v1489
        %v1818 = vsel %vm486, %v1284, %v1491
        %v1819 = vsel %vm486, %v1285, %v1493
        %v1820 = vsel %vm486, 0.0, %v1495
        %v1821 = vsel %vm486, %v1286, %v1497
        %v1822 = vsel %vm486, %v1287, %v1499
        %v1823 = vsel %vm486, 0.0, %v1501
        %v1824 = vsel %vm486, %v1288, %v1503
        %v1825 = vsel %vm486, %v1289, %v1505
        %v1826 = vsel %vm486, 0.0, %v1507
        %v1827 = vsel %vm486, %v1290, %v1509
        %v1828 = vsel %vm486, %v1291, %v1511
        %vm1829 = vcmask 523264
        %v1830 = vsel %vm1829, %v1779, %v1630
        %v1831 = vsel %vm1829, %v1780, %v1632
        %v1832 = vsel %vm1829, %v1779, %v1632
        %v1833 = vsel %vm1829, %v1781, %v1634
        %v1834 = vsel %vm1829, %v1782, %v1636
        %v1835 = vsel %vm1829, %v1783, %v1638
        %v1836 = vsel %vm1829, %v1784, %v1640
        %v1837 = vsel %vm1829, %v1785, %v1642
        %v1838 = vsel %vm1829, %v1786, %v1644
        %v1839 = vsel %vm1829, %v1787, %v1646
        %v1840 = vsel %vm1829, %v1788, %v1648
        %v1841 = vsel %vm1829, %v1789, %v1650
        %v1842 = vsel %vm1829, %v1790, %v1652
        %v1843 = vsel %vm1829, %v1791, %v1654
        %v1844 = vsel %vm1829, %v1792, %v1656
        %v1845 = vsel %vm1829, %v1793, %v1658
        %v1846 = vsel %vm1829, %v1794, %v1660
        %v1847 = vsel %vm1829, %v1795, %v1662
        %v1848 = vsel %vm1829, %v1796, %v1664
        %v1849 = vsel %vm1829, %v1797, %v1666
        %v1850 = vsel %vm1829, %v1798, %v1668
        %v1851 = vsel %vm1829, %v1799, %v1670
        %v1852 = vsel %vm1829, %v1800, %v1672
        %v1853 = vsel %vm1829, %v1801, %v1674
        %v1854 = vsel %vm1829, %v1802, %v1676
        %v1855 = vsel %vm1829, %v1803, %v1678
        %v1856 = vsel %vm1829, %v1804, %v1680
        %v1857 = vsel %vm1829, %v1805, %v1682
        %v1858 = vsel %vm1829, %v1806, %v1684
        %v1859 = vsel %vm1829, %v1807, %v1686
        %v1860 = vsel %vm1829, %v1808, %v1688
        %v1861 = vsel %vm1829, %v1809, %v1690
        %v1862 = vsel %vm1829, %v1810, %v1692
        %v1863 = vsel %vm1829, %v1811, %v1694
        %v1864 = vsel %vm1829, %v1812, %v1696
        %v1865 = vsel %vm1829, %v1813, %v1698
        %v1866 = vsel %vm1829, %v1814, %v1700
        %v1867 = vsel %vm1829, %v1815, %v1702
        %v1868 = vsel %vm1829, %v1816, %v1704
        %v1869 = vsel %vm1829, %v1817, %v1706
        %v1870 = vsel %vm1829, %v1818, %v1708
        %v1871 = vsel %vm1829, %v1819, %v1710
        %v1872 = vsel %vm1829, %v1820, %v1712
        %v1873 = vsel %vm1829, %v1821, %v1714
        %v1874 = vsel %vm1829, %v1822, %v1716
        %v1875 = vsel %vm1829, %v1823, %v1718
        %v1876 = vsel %vm1829, %v1824, %v1720
        %v1877 = vsel %vm1829, %v1825, %v1722
        %v1878 = vsel %vm1829, %v1826, %v1724
        %v1879 = vsel %vm1829, %v1827, %v1726
        %v1880 = vsel %vm1829, %v1828, %v1728
        %v1881 = vpack.c.bf16 %v1831, %v1830
        %v1882 = vpack.c.bf16 %v1832, %v1832
        %v1883 = vpack.c.bf16 %v1834, %v1833
        %v1884 = vpack.c.bf16 %v1835, %v1835
        %v1885 = vpack.c.bf16 %v1837, %v1836
        %v1886 = vpack.c.bf16 %v1838, %v1838
        %v1887 = vpack.c.bf16 %v1840, %v1839
        %v1888 = vpack.c.bf16 %v1841, %v1841
        %v1889 = vpack.c.bf16 %v1843, %v1842
        %v1890 = vpack.c.bf16 %v1844, %v1844
        %v1891 = vpack.c.bf16 %v1846, %v1845
        %v1892 = vpack.c.bf16 %v1847, %v1847
        %v1893 = vpack.c.bf16 %v1849, %v1848
        %v1894 = vpack.c.bf16 %v1850, %v1850
        %v1895 = vpack.c.bf16 %v1852, %v1851
        %v1896 = vpack.c.bf16 %v1853, %v1853
        %v1897 = vpack.c.bf16 %v1855, %v1854
        %v1898 = vpack.c.bf16 %v1856, %v1856
        %v1899 = vpack.c.bf16 %v1858, %v1857
        %v1900 = vpack.c.bf16 %v1859, %v1859
        %v1901 = vpack.c.bf16 %v1861, %v1860
        %v1902 = vpack.c.bf16 %v1862, %v1862
        %v1903 = vpack.c.bf16 %v1864, %v1863
        %v1904 = vpack.c.bf16 %v1865, %v1865
        %v1905 = vpack.c.bf16 %v1867, %v1866
        %v1906 = vpack.c.bf16 %v1868, %v1868
        %v1907 = vpack.c.bf16 %v1870, %v1869
        %v1908 = vpack.c.bf16 %v1871, %v1871
        %v1909 = vpack.c.bf16 %v1873, %v1872
        %v1910 = vpack.c.bf16 %v1874, %v1874
        %v1911 = vpack.c.bf16 %v1876, %v1875
        %v1912 = vpack.c.bf16 %v1877, %v1877
        %v1913 = vpack.c.bf16 %v1879, %v1878
        %v1914 = vpack.c.bf16 %v1880, %v1880
        %vm1915 = vsmask.f32 4352
        %v1917 = vshrl.u32 %v1881, 16
        %v1919 = vrot.slane %v1917, 3
        %v1920 = vshll.u32 %v1881, 16
        %v1922 = vrot.slane %v1920, 4
        %v1923 = vor.u32 %v1919, %v1922
        %v1925 = vshrl.u32 %v1882, 16
        %v1927 = vrot.slane %v1925, 3
        %v1928 = vshll.u32 %v1882, 16
        %v1930 = vrot.slane %v1928, 4
        %v1931 = vor.u32 %v1927, %v1930
        %v1932 = vsel %vm1915, %v1923, %v1931
        %v1934 = vshrl.u32 %v1883, 16
        %v1936 = vrot.slane %v1934, 3
        %v1937 = vshll.u32 %v1883, 16
        %v1939 = vrot.slane %v1937, 4
        %v1940 = vor.u32 %v1936, %v1939
        %v1942 = vshrl.u32 %v1884, 16
        %v1944 = vrot.slane %v1942, 3
        %v1945 = vshll.u32 %v1884, 16
        %v1947 = vrot.slane %v1945, 4
        %v1948 = vor.u32 %v1944, %v1947
        %v1949 = vsel %vm1915, %v1940, %v1948
        %v1951 = vshrl.u32 %v1885, 16
        %v1953 = vrot.slane %v1951, 3
        %v1954 = vshll.u32 %v1885, 16
        %v1956 = vrot.slane %v1954, 4
        %v1957 = vor.u32 %v1953, %v1956
        %v1959 = vshrl.u32 %v1886, 16
        %v1961 = vrot.slane %v1959, 3
        %v1962 = vshll.u32 %v1886, 16
        %v1964 = vrot.slane %v1962, 4
        %v1965 = vor.u32 %v1961, %v1964
        %v1966 = vsel %vm1915, %v1957, %v1965
        %v1968 = vshrl.u32 %v1887, 16
        %v1970 = vrot.slane %v1968, 3
        %v1971 = vshll.u32 %v1887, 16
        %v1973 = vrot.slane %v1971, 4
        %v1974 = vor.u32 %v1970, %v1973
        %v1976 = vshrl.u32 %v1888, 16
        %v1978 = vrot.slane %v1976, 3
        %v1979 = vshll.u32 %v1888, 16
        %v1981 = vrot.slane %v1979, 4
        %v1982 = vor.u32 %v1978, %v1981
        %v1983 = vsel %vm1915, %v1974, %v1982
        %v1985 = vshrl.u32 %v1889, 16
        %v1987 = vrot.slane %v1985, 3
        %v1988 = vshll.u32 %v1889, 16
        %v1990 = vrot.slane %v1988, 4
        %v1991 = vor.u32 %v1987, %v1990
        %v1993 = vshrl.u32 %v1890, 16
        %v1995 = vrot.slane %v1993, 3
        %v1996 = vshll.u32 %v1890, 16
        %v1998 = vrot.slane %v1996, 4
        %v1999 = vor.u32 %v1995, %v1998
        %v2000 = vsel %vm1915, %v1991, %v1999
        %v2002 = vshrl.u32 %v1891, 16
        %v2004 = vrot.slane %v2002, 3
        %v2005 = vshll.u32 %v1891, 16
        %v2007 = vrot.slane %v2005, 4
        %v2008 = vor.u32 %v2004, %v2007
        %v2010 = vshrl.u32 %v1892, 16
        %v2012 = vrot.slane %v2010, 3
        %v2013 = vshll.u32 %v1892, 16
        %v2015 = vrot.slane %v2013, 4
        %v2016 = vor.u32 %v2012, %v2015
        %v2017 = vsel %vm1915, %v2008, %v2016
        %v2019 = vshrl.u32 %v1893, 16
        %v2021 = vrot.slane %v2019, 3
        %v2022 = vshll.u32 %v1893, 16
        %v2024 = vrot.slane %v2022, 4
        %v2025 = vor.u32 %v2021, %v2024
        %v2027 = vshrl.u32 %v1894, 16
        %v2029 = vrot.slane %v2027, 3
        %v2030 = vshll.u32 %v1894, 16
        %v2032 = vrot.slane %v2030, 4
        %v2033 = vor.u32 %v2029, %v2032
        %v2034 = vsel %vm1915, %v2025, %v2033
        %v2036 = vshrl.u32 %v1895, 16
        %v2038 = vrot.slane %v2036, 3
        %v2039 = vshll.u32 %v1895, 16
        %v2041 = vrot.slane %v2039, 4
        %v2042 = vor.u32 %v2038, %v2041
        %v2044 = vshrl.u32 %v1896, 16
        %v2046 = vrot.slane %v2044, 3
        %v2047 = vshll.u32 %v1896, 16
        %v2049 = vrot.slane %v2047, 4
        %v2050 = vor.u32 %v2046, %v2049
        %v2051 = vsel %vm1915, %v2042, %v2050
        %v2053 = vshrl.u32 %v1897, 16
        %v2055 = vrot.slane %v2053, 3
        %v2056 = vshll.u32 %v1897, 16
        %v2058 = vrot.slane %v2056, 4
        %v2059 = vor.u32 %v2055, %v2058
        %v2061 = vshrl.u32 %v1898, 16
        %v2063 = vrot.slane %v2061, 3
        %v2064 = vshll.u32 %v1898, 16
        %v2066 = vrot.slane %v2064, 4
        %v2067 = vor.u32 %v2063, %v2066
        %v2068 = vsel %vm1915, %v2059, %v2067
        %v2070 = vshrl.u32 %v1899, 16
        %v2072 = vrot.slane %v2070, 3
        %v2073 = vshll.u32 %v1899, 16
        %v2075 = vrot.slane %v2073, 4
        %v2076 = vor.u32 %v2072, %v2075
        %v2078 = vshrl.u32 %v1900, 16
        %v2080 = vrot.slane %v2078, 3
        %v2081 = vshll.u32 %v1900, 16
        %v2083 = vrot.slane %v2081, 4
        %v2084 = vor.u32 %v2080, %v2083
        %v2085 = vsel %vm1915, %v2076, %v2084
        %v2087 = vshrl.u32 %v1901, 16
        %v2089 = vrot.slane %v2087, 3
        %v2090 = vshll.u32 %v1901, 16
        %v2092 = vrot.slane %v2090, 4
        %v2093 = vor.u32 %v2089, %v2092
        %v2095 = vshrl.u32 %v1902, 16
        %v2097 = vrot.slane %v2095, 3
        %v2098 = vshll.u32 %v1902, 16
        %v2100 = vrot.slane %v2098, 4
        %v2101 = vor.u32 %v2097, %v2100
        %v2102 = vsel %vm1915, %v2093, %v2101
        %v2104 = vshrl.u32 %v1903, 16
        %v2106 = vrot.slane %v2104, 3
        %v2107 = vshll.u32 %v1903, 16
        %v2109 = vrot.slane %v2107, 4
        %v2110 = vor.u32 %v2106, %v2109
        %v2112 = vshrl.u32 %v1904, 16
        %v2114 = vrot.slane %v2112, 3
        %v2115 = vshll.u32 %v1904, 16
        %v2117 = vrot.slane %v2115, 4
        %v2118 = vor.u32 %v2114, %v2117
        %v2119 = vsel %vm1915, %v2110, %v2118
        %v2121 = vshrl.u32 %v1905, 16
        %v2123 = vrot.slane %v2121, 3
        %v2124 = vshll.u32 %v1905, 16
        %v2126 = vrot.slane %v2124, 4
        %v2127 = vor.u32 %v2123, %v2126
        %v2129 = vshrl.u32 %v1906, 16
        %v2131 = vrot.slane %v2129, 3
        %v2132 = vshll.u32 %v1906, 16
        %v2134 = vrot.slane %v2132, 4
        %v2135 = vor.u32 %v2131, %v2134
        %v2136 = vsel %vm1915, %v2127, %v2135
        %v2138 = vshrl.u32 %v1907, 16
        %v2140 = vrot.slane %v2138, 3
        %v2141 = vshll.u32 %v1907, 16
        %v2143 = vrot.slane %v2141, 4
        %v2144 = vor.u32 %v2140, %v2143
        %v2146 = vshrl.u32 %v1908, 16
        %v2148 = vrot.slane %v2146, 3
        %v2149 = vshll.u32 %v1908, 16
        %v2151 = vrot.slane %v2149, 4
        %v2152 = vor.u32 %v2148, %v2151
        %v2153 = vsel %vm1915, %v2144, %v2152
        %v2155 = vshrl.u32 %v1909, 16
        %v2157 = vrot.slane %v2155, 3
        %v2158 = vshll.u32 %v1909, 16
        %v2160 = vrot.slane %v2158, 4
        %v2161 = vor.u32 %v2157, %v2160
        %v2163 = vshrl.u32 %v1910, 16
        %v2165 = vrot.slane %v2163, 3
        %v2166 = vshll.u32 %v1910, 16
        %v2168 = vrot.slane %v2166, 4
        %v2169 = vor.u32 %v2165, %v2168
        %v2170 = vsel %vm1915, %v2161, %v2169
        %v2172 = vshrl.u32 %v1911, 16
        %v2174 = vrot.slane %v2172, 3
        %v2175 = vshll.u32 %v1911, 16
        %v2177 = vrot.slane %v2175, 4
        %v2178 = vor.u32 %v2174, %v2177
        %v2180 = vshrl.u32 %v1912, 16
        %v2182 = vrot.slane %v2180, 3
        %v2183 = vshll.u32 %v1912, 16
        %v2185 = vrot.slane %v2183, 4
        %v2186 = vor.u32 %v2182, %v2185
        %v2187 = vsel %vm1915, %v2178, %v2186
        %v2189 = vshrl.u32 %v1913, 16
        %v2191 = vrot.slane %v2189, 3
        %v2192 = vshll.u32 %v1913, 16
        %v2194 = vrot.slane %v2192, 4
        %v2195 = vor.u32 %v2191, %v2194
        %v2197 = vshrl.u32 %v1914, 16
        %v2199 = vrot.slane %v2197, 3
        %v2200 = vshll.u32 %v1914, 16
        %v2202 = vrot.slane %v2200, 4
        %v2203 = vor.u32 %v2199, %v2202
        %v2204 = vsel %vm1915, %v2195, %v2203
        %v2217 = vunpack.c.l.b16 %v1304
        %v2218 = vunpack.c.l.b16 %v1305
        %v2219 = vunpack.c.l.b16 %v1306
        %v2220 = vunpack.c.l.b16 %v1307
        %v2221 = vunpack.c.l.b16 %v1308
        %v2222 = vunpack.c.l.b16 %v1309
        %v2223 = vunpack.c.l.b16 %v1310
        %v2224 = vunpack.c.l.b16 %v1311
        %v2225 = vunpack.c.l.b16 %v1312
        %v2226 = vunpack.c.l.b16 %v1313
        %v2227 = vunpack.c.l.b16 %v1314
        %v2228 = vunpack.c.l.b16 %v1315
        %v2229 = vpack.c.b16 %v2218, %v2217
        %v2230 = vpack.c.b16 %v2220, %v2219
        %v2231 = vpack.c.b16 %v2222, %v2221
        %v2232 = vpack.c.b16 %v2224, %v2223
        %v2233 = vpack.c.b16 %v2226, %v2225
        %v2234 = vpack.c.b16 %v2228, %v2227
        %vm2241 = vcmask 785408
        %v2243 = vsel %vm2241, %v1949, 0
        %v2246 = vsel %vm2241, %v1966, 0
        %v2249 = vsel %vm2241, %v1983, 0
        %v2252 = vsel %vm2241, %v2000, 0
        %v2255 = vsel %vm2241, %v2017, 0
        %v2258 = vsel %vm2241, %v2034, 0
        %v2261 = vsel %vm2241, %v2051, 0
        %v2264 = vsel %vm2241, %v2068, 0
        %v2267 = vsel %vm2241, %v2085, 0
        %v2270 = vsel %vm2241, %v2102, 0
        %v2273 = vsel %vm2241, %v2119, 0
        %v2276 = vsel %vm2241, %v2136, 0
        %v2279 = vsel %vm2241, %v2153, 0
        %v2282 = vsel %vm2241, %v2170, 0
        %v2285 = vsel %vm2241, %v2187, 0
        %v2288 = vsel %vm2241, %v2204, 0
        %2290 = vmatprep.subr.bf16.mxu0 0
        %2291 = vmatpush1.bf16.msra.mxu0 0
        %2292 = vmatprep.subr.bf16.mxu0 0
        %2293 = vmatpush1.bf16.msra.mxu0 0
        %2294 = vmatprep.subr.bf16.mxu0 0
        %2295 = vmatpush1.bf16.msra.mxu0 %v2234
        %2296 = vmatprep.subr.bf16.mxu0 0
        %2297 = vmatpush1.bf16.msra.mxu0 %v2233
        %2298 = vmatprep.subr.bf16.mxu0 0
        %2299 = vmatpush1.bf16.msra.mxu0 %v2232
        %2300 = vmatprep.subr.bf16.mxu0 0
        %2301 = vmatpush1.bf16.msra.mxu0 %v2231
        %2302 = vmatprep.subr.bf16.mxu0 0
        %2303 = vmatpush1.bf16.msra.mxu0 %v2230
        %2304 = vmatprep.subr.bf16.mxu0 0
        %2305 = vmatpush1.bf16.msra.mxu0 %v2229
        %2306 = vmatprep.subr.bf16.mxu0 0
        %2307 = vmatpush2.bf16.msra.mxu0 0
        %2308 = vmatprep.subr.bf16.mxu0 0
        %2309 = vmatpush2.bf16.msra.mxu0 0
        %2310 = vmatprep.subr.bf16.mxu0 0
        %2311 = vmatpush2.bf16.msra.mxu0 0
        %2312 = vmatprep.subr.bf16.mxu0 0
        %2313 = vmatpush2.bf16.msra.mxu0 0
        %2314 = vmatprep.subr.bf16.mxu0 0
        %2315 = vmatpush2.bf16.msra.mxu0 0
        %2316 = vmatprep.subr.bf16.mxu0 0
        %2317 = vmatpush2.bf16.msra.mxu0 0
        %2318 = vmatprep.subr.bf16.mxu0 0
        %2319 = vmatpush2.bf16.msra.mxu0 0
        %2320 = vmatprep.subr.bf16.mxu0 0
        %2321 = vmatpush2.bf16.msra.mxu0 0
        %2322 = vmatprep.mubr.bf16.mxu0 0
        %2323 = vmatmul.mubr.bf16.gmra.mxu0 %v2243
        %v2324 = vpop.f32.mrf.mxu0
        %v2325 = vadd.f32 0.0, %v2324
        %v2326 = vpop.f32.mrf.mxu0
        %v2327 = vpop.f32.mrf.mxu0
        %v2328 = vadd.f32 0.0, %v2327
        %v2329 = vpop.f32.mrf.mxu0
        %2330 = vmatprep.mubr.bf16.mxu0 0
        %2331 = vmatmul.mubr.bf16.gmra.mxu0 %v2246
        %v2332 = vpop.f32.mrf.mxu0
        %v2333 = vadd.f32 0.0, %v2332
        %v2334 = vpop.f32.mrf.mxu0
        %v2335 = vpop.f32.mrf.mxu0
        %v2336 = vadd.f32 0.0, %v2335
        %v2337 = vpop.f32.mrf.mxu0
        %2338 = vmatprep.mubr.bf16.mxu0 0
        %2339 = vmatmul.mubr.bf16.gmra.mxu0 %v2249
        %v2340 = vpop.f32.mrf.mxu0
        %v2341 = vadd.f32 0.0, %v2340
        %v2342 = vpop.f32.mrf.mxu0
        %v2343 = vpop.f32.mrf.mxu0
        %v2344 = vadd.f32 0.0, %v2343
        %v2345 = vpop.f32.mrf.mxu0
        %2346 = vmatprep.mubr.bf16.mxu0 0
        %2347 = vmatmul.mubr.bf16.gmra.mxu0 %v2252
        %v2348 = vpop.f32.mrf.mxu0
        %v2349 = vadd.f32 0.0, %v2348
        %v2350 = vpop.f32.mrf.mxu0
        %v2351 = vpop.f32.mrf.mxu0
        %v2352 = vadd.f32 0.0, %v2351
        %v2353 = vpop.f32.mrf.mxu0
        %2354 = vmatprep.mubr.bf16.mxu0 0
        %2355 = vmatmul.mubr.bf16.gmra.mxu0 %v2255
        %v2356 = vpop.f32.mrf.mxu0
        %v2357 = vadd.f32 0.0, %v2356
        %v2358 = vpop.f32.mrf.mxu0
        %v2359 = vpop.f32.mrf.mxu0
        %v2360 = vadd.f32 0.0, %v2359
        %v2361 = vpop.f32.mrf.mxu0
        %2362 = vmatprep.mubr.bf16.mxu0 0
        %2363 = vmatmul.mubr.bf16.gmra.mxu0 %v2258
        %v2364 = vpop.f32.mrf.mxu0
        %v2365 = vadd.f32 0.0, %v2364
        %v2366 = vpop.f32.mrf.mxu0
        %v2367 = vpop.f32.mrf.mxu0
        %v2368 = vadd.f32 0.0, %v2367
        %v2369 = vpop.f32.mrf.mxu0
        %2370 = vmatprep.mubr.bf16.mxu0 0
        %2371 = vmatmul.mubr.bf16.gmra.mxu0 %v2261
        %v2372 = vpop.f32.mrf.mxu0
        %v2373 = vadd.f32 0.0, %v2372
        %v2374 = vpop.f32.mrf.mxu0
        %v2375 = vpop.f32.mrf.mxu0
        %v2376 = vadd.f32 0.0, %v2375
        %v2377 = vpop.f32.mrf.mxu0
        %2378 = vmatprep.mubr.bf16.mxu0 0
        %2379 = vmatmul.mubr.bf16.gmra.mxu0 %v2264
        %v2380 = vpop.f32.mrf.mxu0
        %v2381 = vadd.f32 0.0, %v2380
        %v2382 = vpop.f32.mrf.mxu0
        %v2383 = vpop.f32.mrf.mxu0
        %v2384 = vadd.f32 0.0, %v2383
        %v2385 = vpop.f32.mrf.mxu0
        %2386 = vmatprep.mubr.bf16.mxu0 0
        %2387 = vmatmul.mubr.bf16.gmra.mxu0 %v2267
        %v2388 = vpop.f32.mrf.mxu0
        %v2389 = vadd.f32 0.0, %v2388
        %v2390 = vpop.f32.mrf.mxu0
        %v2391 = vpop.f32.mrf.mxu0
        %v2392 = vadd.f32 0.0, %v2391
        %v2393 = vpop.f32.mrf.mxu0
        %2394 = vmatprep.mubr.bf16.mxu0 0
        %2395 = vmatmul.mubr.bf16.gmra.mxu0 %v2270
        %v2396 = vpop.f32.mrf.mxu0
        %v2397 = vadd.f32 0.0, %v2396
        %v2398 = vpop.f32.mrf.mxu0
        %v2399 = vpop.f32.mrf.mxu0
        %v2400 = vadd.f32 0.0, %v2399
        %v2401 = vpop.f32.mrf.mxu0
        %2402 = vmatprep.mubr.bf16.mxu0 0
        %2403 = vmatmul.mubr.bf16.gmra.mxu0 %v2273
        %v2404 = vpop.f32.mrf.mxu0
        %v2405 = vadd.f32 0.0, %v2404
        %v2406 = vpop.f32.mrf.mxu0
        %v2407 = vpop.f32.mrf.mxu0
        %v2408 = vadd.f32 0.0, %v2407
        %v2409 = vpop.f32.mrf.mxu0
        %2410 = vmatprep.mubr.bf16.mxu0 0
        %2411 = vmatmul.mubr.bf16.gmra.mxu0 %v2276
        %v2412 = vpop.f32.mrf.mxu0
        %v2413 = vadd.f32 0.0, %v2412
        %v2414 = vpop.f32.mrf.mxu0
        %v2415 = vpop.f32.mrf.mxu0
        %v2416 = vadd.f32 0.0, %v2415
        %v2417 = vpop.f32.mrf.mxu0
        %2418 = vmatprep.mubr.bf16.mxu0 0
        %2419 = vmatmul.mubr.bf16.gmra.mxu0 %v2279
        %v2420 = vpop.f32.mrf.mxu0
        %v2421 = vadd.f32 0.0, %v2420
        %v2422 = vpop.f32.mrf.mxu0
        %v2423 = vpop.f32.mrf.mxu0
        %v2424 = vadd.f32 0.0, %v2423
        %v2425 = vpop.f32.mrf.mxu0
        %2426 = vmatprep.mubr.bf16.mxu0 0
        %2427 = vmatmul.mubr.bf16.gmra.mxu0 %v2282
        %v2428 = vpop.f32.mrf.mxu0
        %v2429 = vadd.f32 0.0, %v2428
        %v2430 = vpop.f32.mrf.mxu0
        %v2431 = vpop.f32.mrf.mxu0
        %v2432 = vadd.f32 0.0, %v2431
        %v2433 = vpop.f32.mrf.mxu0
        %2434 = vmatprep.mubr.bf16.mxu0 0
        %2435 = vmatmul.mubr.bf16.gmra.mxu0 %v2285
        %v2436 = vpop.f32.mrf.mxu0
        %v2437 = vadd.f32 0.0, %v2436
        %v2438 = vpop.f32.mrf.mxu0
        %v2439 = vpop.f32.mrf.mxu0
        %v2440 = vadd.f32 0.0, %v2439
        %v2441 = vpop.f32.mrf.mxu0
        %2442 = vmatprep.mubr.bf16.mxu0 0
        %2443 = vmatmul.mubr.bf16.gmra.mxu0 %v2288
        %v2444 = vpop.f32.mrf.mxu0
        %v2445 = vadd.f32 0.0, %v2444
        %v2446 = vpop.f32.mrf.mxu0
        %v2447 = vpop.f32.mrf.mxu0
        %v2448 = vadd.f32 0.0, %v2447
        %v2449 = vpop.f32.mrf.mxu0
        %2450 = vdwg.mxu0
        %v2463 = vunpack.c.l.b16 %v1292
        %v2464 = vunpack.c.l.b16 %v1293
        %v2465 = vunpack.c.l.b16 %v1294
        %v2466 = vunpack.c.l.b16 %v1295
        %v2467 = vunpack.c.l.b16 %v1296
        %v2468 = vunpack.c.l.b16 %v1297
        %v2469 = vunpack.c.l.b16 %v1298
        %v2470 = vunpack.c.l.b16 %v1299
        %v2471 = vunpack.c.l.b16 %v1300
        %v2472 = vunpack.c.l.b16 %v1301
        %v2473 = vunpack.c.l.b16 %v1302
        %v2474 = vunpack.c.l.b16 %v1303
        %v2475 = vpack.c.b16 %v2464, %v2463
        %v2476 = vpack.c.b16 %v2466, %v2465
        %v2477 = vpack.c.b16 %v2468, %v2467
        %v2478 = vpack.c.b16 %v2470, %v2469
        %v2479 = vpack.c.b16 %v2472, %v2471
        %v2480 = vpack.c.b16 %v2474, %v2473
        %v2488 = vsel %vm2241, %v1932, 0
        %2490 = vmatprep.subr.bf16.mxu0 0
        %2491 = vmatpush1.bf16.msra.mxu0 0
        %2492 = vmatprep.subr.bf16.mxu0 0
        %2493 = vmatpush1.bf16.msra.mxu0 0
        %2494 = vmatprep.subr.bf16.mxu0 0
        %2495 = vmatpush1.bf16.msra.mxu0 %v2480
        %2496 = vmatprep.subr.bf16.mxu0 0
        %2497 = vmatpush1.bf16.msra.mxu0 %v2479
        %2498 = vmatprep.subr.bf16.mxu0 0
        %2499 = vmatpush1.bf16.msra.mxu0 %v2478
        %2500 = vmatprep.subr.bf16.mxu0 0
        %2501 = vmatpush1.bf16.msra.mxu0 %v2477
        %2502 = vmatprep.subr.bf16.mxu0 0
        %2503 = vmatpush1.bf16.msra.mxu0 %v2476
        %2504 = vmatprep.subr.bf16.mxu0 0
        %2505 = vmatpush1.bf16.msra.mxu0 %v2475
        %2506 = vmatprep.subr.bf16.mxu0 0
        %2507 = vmatpush2.bf16.msra.mxu0 0
        %2508 = vmatprep.subr.bf16.mxu0 0
        %2509 = vmatpush2.bf16.msra.mxu0 0
        %2510 = vmatprep.subr.bf16.mxu0 0
        %2511 = vmatpush2.bf16.msra.mxu0 0
        %2512 = vmatprep.subr.bf16.mxu0 0
        %2513 = vmatpush2.bf16.msra.mxu0 0
        %2514 = vmatprep.subr.bf16.mxu0 0
        %2515 = vmatpush2.bf16.msra.mxu0 0
        %2516 = vmatprep.subr.bf16.mxu0 0
        %2517 = vmatpush2.bf16.msra.mxu0 0
        %2518 = vmatprep.subr.bf16.mxu0 0
        %2519 = vmatpush2.bf16.msra.mxu0 0
        %2520 = vmatprep.subr.bf16.mxu0 0
        %2521 = vmatpush2.bf16.msra.mxu0 0
        %2522 = vmatprep.mubr.bf16.mxu0 0
        %2523 = vmatmul.mubr.bf16.gmra.mxu0 %v2488
        %v2524 = vpop.f32.mrf.mxu0
        %v2525 = vadd.f32 %v2325, %v2524
        %v2526 = vpop.f32.mrf.mxu0
        %v2527 = vpop.f32.mrf.mxu0
        %v2528 = vadd.f32 %v2328, %v2527
        %v2529 = vpop.f32.mrf.mxu0
        %2530 = vmatprep.mubr.bf16.mxu0 0
        %2531 = vmatmul.mubr.bf16.gmra.mxu0 %v2243
        %v2532 = vpop.f32.mrf.mxu0
        %v2533 = vadd.f32 %v2333, %v2532
        %v2534 = vpop.f32.mrf.mxu0
        %v2535 = vpop.f32.mrf.mxu0
        %v2536 = vadd.f32 %v2336, %v2535
        %v2537 = vpop.f32.mrf.mxu0
        %2538 = vmatprep.mubr.bf16.mxu0 0
        %2539 = vmatmul.mubr.bf16.gmra.mxu0 %v2246
        %v2540 = vpop.f32.mrf.mxu0
        %v2541 = vadd.f32 %v2341, %v2540
        %v2542 = vpop.f32.mrf.mxu0
        %v2543 = vpop.f32.mrf.mxu0
        %v2544 = vadd.f32 %v2344, %v2543
        %v2545 = vpop.f32.mrf.mxu0
        %2546 = vmatprep.mubr.bf16.mxu0 0
        %2547 = vmatmul.mubr.bf16.gmra.mxu0 %v2249
        %v2548 = vpop.f32.mrf.mxu0
        %v2549 = vadd.f32 %v2349, %v2548
        %v2550 = vpop.f32.mrf.mxu0
        %v2551 = vpop.f32.mrf.mxu0
        %v2552 = vadd.f32 %v2352, %v2551
        %v2553 = vpop.f32.mrf.mxu0
        %2554 = vmatprep.mubr.bf16.mxu0 0
        %2555 = vmatmul.mubr.bf16.gmra.mxu0 %v2252
        %v2556 = vpop.f32.mrf.mxu0
        %v2557 = vadd.f32 %v2357, %v2556
        %v2558 = vpop.f32.mrf.mxu0
        %v2559 = vpop.f32.mrf.mxu0
        %v2560 = vadd.f32 %v2360, %v2559
        %v2561 = vpop.f32.mrf.mxu0
        %2562 = vmatprep.mubr.bf16.mxu0 0
        %2563 = vmatmul.mubr.bf16.gmra.mxu0 %v2255
        %v2564 = vpop.f32.mrf.mxu0
        %v2565 = vadd.f32 %v2365, %v2564
        %v2566 = vpop.f32.mrf.mxu0
        %v2567 = vpop.f32.mrf.mxu0
        %v2568 = vadd.f32 %v2368, %v2567
        %v2569 = vpop.f32.mrf.mxu0
        %2570 = vmatprep.mubr.bf16.mxu0 0
        %2571 = vmatmul.mubr.bf16.gmra.mxu0 %v2258
        %v2572 = vpop.f32.mrf.mxu0
        %v2573 = vadd.f32 %v2373, %v2572
        %v2574 = vpop.f32.mrf.mxu0
        %v2575 = vpop.f32.mrf.mxu0
        %v2576 = vadd.f32 %v2376, %v2575
        %v2577 = vpop.f32.mrf.mxu0
        %2578 = vmatprep.mubr.bf16.mxu0 0
        %2579 = vmatmul.mubr.bf16.gmra.mxu0 %v2261
        %v2580 = vpop.f32.mrf.mxu0
        %v2581 = vadd.f32 %v2381, %v2580
        %v2582 = vpop.f32.mrf.mxu0
        %v2583 = vpop.f32.mrf.mxu0
        %v2584 = vadd.f32 %v2384, %v2583
        %v2585 = vpop.f32.mrf.mxu0
        %2586 = vmatprep.mubr.bf16.mxu0 0
        %2587 = vmatmul.mubr.bf16.gmra.mxu0 %v2264
        %v2588 = vpop.f32.mrf.mxu0
        %v2589 = vadd.f32 %v2389, %v2588
        %v2590 = vpop.f32.mrf.mxu0
        %v2591 = vpop.f32.mrf.mxu0
        %v2592 = vadd.f32 %v2392, %v2591
        %v2593 = vpop.f32.mrf.mxu0
        %2594 = vmatprep.mubr.bf16.mxu0 0
        %2595 = vmatmul.mubr.bf16.gmra.mxu0 %v2267
        %v2596 = vpop.f32.mrf.mxu0
        %v2597 = vadd.f32 %v2397, %v2596
        %v2598 = vpop.f32.mrf.mxu0
        %v2599 = vpop.f32.mrf.mxu0
        %v2600 = vadd.f32 %v2400, %v2599
        %v2601 = vpop.f32.mrf.mxu0
        %2602 = vmatprep.mubr.bf16.mxu0 0
        %2603 = vmatmul.mubr.bf16.gmra.mxu0 %v2270
        %v2604 = vpop.f32.mrf.mxu0
        %v2605 = vadd.f32 %v2405, %v2604
        %v2606 = vpop.f32.mrf.mxu0
        %v2607 = vpop.f32.mrf.mxu0
        %v2608 = vadd.f32 %v2408, %v2607
        %v2609 = vpop.f32.mrf.mxu0
        %2610 = vmatprep.mubr.bf16.mxu0 0
        %2611 = vmatmul.mubr.bf16.gmra.mxu0 %v2273
        %v2612 = vpop.f32.mrf.mxu0
        %v2613 = vadd.f32 %v2413, %v2612
        %v2614 = vpop.f32.mrf.mxu0
        %v2615 = vpop.f32.mrf.mxu0
        %v2616 = vadd.f32 %v2416, %v2615
        %v2617 = vpop.f32.mrf.mxu0
        %2618 = vmatprep.mubr.bf16.mxu0 0
        %2619 = vmatmul.mubr.bf16.gmra.mxu0 %v2276
        %v2620 = vpop.f32.mrf.mxu0
        %v2621 = vadd.f32 %v2421, %v2620
        %v2622 = vpop.f32.mrf.mxu0
        %v2623 = vpop.f32.mrf.mxu0
        %v2624 = vadd.f32 %v2424, %v2623
        %v2625 = vpop.f32.mrf.mxu0
        %2626 = vmatprep.mubr.bf16.mxu0 0
        %2627 = vmatmul.mubr.bf16.gmra.mxu0 %v2279
        %v2628 = vpop.f32.mrf.mxu0
        %v2629 = vadd.f32 %v2429, %v2628
        %v2630 = vpop.f32.mrf.mxu0
        %v2631 = vpop.f32.mrf.mxu0
        %v2632 = vadd.f32 %v2432, %v2631
        %v2633 = vpop.f32.mrf.mxu0
        %2634 = vmatprep.mubr.bf16.mxu0 0
        %2635 = vmatmul.mubr.bf16.gmra.mxu0 %v2282
        %v2636 = vpop.f32.mrf.mxu0
        %v2637 = vadd.f32 %v2437, %v2636
        %v2638 = vpop.f32.mrf.mxu0
        %v2639 = vpop.f32.mrf.mxu0
        %v2640 = vadd.f32 %v2440, %v2639
        %v2641 = vpop.f32.mrf.mxu0
        %2642 = vmatprep.mubr.bf16.mxu0 0
        %2643 = vmatmul.mubr.bf16.gmra.mxu0 %v2285
        %v2644 = vpop.f32.mrf.mxu0
        %v2645 = vadd.f32 %v2445, %v2644
        %v2646 = vpop.f32.mrf.mxu0
        %v2647 = vpop.f32.mrf.mxu0
        %v2648 = vadd.f32 %v2448, %v2647
        %v2649 = vpop.f32.mrf.mxu0
        %2650 = vdwg.mxu0
        %v2663 = vunpack.c.l.b16 %v1316
        %v2664 = vunpack.c.l.b16 %v1317
        %v2665 = vunpack.c.l.b16 %v1318
        %v2666 = vunpack.c.l.b16 %v1319
        %v2667 = vunpack.c.l.b16 %v1320
        %v2668 = vunpack.c.l.b16 %v1321
        %v2669 = vunpack.c.l.b16 %v1322
        %v2670 = vunpack.c.l.b16 %v1323
        %v2671 = vunpack.c.l.b16 %v1324
        %v2672 = vunpack.c.l.b16 %v1325
        %v2673 = vunpack.c.l.b16 %v1326
        %v2674 = vunpack.c.l.b16 %v1327
        %v2675 = vpack.c.b16 %v2664, %v2663
        %v2676 = vpack.c.b16 %v2666, %v2665
        %v2677 = vpack.c.b16 %v2668, %v2667
        %v2678 = vpack.c.b16 %v2670, %v2669
        %v2679 = vpack.c.b16 %v2672, %v2671
        %v2680 = vpack.c.b16 %v2674, %v2673
        %2687 = vmatprep.subr.bf16.mxu0 0
        %2688 = vmatpush1.bf16.msra.mxu0 0
        %2689 = vmatprep.subr.bf16.mxu0 0
        %2690 = vmatpush1.bf16.msra.mxu0 0
        %2691 = vmatprep.subr.bf16.mxu0 0
        %2692 = vmatpush1.bf16.msra.mxu0 %v2680
        %2693 = vmatprep.subr.bf16.mxu0 0
        %2694 = vmatpush1.bf16.msra.mxu0 %v2679
        %2695 = vmatprep.subr.bf16.mxu0 0
        %2696 = vmatpush1.bf16.msra.mxu0 %v2678
        %2697 = vmatprep.subr.bf16.mxu0 0
        %2698 = vmatpush1.bf16.msra.mxu0 %v2677
        %2699 = vmatprep.subr.bf16.mxu0 0
        %2700 = vmatpush1.bf16.msra.mxu0 %v2676
        %2701 = vmatprep.subr.bf16.mxu0 0
        %2702 = vmatpush1.bf16.msra.mxu0 %v2675
        %2703 = vmatprep.subr.bf16.mxu0 0
        %2704 = vmatpush2.bf16.msra.mxu0 0
        %2705 = vmatprep.subr.bf16.mxu0 0
        %2706 = vmatpush2.bf16.msra.mxu0 0
        %2707 = vmatprep.subr.bf16.mxu0 0
        %2708 = vmatpush2.bf16.msra.mxu0 0
        %2709 = vmatprep.subr.bf16.mxu0 0
        %2710 = vmatpush2.bf16.msra.mxu0 0
        %2711 = vmatprep.subr.bf16.mxu0 0
        %2712 = vmatpush2.bf16.msra.mxu0 0
        %2713 = vmatprep.subr.bf16.mxu0 0
        %2714 = vmatpush2.bf16.msra.mxu0 0
        %2715 = vmatprep.subr.bf16.mxu0 0
        %2716 = vmatpush2.bf16.msra.mxu0 0
        %2717 = vmatprep.subr.bf16.mxu0 0
        %2718 = vmatpush2.bf16.msra.mxu0 0
        %2719 = vmatprep.mubr.bf16.mxu0 0
        %2720 = vmatmul.mubr.bf16.gmra.mxu0 %v2246
        %v2721 = vpop.f32.mrf.mxu0
        %v2722 = vadd.f32 0.0, %v2721
        %v2723 = vpop.f32.mrf.mxu0
        %v2724 = vpop.f32.mrf.mxu0
        %v2725 = vadd.f32 0.0, %v2724
        %v2726 = vpop.f32.mrf.mxu0
        %2727 = vmatprep.mubr.bf16.mxu0 0
        %2728 = vmatmul.mubr.bf16.gmra.mxu0 %v2249
        %v2729 = vpop.f32.mrf.mxu0
        %v2730 = vadd.f32 0.0, %v2729
        %v2731 = vpop.f32.mrf.mxu0
        %v2732 = vpop.f32.mrf.mxu0
        %v2733 = vadd.f32 0.0, %v2732
        %v2734 = vpop.f32.mrf.mxu0
        %2735 = vmatprep.mubr.bf16.mxu0 0
        %2736 = vmatmul.mubr.bf16.gmra.mxu0 %v2252
        %v2737 = vpop.f32.mrf.mxu0
        %v2738 = vadd.f32 0.0, %v2737
        %v2739 = vpop.f32.mrf.mxu0
        %v2740 = vpop.f32.mrf.mxu0
        %v2741 = vadd.f32 0.0, %v2740
        %v2742 = vpop.f32.mrf.mxu0
        %2743 = vmatprep.mubr.bf16.mxu0 0
        %2744 = vmatmul.mubr.bf16.gmra.mxu0 %v2255
        %v2745 = vpop.f32.mrf.mxu0
        %v2746 = vadd.f32 0.0, %v2745
        %v2747 = vpop.f32.mrf.mxu0
        %v2748 = vpop.f32.mrf.mxu0
        %v2749 = vadd.f32 0.0, %v2748
        %v2750 = vpop.f32.mrf.mxu0
        %2751 = vmatprep.mubr.bf16.mxu0 0
        %2752 = vmatmul.mubr.bf16.gmra.mxu0 %v2258
        %v2753 = vpop.f32.mrf.mxu0
        %v2754 = vadd.f32 0.0, %v2753
        %v2755 = vpop.f32.mrf.mxu0
        %v2756 = vpop.f32.mrf.mxu0
        %v2757 = vadd.f32 0.0, %v2756
        %v2758 = vpop.f32.mrf.mxu0
        %2759 = vmatprep.mubr.bf16.mxu0 0
        %2760 = vmatmul.mubr.bf16.gmra.mxu0 %v2261
        %v2761 = vpop.f32.mrf.mxu0
        %v2762 = vadd.f32 0.0, %v2761
        %v2763 = vpop.f32.mrf.mxu0
        %v2764 = vpop.f32.mrf.mxu0
        %v2765 = vadd.f32 0.0, %v2764
        %v2766 = vpop.f32.mrf.mxu0
        %2767 = vmatprep.mubr.bf16.mxu0 0
        %2768 = vmatmul.mubr.bf16.gmra.mxu0 %v2264
        %v2769 = vpop.f32.mrf.mxu0
        %v2770 = vadd.f32 0.0, %v2769
        %v2771 = vpop.f32.mrf.mxu0
        %v2772 = vpop.f32.mrf.mxu0
        %v2773 = vadd.f32 0.0, %v2772
        %v2774 = vpop.f32.mrf.mxu0
        %2775 = vmatprep.mubr.bf16.mxu0 0
        %2776 = vmatmul.mubr.bf16.gmra.mxu0 %v2267
        %v2777 = vpop.f32.mrf.mxu0
        %v2778 = vadd.f32 0.0, %v2777
        %v2779 = vpop.f32.mrf.mxu0
        %v2780 = vpop.f32.mrf.mxu0
        %v2781 = vadd.f32 0.0, %v2780
        %v2782 = vpop.f32.mrf.mxu0
        %2783 = vmatprep.mubr.bf16.mxu0 0
        %2784 = vmatmul.mubr.bf16.gmra.mxu0 %v2270
        %v2785 = vpop.f32.mrf.mxu0
        %v2786 = vadd.f32 0.0, %v2785
        %v2787 = vpop.f32.mrf.mxu0
        %v2788 = vpop.f32.mrf.mxu0
        %v2789 = vadd.f32 0.0, %v2788
        %v2790 = vpop.f32.mrf.mxu0
        %2791 = vmatprep.mubr.bf16.mxu0 0
        %2792 = vmatmul.mubr.bf16.gmra.mxu0 %v2273
        %v2793 = vpop.f32.mrf.mxu0
        %v2794 = vadd.f32 0.0, %v2793
        %v2795 = vpop.f32.mrf.mxu0
        %v2796 = vpop.f32.mrf.mxu0
        %v2797 = vadd.f32 0.0, %v2796
        %v2798 = vpop.f32.mrf.mxu0
        %2799 = vmatprep.mubr.bf16.mxu0 0
        %2800 = vmatmul.mubr.bf16.gmra.mxu0 %v2276
        %v2801 = vpop.f32.mrf.mxu0
        %v2802 = vadd.f32 0.0, %v2801
        %v2803 = vpop.f32.mrf.mxu0
        %v2804 = vpop.f32.mrf.mxu0
        %v2805 = vadd.f32 0.0, %v2804
        %v2806 = vpop.f32.mrf.mxu0
        %2807 = vmatprep.mubr.bf16.mxu0 0
        %2808 = vmatmul.mubr.bf16.gmra.mxu0 %v2279
        %v2809 = vpop.f32.mrf.mxu0
        %v2810 = vadd.f32 0.0, %v2809
        %v2811 = vpop.f32.mrf.mxu0
        %v2812 = vpop.f32.mrf.mxu0
        %v2813 = vadd.f32 0.0, %v2812
        %v2814 = vpop.f32.mrf.mxu0
        %2815 = vmatprep.mubr.bf16.mxu0 0
        %2816 = vmatmul.mubr.bf16.gmra.mxu0 %v2282
        %v2817 = vpop.f32.mrf.mxu0
        %v2818 = vadd.f32 0.0, %v2817
        %v2819 = vpop.f32.mrf.mxu0
        %v2820 = vpop.f32.mrf.mxu0
        %v2821 = vadd.f32 0.0, %v2820
        %v2822 = vpop.f32.mrf.mxu0
        %2823 = vmatprep.mubr.bf16.mxu0 0
        %2824 = vmatmul.mubr.bf16.gmra.mxu0 %v2285
        %v2825 = vpop.f32.mrf.mxu0
        %v2826 = vadd.f32 0.0, %v2825
        %v2827 = vpop.f32.mrf.mxu0
        %v2828 = vpop.f32.mrf.mxu0
        %v2829 = vadd.f32 0.0, %v2828
        %v2830 = vpop.f32.mrf.mxu0
        %2831 = vmatprep.mubr.bf16.mxu0 0
        %2832 = vmatmul.mubr.bf16.gmra.mxu0 %v2288
        %v2833 = vpop.f32.mrf.mxu0
        %v2834 = vadd.f32 0.0, %v2833
        %v2835 = vpop.f32.mrf.mxu0
        %v2836 = vpop.f32.mrf.mxu0
        %v2837 = vadd.f32 0.0, %v2836
        %v2838 = vpop.f32.mrf.mxu0
        %2839 = vmatprep.mubr.bf16.mxu0 0
        %2840 = vmatmul.mubr.bf16.gmra.mxu0 %v2488
        %v2841 = vpop.f32.mrf.mxu0
        %v2842 = vadd.f32 0.0, %v2841
        %v2843 = vpop.f32.mrf.mxu0
        %v2844 = vpop.f32.mrf.mxu0
        %v2845 = vadd.f32 0.0, %v2844
        %v2846 = vpop.f32.mrf.mxu0
        %2847 = vdwg.mxu0
        %v2848 = vadd.f32 %v2525, %v2722
        %v2849 = vadd.f32 %v2528, %v2725
        %v2850 = vadd.f32 %v2533, %v2730
        %v2851 = vadd.f32 %v2536, %v2733
        %v2852 = vadd.f32 %v2541, %v2738
        %v2853 = vadd.f32 %v2544, %v2741
        %v2854 = vadd.f32 %v2549, %v2746
        %v2855 = vadd.f32 %v2552, %v2749
        %v2856 = vadd.f32 %v2557, %v2754
        %v2857 = vadd.f32 %v2560, %v2757
        %v2858 = vadd.f32 %v2565, %v2762
        %v2859 = vadd.f32 %v2568, %v2765
        %v2860 = vadd.f32 %v2573, %v2770
        %v2861 = vadd.f32 %v2576, %v2773
        %v2862 = vadd.f32 %v2581, %v2778
        %v2863 = vadd.f32 %v2584, %v2781
        %v2864 = vadd.f32 %v2589, %v2786
        %v2865 = vadd.f32 %v2592, %v2789
        %v2866 = vadd.f32 %v2597, %v2794
        %v2867 = vadd.f32 %v2600, %v2797
        %v2868 = vadd.f32 %v2605, %v2802
        %v2869 = vadd.f32 %v2608, %v2805
        %v2870 = vadd.f32 %v2613, %v2810
        %v2871 = vadd.f32 %v2616, %v2813
        %v2872 = vadd.f32 %v2621, %v2818
        %v2873 = vadd.f32 %v2624, %v2821
        %v2874 = vadd.f32 %v2629, %v2826
        %v2875 = vadd.f32 %v2632, %v2829
        %v2876 = vadd.f32 %v2637, %v2834
        %v2877 = vadd.f32 %v2640, %v2837
        %v2878 = vadd.f32 %v2645, %v2842
        %v2879 = vadd.f32 %v2648, %v2845
        %v2880 = vld [vmem:[%s398] sm:$0x1]
        %v2882 = vlaneseq
        %v2883 = vshrl.u32 %v2882, 7
        %v2884 = vsub.s32 0, %v2883
        %v2885 = vrot.slane %v2880, %v2884
        %v2887 = vadd.f32 %v2848, %v2885
        %v2888 = vadd.f32 %v2849, %v2885
        %v2889 = vadd.f32 %v2850, %v2885
        %v2890 = vadd.f32 %v2851, %v2885
        %v2891 = vadd.f32 %v2852, %v2885
        %v2892 = vadd.f32 %v2853, %v2885
        %v2893 = vadd.f32 %v2854, %v2885
        %v2894 = vadd.f32 %v2855, %v2885
        %v2895 = vadd.f32 %v2856, %v2885
        %v2896 = vadd.f32 %v2857, %v2885
        %v2897 = vadd.f32 %v2858, %v2885
        %v2898 = vadd.f32 %v2859, %v2885
        %v2899 = vadd.f32 %v2860, %v2885
        %v2900 = vadd.f32 %v2861, %v2885
        %v2901 = vadd.f32 %v2862, %v2885
        %v2902 = vadd.f32 %v2863, %v2885
        %v2903 = vadd.f32 %v2864, %v2885
        %v2904 = vadd.f32 %v2865, %v2885
        %v2905 = vadd.f32 %v2866, %v2885
        %v2906 = vadd.f32 %v2867, %v2885
        %v2907 = vadd.f32 %v2868, %v2885
        %v2908 = vadd.f32 %v2869, %v2885
        %v2909 = vadd.f32 %v2870, %v2885
        %v2910 = vadd.f32 %v2871, %v2885
        %v2911 = vadd.f32 %v2872, %v2885
        %v2912 = vadd.f32 %v2873, %v2885
        %v2913 = vadd.f32 %v2874, %v2885
        %v2914 = vadd.f32 %v2875, %v2885
        %v2915 = vadd.f32 %v2876, %v2885
        %v2916 = vadd.f32 %v2877, %v2885
        %v2917 = vadd.f32 %v2878, %v2885
        %v2918 = vadd.f32 %v2879, %v2885
        %v2919 = vld [vmem:[%s5] sm:$0x1]
        %v2920 = vld [vmem:[%s6] sm:$0x1]
        %v2921 = vadd.s32 %v435, 32
        %v2922 = vadd.s32 %v435, 40
        %v2923 = vadd.s32 %v435, 48
        %v2924 = vadd.s32 %v435, 56
        %v2925 = vmul.u32 %v440, 2
        %vm2926 = vcmp.ge.s32.totalorder %v435, %v2925
        %vm2927 = vcmp.ge.s32.totalorder %v436, %v2925
        %vm2928 = vcmp.ge.s32.totalorder %v437, %v2925
        %vm2929 = vcmp.ge.s32.totalorder %v438, %v2925
        %vm2930 = vcmp.ge.s32.totalorder %v2921, %v2925
        %vm2931 = vcmp.ge.s32.totalorder %v2922, %v2925
        %vm2932 = vcmp.ge.s32.totalorder %v2923, %v2925
        %vm2933 = vcmp.ge.s32.totalorder %v2924, %v2925
        %v2934 = vadd.s32 %v2925, 2
        %vm2935 = vcmp.lt.s32.totalorder %v435, %v2934
        %vm2936 = vcmp.lt.s32.totalorder %v436, %v2934
        %vm2937 = vcmp.lt.s32.totalorder %v437, %v2934
        %vm2938 = vcmp.lt.s32.totalorder %v438, %v2934
        %vm2939 = vcmp.lt.s32.totalorder %v2921, %v2934
        %vm2940 = vcmp.lt.s32.totalorder %v2922, %v2934
        %vm2941 = vcmp.lt.s32.totalorder %v2923, %v2934
        %vm2942 = vcmp.lt.s32.totalorder %v2924, %v2934
        %vm2943 = vmand %vm2926, %vm2935
        %vm2944 = vmand %vm2927, %vm2936
        %vm2945 = vmand %vm2928, %vm2937
        %vm2946 = vmand %vm2929, %vm2938
        %vm2947 = vmand %vm2930, %vm2939
        %vm2948 = vmand %vm2931, %vm2940
        %vm2949 = vmand %vm2932, %vm2941
        %vm2950 = vmand %vm2933, %vm2942
        %v2951 = vsel %vm2943, 1, 0
        %v2952 = vsel %vm2944, 1, 0
        %v2953 = vsel %vm2945, 1, 0
        %v2954 = vsel %vm2946, 1, 0
        %v2955 = vsel %vm2947, 1, 0
        %v2956 = vsel %vm2948, 1, 0
        %v2957 = vsel %vm2949, 1, 0
        %v2958 = vsel %vm2950, 1, 0
        %v2959 = vcvt.s32.f32 %v2951
        %v2960 = vcvt.s32.f32 %v2952
        %v2961 = vcvt.s32.f32 %v2953
        %v2962 = vcvt.s32.f32 %v2954
        %v2963 = vcvt.s32.f32 %v2955
        %v2964 = vcvt.s32.f32 %v2956
        %v2965 = vcvt.s32.f32 %v2957
        %v2966 = vcvt.s32.f32 %v2958
        %v2967 = vmul.u32 %v435, 2
        %v2968 = vmul.u32 %v436, 2
        %v2969 = vmul.u32 %v437, 2
        %v2970 = vmul.u32 %v438, 2
        %vm2971 = vcmp.ge.s32.totalorder %v440, %v2967
        %vm2972 = vcmp.ge.s32.totalorder %v440, %v2968
        %vm2973 = vcmp.ge.s32.totalorder %v440, %v2969
        %vm2974 = vcmp.ge.s32.totalorder %v440, %v2970
        %v2975 = vadd.s32 %v2967, 2
        %v2976 = vadd.s32 %v2968, 2
        %v2977 = vadd.s32 %v2969, 2
        %v2978 = vadd.s32 %v2970, 2
        %vm2979 = vcmp.lt.s32.totalorder %v440, %v2975
        %vm2980 = vcmp.lt.s32.totalorder %v440, %v2976
        %vm2981 = vcmp.lt.s32.totalorder %v440, %v2977
        %vm2982 = vcmp.lt.s32.totalorder %v440, %v2978
        %vm2983 = vmand %vm2971, %vm2979
        %vm2984 = vmand %vm2972, %vm2980
        %vm2985 = vmand %vm2973, %vm2981
        %vm2986 = vmand %vm2974, %vm2982
        %v2987 = vsel %vm2983, 1, 0
        %v2988 = vsel %vm2984, 1, 0
        %v2989 = vsel %vm2985, 1, 0
        %v2990 = vsel %vm2986, 1, 0
        %v2991 = vcvt.s32.f32 %v2987
        %v2992 = vcvt.s32.f32 %v2988
        %v2993 = vcvt.s32.f32 %v2989
        %v2994 = vcvt.s32.f32 %v2990
        %v2995 = vsel %vm1829, %v2887, 0.0
        %v2996 = vsel %vm1829, %v2888, 0.0
        %v2997 = vadd.f32 %v2995, %v2996
        %v2998 = vsel %vm1829, %v2889, 0.0
        %v2999 = vadd.f32 %v2997, %v2998
        %v3000 = vsel %vm1829, %v2890, 0.0
        %v3001 = vadd.f32 %v2999, %v3000
        %v3002 = vsel %vm1829, %v2891, 0.0
        %v3003 = vadd.f32 %v3001, %v3002
        %v3004 = vsel %vm1829, %v2892, 0.0
        %v3005 = vadd.f32 %v3003, %v3004
        %v3006 = vsel %vm1829, %v2893, 0.0
        %v3007 = vadd.f32 %v3005, %v3006
        %v3008 = vsel %vm1829, %v2894, 0.0
        %v3009 = vadd.f32 %v3007, %v3008
        %v3010 = vsel %vm1829, %v2895, 0.0
        %v3011 = vadd.f32 %v3009, %v3010
        %v3012 = vsel %vm1829, %v2896, 0.0
        %v3013 = vadd.f32 %v3011, %v3012
        %v3014 = vsel %vm1829, %v2897, 0.0
        %v3015 = vadd.f32 %v3013, %v3014
        %v3016 = vsel %vm1829, %v2898, 0.0
        %v3017 = vadd.f32 %v3015, %v3016
        %v3018 = vsel %vm1829, %v2899, 0.0
        %v3019 = vadd.f32 %v3017, %v3018
        %v3020 = vsel %vm1829, %v2900, 0.0
        %v3021 = vadd.f32 %v3019, %v3020
        %v3022 = vsel %vm1829, %v2901, 0.0
        %v3023 = vadd.f32 %v3021, %v3022
        %v3024 = vsel %vm1829, %v2902, 0.0
        %v3025 = vadd.f32 %v3023, %v3024
        %v3026 = vsel %vm1829, %v2903, 0.0
        %v3027 = vadd.f32 %v3025, %v3026
        %v3028 = vsel %vm1829, %v2904, 0.0
        %v3029 = vadd.f32 %v3027, %v3028
        %v3030 = vsel %vm1829, %v2905, 0.0
        %v3031 = vadd.f32 %v3029, %v3030
        %v3032 = vsel %vm1829, %v2906, 0.0
        %v3033 = vadd.f32 %v3031, %v3032
        %v3034 = vsel %vm1829, %v2907, 0.0
        %v3035 = vadd.f32 %v3033, %v3034
        %v3036 = vsel %vm1829, %v2908, 0.0
        %v3037 = vadd.f32 %v3035, %v3036
        %v3038 = vsel %vm1829, %v2909, 0.0
        %v3039 = vadd.f32 %v3037, %v3038
        %v3040 = vsel %vm1829, %v2910, 0.0
        %v3041 = vadd.f32 %v3039, %v3040
        %v3042 = vsel %vm1829, %v2911, 0.0
        %v3043 = vadd.f32 %v3041, %v3042
        %v3044 = vsel %vm1829, %v2912, 0.0
        %v3045 = vadd.f32 %v3043, %v3044
        %v3046 = vsel %vm1829, %v2913, 0.0
        %v3047 = vadd.f32 %v3045, %v3046
        %v3048 = vsel %vm1829, %v2914, 0.0
        %v3049 = vadd.f32 %v3047, %v3048
        %v3050 = vsel %vm1829, %v2915, 0.0
        %v3051 = vadd.f32 %v3049, %v3050
        %v3052 = vsel %vm1829, %v2916, 0.0
        %v3053 = vadd.f32 %v3051, %v3052
        %v3054 = vsel %vm1829, %v2917, 0.0
        %v3055 = vadd.f32 %v3053, %v3054
        %v3056 = vsel %vm1829, %v2918, 0.0
        %v3057 = vadd.f32 %v3055, %v3056
        %v3058 = vrot.slane %v3057, 4
        %v3059 = vadd.f32 %v3057, %v3058
        %v3060 = vrot.slane %v3059, 2
        %v3061 = vadd.f32 %v3059, %v3060
        %v3062 = vrot.slane %v3061, 1
        %v3063 = vadd.f32 %v3061, %v3062
        %v3065 = vsel %vm1829, %v3063, 0
        %3067 = vmatprep.subr.mxu0 0.0
        %3068 = vmatpush1.msra.mxu0 0.0
        %3069 = vmatprep.subr.mxu0 0.0
        %3070 = vmatpush1.msra.mxu0 0.0
        %3071 = vmatprep.subr.mxu0 0.0
        %3072 = vmatpush1.msra.mxu0 0.0
        %3073 = vmatprep.subr.mxu0 0.0
        %3074 = vmatpush1.msra.mxu0 0.0
        %3075 = vmatprep.subr.mxu0 0.0
        %3076 = vmatpush1.msra.mxu0 0.0
        %3077 = vmatprep.subr.mxu0 0.0
        %3078 = vmatpush1.msra.mxu0 0.0
        %3079 = vmatprep.subr.mxu0 0.0
        %3080 = vmatpush1.msra.mxu0 0.0
        %3081 = vmatprep.subr.mxu0 0.0
        %3082 = vmatpush1.msra.mxu0 0.0
        %3083 = vmatprep.subr.mxu0 0.0
        %3084 = vmatpush1.msra.mxu0 %v2966
        %3085 = vmatprep.subr.mxu0 0.0
        %3086 = vmatpush1.msra.mxu0 %v2965
        %3087 = vmatprep.subr.mxu0 0.0
        %3088 = vmatpush1.msra.mxu0 %v2964
        %3089 = vmatprep.subr.mxu0 0.0
        %3090 = vmatpush1.msra.mxu0 %v2963
        %3091 = vmatprep.subr.mxu0 0.0
        %3092 = vmatpush1.msra.mxu0 %v2962
        %3093 = vmatprep.subr.mxu0 0.0
        %3094 = vmatpush1.msra.mxu0 %v2961
        %3095 = vmatprep.subr.mxu0 0.0
        %3096 = vmatpush1.msra.mxu0 %v2960
        %3097 = vmatprep.subr.mxu0 0.0
        %3098 = vmatpush1.msra.mxu0 %v2959
        %3099 = vmatprep.subr.mxu0 0.0
        %3100 = vmatpush2.msra.mxu0 0.0
        %3101 = vmatprep.subr.mxu0 0.0
        %3102 = vmatpush2.msra.mxu0 0.0
        %3103 = vmatprep.subr.mxu0 0.0
        %3104 = vmatpush2.msra.mxu0 0.0
        %3105 = vmatprep.subr.mxu0 0.0
        %3106 = vmatpush2.msra.mxu0 0.0
        %3107 = vmatprep.subr.mxu0 0.0
        %3108 = vmatpush2.msra.mxu0 0.0
        %3109 = vmatprep.subr.mxu0 0.0
        %3110 = vmatpush2.msra.mxu0 0.0
        %3111 = vmatprep.subr.mxu0 0.0
        %3112 = vmatpush2.msra.mxu0 0.0
        %3113 = vmatprep.subr.mxu0 0.0
        %3114 = vmatpush2.msra.mxu0 0.0
        %3115 = vmatprep.subr.mxu0 0.0
        %3116 = vmatpush2.msra.mxu0 0.0
        %3117 = vmatprep.subr.mxu0 0.0
        %3118 = vmatpush2.msra.mxu0 0.0
        %3119 = vmatprep.subr.mxu0 0.0
        %3120 = vmatpush2.msra.mxu0 0.0
        %3121 = vmatprep.subr.mxu0 0.0
        %3122 = vmatpush2.msra.mxu0 0.0
        %3123 = vmatprep.subr.mxu0 0.0
        %3124 = vmatpush2.msra.mxu0 0.0
        %3125 = vmatprep.subr.mxu0 0.0
        %3126 = vmatpush2.msra.mxu0 0.0
        %3127 = vmatprep.subr.mxu0 0.0
        %3128 = vmatpush2.msra.mxu0 0.0
        %3129 = vmatprep.subr.mxu0 0.0
        %3130 = vmatpush2.msra.mxu0 0.0
        %3131 = vmatprep.mubr.f32.mxu0 0.0
        %3132 = vmatmul.mubr.f32.gmra.mxu0 %v3065
        %v3133 = vpop.f32.mrf.mxu0
        %v3134 = vadd.f32 0.0, %v3133
        %v3135 = vpop.f32.mrf.mxu0
        %3136 = vdwg.mxu0
        %v3137 = vmul.f32 %v3134, 0.001953125
        %v3139 = vsel %vm486, %v3137, 0
        %3141 = vmatprep.subr.mxu0 0.0
        %3142 = vmatpush1.msra.mxu0 0.0
        %3143 = vmatprep.subr.mxu0 0.0
        %3144 = vmatpush1.msra.mxu0 0.0
        %3145 = vmatprep.subr.mxu0 0.0
        %3146 = vmatpush1.msra.mxu0 0.0
        %3147 = vmatprep.subr.mxu0 0.0
        %3148 = vmatpush1.msra.mxu0 0.0
        %3149 = vmatprep.subr.mxu0 0.0
        %3150 = vmatpush1.msra.mxu0 0.0
        %3151 = vmatprep.subr.mxu0 0.0
        %3152 = vmatpush1.msra.mxu0 0.0
        %3153 = vmatprep.subr.mxu0 0.0
        %3154 = vmatpush1.msra.mxu0 0.0
        %3155 = vmatprep.subr.mxu0 0.0
        %3156 = vmatpush1.msra.mxu0 0.0
        %3157 = vmatprep.subr.mxu0 0.0
        %3158 = vmatpush1.msra.mxu0 0.0
        %3159 = vmatprep.subr.mxu0 0.0
        %3160 = vmatpush1.msra.mxu0 0.0
        %3161 = vmatprep.subr.mxu0 0.0
        %3162 = vmatpush1.msra.mxu0 0.0
        %3163 = vmatprep.subr.mxu0 0.0
        %3164 = vmatpush1.msra.mxu0 0.0
        %3165 = vmatprep.subr.mxu0 0.0
        %3166 = vmatpush1.msra.mxu0 %v2994
        %3167 = vmatprep.subr.mxu0 0.0
        %3168 = vmatpush1.msra.mxu0 %v2993
        %3169 = vmatprep.subr.mxu0 0.0
        %3170 = vmatpush1.msra.mxu0 %v2992
        %3171 = vmatprep.subr.mxu0 0.0
        %3172 = vmatpush1.msra.mxu0 %v2991
        %3173 = vmatprep.subr.mxu0 0.0
        %3174 = vmatpush2.msra.mxu0 0.0
        %3175 = vmatprep.subr.mxu0 0.0
        %3176 = vmatpush2.msra.mxu0 0.0
        %3177 = vmatprep.subr.mxu0 0.0
        %3178 = vmatpush2.msra.mxu0 0.0
        %3179 = vmatprep.subr.mxu0 0.0
        %3180 = vmatpush2.msra.mxu0 0.0
        %3181 = vmatprep.subr.mxu0 0.0
        %3182 = vmatpush2.msra.mxu0 0.0
        %3183 = vmatprep.subr.mxu0 0.0
        %3184 = vmatpush2.msra.mxu0 0.0
        %3185 = vmatprep.subr.mxu0 0.0
        %3186 = vmatpush2.msra.mxu0 0.0
        %3187 = vmatprep.subr.mxu0 0.0
        %3188 = vmatpush2.msra.mxu0 0.0
        %3189 = vmatprep.subr.mxu0 0.0
        %3190 = vmatpush2.msra.mxu0 0.0
        %3191 = vmatprep.subr.mxu0 0.0
        %3192 = vmatpush2.msra.mxu0 0.0
        %3193 = vmatprep.subr.mxu0 0.0
        %3194 = vmatpush2.msra.mxu0 0.0
        %3195 = vmatprep.subr.mxu0 0.0
        %3196 = vmatpush2.msra.mxu0 0.0
        %3197 = vmatprep.subr.mxu0 0.0
        %3198 = vmatpush2.msra.mxu0 0.0
        %3199 = vmatprep.subr.mxu0 0.0
        %3200 = vmatpush2.msra.mxu0 0.0
        %3201 = vmatprep.subr.mxu0 0.0
        %3202 = vmatpush2.msra.mxu0 0.0
        %3203 = vmatprep.subr.mxu0 0.0
        %3204 = vmatpush2.msra.mxu0 0.0
        %3205 = vmatprep.mubr.f32.mxu0 0.0
        %3206 = vmatmul.mubr.f32.gmra.mxu0 %v3139
        %v3207 = vpop.f32.mrf.mxu0
        %v3208 = vadd.f32 0.0, %v3207
        %v3209 = vpop.f32.mrf.mxu0
        %3210 = vdwg.mxu0
        %v3211 = vlaneseq
        %v3212 = vshrl.u32 %v3211, 7
        %v3213 = vsub.s32 0, %v3212
        %v3214 = vrot.slane %v3208, %v3213
        %v3215 = vsub.f32 %v2887, %v3214
        %v3216 = vsub.f32 %v2888, %v3214
        %v3217 = vsub.f32 %v2889, %v3214
        %v3218 = vsub.f32 %v2890, %v3214
        %v3219 = vsub.f32 %v2891, %v3214
        %v3220 = vsub.f32 %v2892, %v3214
        %v3221 = vsub.f32 %v2893, %v3214
        %v3222 = vsub.f32 %v2894, %v3214
        %v3223 = vsub.f32 %v2895, %v3214
        %v3224 = vsub.f32 %v2896, %v3214
        %v3225 = vsub.f32 %v2897, %v3214
        %v3226 = vsub.f32 %v2898, %v3214
        %v3227 = vsub.f32 %v2899, %v3214
        %v3228 = vsub.f32 %v2900, %v3214
        %v3229 = vsub.f32 %v2901, %v3214
        %v3230 = vsub.f32 %v2902, %v3214
        %v3231 = vsub.f32 %v2903, %v3214
        %v3232 = vsub.f32 %v2904, %v3214
        %v3233 = vsub.f32 %v2905, %v3214
        %v3234 = vsub.f32 %v2906, %v3214
        %v3235 = vsub.f32 %v2907, %v3214
        %v3236 = vsub.f32 %v2908, %v3214
        %v3237 = vsub.f32 %v2909, %v3214
        %v3238 = vsub.f32 %v2910, %v3214
        %v3239 = vsub.f32 %v2911, %v3214
        %v3240 = vsub.f32 %v2912, %v3214
        %v3241 = vsub.f32 %v2913, %v3214
        %v3242 = vsub.f32 %v2914, %v3214
        %v3243 = vsub.f32 %v2915, %v3214
        %v3244 = vsub.f32 %v2916, %v3214
        %v3245 = vsub.f32 %v2917, %v3214
        %v3246 = vsub.f32 %v2918, %v3214
        %v3247 = vmul.f32 %v3215, %v3215
        %v3248 = vmul.f32 %v3216, %v3216
        %v3249 = vmul.f32 %v3217, %v3217
        %v3250 = vmul.f32 %v3218, %v3218
        %v3251 = vmul.f32 %v3219, %v3219
        %v3252 = vmul.f32 %v3220, %v3220
        %v3253 = vmul.f32 %v3221, %v3221
        %v3254 = vmul.f32 %v3222, %v3222
        %v3255 = vmul.f32 %v3223, %v3223
        %v3256 = vmul.f32 %v3224, %v3224
        %v3257 = vmul.f32 %v3225, %v3225
        %v3258 = vmul.f32 %v3226, %v3226
        %v3259 = vmul.f32 %v3227, %v3227
        %v3260 = vmul.f32 %v3228, %v3228
        %v3261 = vmul.f32 %v3229, %v3229
        %v3262 = vmul.f32 %v3230, %v3230
        %v3263 = vmul.f32 %v3231, %v3231
        %v3264 = vmul.f32 %v3232, %v3232
        %v3265 = vmul.f32 %v3233, %v3233
        %v3266 = vmul.f32 %v3234, %v3234
        %v3267 = vmul.f32 %v3235, %v3235
        %v3268 = vmul.f32 %v3236, %v3236
        %v3269 = vmul.f32 %v3237, %v3237
        %v3270 = vmul.f32 %v3238, %v3238
        %v3271 = vmul.f32 %v3239, %v3239
        %v3272 = vmul.f32 %v3240, %v3240
        %v3273 = vmul.f32 %v3241, %v3241
        %v3274 = vmul.f32 %v3242, %v3242
        %v3275 = vmul.f32 %v3243, %v3243
        %v3276 = vmul.f32 %v3244, %v3244
        %v3277 = vmul.f32 %v3245, %v3245
        %v3278 = vmul.f32 %v3246, %v3246
        %v3279 = vsel %vm1829, %v3247, 0.0
        %v3280 = vsel %vm1829, %v3248, 0.0
        %v3281 = vadd.f32 %v3279, %v3280
        %v3282 = vsel %vm1829, %v3249, 0.0
        %v3283 = vadd.f32 %v3281, %v3282
        %v3284 = vsel %vm1829, %v3250, 0.0
        %v3285 = vadd.f32 %v3283, %v3284
        %v3286 = vsel %vm1829, %v3251, 0.0
        %v3287 = vadd.f32 %v3285, %v3286
        %v3288 = vsel %vm1829, %v3252, 0.0
        %v3289 = vadd.f32 %v3287, %v3288
        %v3290 = vsel %vm1829, %v3253, 0.0
        %v3291 = vadd.f32 %v3289, %v3290
        %v3292 = vsel %vm1829, %v3254, 0.0
        %v3293 = vadd.f32 %v3291, %v3292
        %v3294 = vsel %vm1829, %v3255, 0.0
        %v3295 = vadd.f32 %v3293, %v3294
        %v3296 = vsel %vm1829, %v3256, 0.0
        %v3297 = vadd.f32 %v3295, %v3296
        %v3298 = vsel %vm1829, %v3257, 0.0
        %v3299 = vadd.f32 %v3297, %v3298
        %v3300 = vsel %vm1829, %v3258, 0.0
        %v3301 = vadd.f32 %v3299, %v3300
        %v3302 = vsel %vm1829, %v3259, 0.0
        %v3303 = vadd.f32 %v3301, %v3302
        %v3304 = vsel %vm1829, %v3260, 0.0
        %v3305 = vadd.f32 %v3303, %v3304
        %v3306 = vsel %vm1829, %v3261, 0.0
        %v3307 = vadd.f32 %v3305, %v3306
        %v3308 = vsel %vm1829, %v3262, 0.0
        %v3309 = vadd.f32 %v3307, %v3308
        %v3310 = vsel %vm1829, %v3263, 0.0
        %v3311 = vadd.f32 %v3309, %v3310
        %v3312 = vsel %vm1829, %v3264, 0.0
        %v3313 = vadd.f32 %v3311, %v3312
        %v3314 = vsel %vm1829, %v3265, 0.0
        %v3315 = vadd.f32 %v3313, %v3314
        %v3316 = vsel %vm1829, %v3266, 0.0
        %v3317 = vadd.f32 %v3315, %v3316
        %v3318 = vsel %vm1829, %v3267, 0.0
        %v3319 = vadd.f32 %v3317, %v3318
        %v3320 = vsel %vm1829, %v3268, 0.0
        %v3321 = vadd.f32 %v3319, %v3320
        %v3322 = vsel %vm1829, %v3269, 0.0
        %v3323 = vadd.f32 %v3321, %v3322
        %v3324 = vsel %vm1829, %v3270, 0.0
        %v3325 = vadd.f32 %v3323, %v3324
        %v3326 = vsel %vm1829, %v3271, 0.0
        %v3327 = vadd.f32 %v3325, %v3326
        %v3328 = vsel %vm1829, %v3272, 0.0
        %v3329 = vadd.f32 %v3327, %v3328
        %v3330 = vsel %vm1829, %v3273, 0.0
        %v3331 = vadd.f32 %v3329, %v3330
        %v3332 = vsel %vm1829, %v3274, 0.0
        %v3333 = vadd.f32 %v3331, %v3332
        %v3334 = vsel %vm1829, %v3275, 0.0
        %v3335 = vadd.f32 %v3333, %v3334
        %v3336 = vsel %vm1829, %v3276, 0.0
        %v3337 = vadd.f32 %v3335, %v3336
        %v3338 = vsel %vm1829, %v3277, 0.0
        %v3339 = vadd.f32 %v3337, %v3338
        %v3340 = vsel %vm1829, %v3278, 0.0
        %v3341 = vadd.f32 %v3339, %v3340
        %v3342 = vrot.slane %v3341, 4
        %v3343 = vadd.f32 %v3341, %v3342
        %v3344 = vrot.slane %v3343, 2
        %v3345 = vadd.f32 %v3343, %v3344
        %v3346 = vrot.slane %v3345, 1
        %v3347 = vadd.f32 %v3345, %v3346
        %v3349 = vsel %vm1829, %v3347, 0
        %3351 = vmatprep.subr.mxu0 0.0
        %3352 = vmatpush1.msra.mxu0 0.0
        %3353 = vmatprep.subr.mxu0 0.0
        %3354 = vmatpush1.msra.mxu0 0.0
        %3355 = vmatprep.subr.mxu0 0.0
        %3356 = vmatpush1.msra.mxu0 0.0
        %3357 = vmatprep.subr.mxu0 0.0
        %3358 = vmatpush1.msra.mxu0 0.0
        %3359 = vmatprep.subr.mxu0 0.0
        %3360 = vmatpush1.msra.mxu0 0.0
        %3361 = vmatprep.subr.mxu0 0.0
        %3362 = vmatpush1.msra.mxu0 0.0
        %3363 = vmatprep.subr.mxu0 0.0
        %3364 = vmatpush1.msra.mxu0 0.0
        %3365 = vmatprep.subr.mxu0 0.0
        %3366 = vmatpush1.msra.mxu0 0.0
        %3367 = vmatprep.subr.mxu0 0.0
        %3368 = vmatpush1.msra.mxu0 %v2966
        %3369 = vmatprep.subr.mxu0 0.0
        %3370 = vmatpush1.msra.mxu0 %v2965
        %3371 = vmatprep.subr.mxu0 0.0
        %3372 = vmatpush1.msra.mxu0 %v2964
        %3373 = vmatprep.subr.mxu0 0.0
        %3374 = vmatpush1.msra.mxu0 %v2963
        %3375 = vmatprep.subr.mxu0 0.0
        %3376 = vmatpush1.msra.mxu0 %v2962
        %3377 = vmatprep.subr.mxu0 0.0
        %3378 = vmatpush1.msra.mxu0 %v2961
        %3379 = vmatprep.subr.mxu0 0.0
        %3380 = vmatpush1.msra.mxu0 %v2960
        %3381 = vmatprep.subr.mxu0 0.0
        %3382 = vmatpush1.msra.mxu0 %v2959
        %3383 = vmatprep.subr.mxu0 0.0
        %3384 = vmatpush2.msra.mxu0 0.0
        %3385 = vmatprep.subr.mxu0 0.0
        %3386 = vmatpush2.msra.mxu0 0.0
        %3387 = vmatprep.subr.mxu0 0.0
        %3388 = vmatpush2.msra.mxu0 0.0
        %3389 = vmatprep.subr.mxu0 0.0
        %3390 = vmatpush2.msra.mxu0 0.0
        %3391 = vmatprep.subr.mxu0 0.0
        %3392 = vmatpush2.msra.mxu0 0.0
        %3393 = vmatprep.subr.mxu0 0.0
        %3394 = vmatpush2.msra.mxu0 0.0
        %3395 = vmatprep.subr.mxu0 0.0
        %3396 = vmatpush2.msra.mxu0 0.0
        %3397 = vmatprep.subr.mxu0 0.0
        %3398 = vmatpush2.msra.mxu0 0.0
        %3399 = vmatprep.subr.mxu0 0.0
        %3400 = vmatpush2.msra.mxu0 0.0
        %3401 = vmatprep.subr.mxu0 0.0
        %3402 = vmatpush2.msra.mxu0 0.0
        %3403 = vmatprep.subr.mxu0 0.0
        %3404 = vmatpush2.msra.mxu0 0.0
        %3405 = vmatprep.subr.mxu0 0.0
        %3406 = vmatpush2.msra.mxu0 0.0
        %3407 = vmatprep.subr.mxu0 0.0
        %3408 = vmatpush2.msra.mxu0 0.0
        %3409 = vmatprep.subr.mxu0 0.0
        %3410 = vmatpush2.msra.mxu0 0.0
        %3411 = vmatprep.subr.mxu0 0.0
        %3412 = vmatpush2.msra.mxu0 0.0
        %3413 = vmatprep.subr.mxu0 0.0
        %3414 = vmatpush2.msra.mxu0 0.0
        %3415 = vmatprep.mubr.f32.mxu0 0.0
        %3416 = vmatmul.mubr.f32.gmra.mxu0 %v3349
        %v3417 = vpop.f32.mrf.mxu0
        %v3418 = vadd.f32 0.0, %v3417
        %v3419 = vpop.f32.mrf.mxu0
        %3420 = vdwg.mxu0
        %v3421 = vmul.f32 %v3418, 0.001953125
        %v3423 = vsel %vm486, %v3421, 0
        %3425 = vmatprep.subr.mxu0 0.0
        %3426 = vmatpush1.msra.mxu0 0.0
        %3427 = vmatprep.subr.mxu0 0.0
        %3428 = vmatpush1.msra.mxu0 0.0
        %3429 = vmatprep.subr.mxu0 0.0
        %3430 = vmatpush1.msra.mxu0 0.0
        %3431 = vmatprep.subr.mxu0 0.0
        %3432 = vmatpush1.msra.mxu0 0.0
        %3433 = vmatprep.subr.mxu0 0.0
        %3434 = vmatpush1.msra.mxu0 0.0
        %3435 = vmatprep.subr.mxu0 0.0
        %3436 = vmatpush1.msra.mxu0 0.0
        %3437 = vmatprep.subr.mxu0 0.0
        %3438 = vmatpush1.msra.mxu0 0.0
        %3439 = vmatprep.subr.mxu0 0.0
        %3440 = vmatpush1.msra.mxu0 0.0
        %3441 = vmatprep.subr.mxu0 0.0
        %3442 = vmatpush1.msra.mxu0 0.0
        %3443 = vmatprep.subr.mxu0 0.0
        %3444 = vmatpush1.msra.mxu0 0.0
        %3445 = vmatprep.subr.mxu0 0.0
        %3446 = vmatpush1.msra.mxu0 0.0
        %3447 = vmatprep.subr.mxu0 0.0
        %3448 = vmatpush1.msra.mxu0 0.0
        %3449 = vmatprep.subr.mxu0 0.0
        %3450 = vmatpush1.msra.mxu0 %v2994
        %3451 = vmatprep.subr.mxu0 0.0
        %3452 = vmatpush1.msra.mxu0 %v2993
        %3453 = vmatprep.subr.mxu0 0.0
        %3454 = vmatpush1.msra.mxu0 %v2992
        %3455 = vmatprep.subr.mxu0 0.0
        %3456 = vmatpush1.msra.mxu0 %v2991
        %3457 = vmatprep.subr.mxu0 0.0
        %3458 = vmatpush2.msra.mxu0 0.0
        %3459 = vmatprep.subr.mxu0 0.0
        %3460 = vmatpush2.msra.mxu0 0.0
        %3461 = vmatprep.subr.mxu0 0.0
        %3462 = vmatpush2.msra.mxu0 0.0
        %3463 = vmatprep.subr.mxu0 0.0
        %3464 = vmatpush2.msra.mxu0 0.0
        %3465 = vmatprep.subr.mxu0 0.0
        %3466 = vmatpush2.msra.mxu0 0.0
        %3467 = vmatprep.subr.mxu0 0.0
        %3468 = vmatpush2.msra.mxu0 0.0
        %3469 = vmatprep.subr.mxu0 0.0
        %3470 = vmatpush2.msra.mxu0 0.0
        %3471 = vmatprep.subr.mxu0 0.0
        %3472 = vmatpush2.msra.mxu0 0.0
        %3473 = vmatprep.subr.mxu0 0.0
        %3474 = vmatpush2.msra.mxu0 0.0
        %3475 = vmatprep.subr.mxu0 0.0
        %3476 = vmatpush2.msra.mxu0 0.0
        %3477 = vmatprep.subr.mxu0 0.0
        %3478 = vmatpush2.msra.mxu0 0.0
        %3479 = vmatprep.subr.mxu0 0.0
        %3480 = vmatpush2.msra.mxu0 0.0
        %3481 = vmatprep.subr.mxu0 0.0
        %3482 = vmatpush2.msra.mxu0 0.0
        %3483 = vmatprep.subr.mxu0 0.0
        %3484 = vmatpush2.msra.mxu0 0.0
        %3485 = vmatprep.subr.mxu0 0.0
        %3486 = vmatpush2.msra.mxu0 0.0
        %3487 = vmatprep.subr.mxu0 0.0
        %3488 = vmatpush2.msra.mxu0 0.0
        %3489 = vmatprep.mubr.f32.mxu0 0.0
        %3490 = vmatmul.mubr.f32.gmra.mxu0 %v3423
        %v3491 = vpop.f32.mrf.mxu0
        %v3492 = vadd.f32 1e-05, %v3491
        %v3493 = vpop.f32.mrf.mxu0
        %3494 = vdwg.mxu0
        %v3495 = vrsqrt.pop %v3492
        %v3496 = vlaneseq
        %v3497 = vshrl.u32 %v3496, 7
        %v3498 = vsub.s32 0, %v3497
        %v3499 = vrot.slane %v3495, %v3498
        %v3500 = vmul.f32 %v3215, %v3499
        %v3501 = vmul.f32 %v3216, %v3499
        %v3502 = vmul.f32 %v3217, %v3499
        %v3503 = vmul.f32 %v3218, %v3499
        %v3504 = vmul.f32 %v3219, %v3499
        %v3505 = vmul.f32 %v3220, %v3499
        %v3506 = vmul.f32 %v3221, %v3499
        %v3507 = vmul.f32 %v3222, %v3499
        %v3508 = vmul.f32 %v3223, %v3499
        %v3509 = vmul.f32 %v3224, %v3499
        %v3510 = vmul.f32 %v3225, %v3499
        %v3511 = vmul.f32 %v3226, %v3499
        %v3512 = vmul.f32 %v3227, %v3499
        %v3513 = vmul.f32 %v3228, %v3499
        %v3514 = vmul.f32 %v3229, %v3499
        %v3515 = vmul.f32 %v3230, %v3499
        %v3516 = vmul.f32 %v3231, %v3499
        %v3517 = vmul.f32 %v3232, %v3499
        %v3518 = vmul.f32 %v3233, %v3499
        %v3519 = vmul.f32 %v3234, %v3499
        %v3520 = vmul.f32 %v3235, %v3499
        %v3521 = vmul.f32 %v3236, %v3499
        %v3522 = vmul.f32 %v3237, %v3499
        %v3523 = vmul.f32 %v3238, %v3499
        %v3524 = vmul.f32 %v3239, %v3499
        %v3525 = vmul.f32 %v3240, %v3499
        %v3526 = vmul.f32 %v3241, %v3499
        %v3527 = vmul.f32 %v3242, %v3499
        %v3528 = vmul.f32 %v3243, %v3499
        %v3529 = vmul.f32 %v3244, %v3499
        %v3530 = vmul.f32 %v3245, %v3499
        %v3531 = vmul.f32 %v3246, %v3499
        %v3533 = vlaneseq
        %v3534 = vshrl.u32 %v3533, 7
        %v3535 = vsub.s32 0, %v3534
        %v3536 = vrot.slane %v2919, %v3535
        %v3538 = vmul.f32 %v3500, %v3536
        %v3539 = vmul.f32 %v3501, %v3536
        %v3540 = vmul.f32 %v3502, %v3536
        %v3541 = vmul.f32 %v3503, %v3536
        %v3542 = vmul.f32 %v3504, %v3536
        %v3543 = vmul.f32 %v3505, %v3536
        %v3544 = vmul.f32 %v3506, %v3536
        %v3545 = vmul.f32 %v3507, %v3536
        %v3546 = vmul.f32 %v3508, %v3536
        %v3547 = vmul.f32 %v3509, %v3536
        %v3548 = vmul.f32 %v3510, %v3536
        %v3549 = vmul.f32 %v3511, %v3536
        %v3550 = vmul.f32 %v3512, %v3536
        %v3551 = vmul.f32 %v3513, %v3536
        %v3552 = vmul.f32 %v3514, %v3536
        %v3553 = vmul.f32 %v3515, %v3536
        %v3554 = vmul.f32 %v3516, %v3536
        %v3555 = vmul.f32 %v3517, %v3536
        %v3556 = vmul.f32 %v3518, %v3536
        %v3557 = vmul.f32 %v3519, %v3536
        %v3558 = vmul.f32 %v3520, %v3536
        %v3559 = vmul.f32 %v3521, %v3536
        %v3560 = vmul.f32 %v3522, %v3536
        %v3561 = vmul.f32 %v3523, %v3536
        %v3562 = vmul.f32 %v3524, %v3536
        %v3563 = vmul.f32 %v3525, %v3536
        %v3564 = vmul.f32 %v3526, %v3536
        %v3565 = vmul.f32 %v3527, %v3536
        %v3566 = vmul.f32 %v3528, %v3536
        %v3567 = vmul.f32 %v3529, %v3536
        %v3568 = vmul.f32 %v3530, %v3536
        %v3569 = vmul.f32 %v3531, %v3536
        %v3571 = vlaneseq
        %v3572 = vshrl.u32 %v3571, 7
        %v3573 = vsub.s32 0, %v3572
        %v3574 = vrot.slane %v2920, %v3573
        %v3576 = vadd.f32 %v3538, %v3574
        %v3577 = vadd.f32 %v3539, %v3574
        %v3578 = vadd.f32 %v3540, %v3574
        %v3579 = vadd.f32 %v3541, %v3574
        %v3580 = vadd.f32 %v3542, %v3574
        %v3581 = vadd.f32 %v3543, %v3574
        %v3582 = vadd.f32 %v3544, %v3574
        %v3583 = vadd.f32 %v3545, %v3574
        %v3584 = vadd.f32 %v3546, %v3574
        %v3585 = vadd.f32 %v3547, %v3574
        %v3586 = vadd.f32 %v3548, %v3574
        %v3587 = vadd.f32 %v3549, %v3574
        %v3588 = vadd.f32 %v3550, %v3574
        %v3589 = vadd.f32 %v3551, %v3574
        %v3590 = vadd.f32 %v3552, %v3574
        %v3591 = vadd.f32 %v3553, %v3574
        %v3592 = vadd.f32 %v3554, %v3574
        %v3593 = vadd.f32 %v3555, %v3574
        %v3594 = vadd.f32 %v3556, %v3574
        %v3595 = vadd.f32 %v3557, %v3574
        %v3596 = vadd.f32 %v3558, %v3574
        %v3597 = vadd.f32 %v3559, %v3574
        %v3598 = vadd.f32 %v3560, %v3574
        %v3599 = vadd.f32 %v3561, %v3574
        %v3600 = vadd.f32 %v3562, %v3574
        %v3601 = vadd.f32 %v3563, %v3574
        %v3602 = vadd.f32 %v3564, %v3574
        %v3603 = vadd.f32 %v3565, %v3574
        %v3604 = vadd.f32 %v3566, %v3574
        %v3605 = vadd.f32 %v3567, %v3574
        %v3606 = vadd.f32 %v3568, %v3574
        %v3607 = vadd.f32 %v3569, %v3574
        %v3608 = vsub.f32 0.0, %v3576
        %v3609 = vsub.f32 0.0, %v3577
        %v3610 = vsub.f32 0.0, %v3578
        %v3611 = vsub.f32 0.0, %v3579
        %v3612 = vsub.f32 0.0, %v3580
        %v3613 = vsub.f32 0.0, %v3581
        %v3614 = vsub.f32 0.0, %v3582
        %v3615 = vsub.f32 0.0, %v3583
        %v3616 = vsub.f32 0.0, %v3584
        %v3617 = vsub.f32 0.0, %v3585
        %v3618 = vsub.f32 0.0, %v3586
        %v3619 = vsub.f32 0.0, %v3587
        %v3620 = vsub.f32 0.0, %v3588
        %v3621 = vsub.f32 0.0, %v3589
        %v3622 = vsub.f32 0.0, %v3590
        %v3623 = vsub.f32 0.0, %v3591
        %v3624 = vsub.f32 0.0, %v3592
        %v3625 = vsub.f32 0.0, %v3593
        %v3626 = vsub.f32 0.0, %v3594
        %v3627 = vsub.f32 0.0, %v3595
        %v3628 = vsub.f32 0.0, %v3596
        %v3629 = vsub.f32 0.0, %v3597
        %v3630 = vsub.f32 0.0, %v3598
        %v3631 = vsub.f32 0.0, %v3599
        %v3632 = vsub.f32 0.0, %v3600
        %v3633 = vsub.f32 0.0, %v3601
        %v3634 = vsub.f32 0.0, %v3602
        %v3635 = vsub.f32 0.0, %v3603
        %v3636 = vsub.f32 0.0, %v3604
        %v3637 = vsub.f32 0.0, %v3605
        %v3638 = vsub.f32 0.0, %v3606
        %v3639 = vsub.f32 0.0, %v3607
        %v3640 = vmul.f32 %v3608, 1.442695
        %v3641 = vpow.pop %v3640
        %v3642 = vmul.f32 %v3609, 1.442695
        %v3643 = vpow.pop %v3642
        %v3644 = vmul.f32 %v3610, 1.442695
        %v3645 = vpow.pop %v3644
        %v3646 = vmul.f32 %v3611, 1.442695
        %v3647 = vpow.pop %v3646
        %v3648 = vmul.f32 %v3612, 1.442695
        %v3649 = vpow.pop %v3648
        %v3650 = vmul.f32 %v3613, 1.442695
        %v3651 = vpow.pop %v3650
        %v3652 = vmul.f32 %v3614, 1.442695
        %v3653 = vpow.pop %v3652
        %v3654 = vmul.f32 %v3615, 1.442695
        %v3655 = vpow.pop %v3654
        %v3656 = vmul.f32 %v3616, 1.442695
        %v3657 = vpow.pop %v3656
        %v3658 = vmul.f32 %v3617, 1.442695
        %v3659 = vpow.pop %v3658
        %v3660 = vmul.f32 %v3618, 1.442695
        %v3661 = vpow.pop %v3660
        %v3662 = vmul.f32 %v3619, 1.442695
        %v3663 = vpow.pop %v3662
        %v3664 = vmul.f32 %v3620, 1.442695
        %v3665 = vpow.pop %v3664
        %v3666 = vmul.f32 %v3621, 1.442695
        %v3667 = vpow.pop %v3666
        %v3668 = vmul.f32 %v3622, 1.442695
        %v3669 = vpow.pop %v3668
        %v3670 = vmul.f32 %v3623, 1.442695
        %v3671 = vpow.pop %v3670
        %v3672 = vmul.f32 %v3624, 1.442695
        %v3673 = vpow.pop %v3672
        %v3674 = vmul.f32 %v3625, 1.442695
        %v3675 = vpow.pop %v3674
        %v3676 = vmul.f32 %v3626, 1.442695
        %v3677 = vpow.pop %v3676
        %v3678 = vmul.f32 %v3627, 1.442695
        %v3679 = vpow.pop %v3678
        %v3680 = vmul.f32 %v3628, 1.442695
        %v3681 = vpow.pop %v3680
        %v3682 = vmul.f32 %v3629, 1.442695
        %v3683 = vpow.pop %v3682
        %v3684 = vmul.f32 %v3630, 1.442695
        %v3685 = vpow.pop %v3684
        %v3686 = vmul.f32 %v3631, 1.442695
        %v3687 = vpow.pop %v3686
        %v3688 = vmul.f32 %v3632, 1.442695
        %v3689 = vpow.pop %v3688
        %v3690 = vmul.f32 %v3633, 1.442695
        %v3691 = vpow.pop %v3690
        %v3692 = vmul.f32 %v3634, 1.442695
        %v3693 = vpow.pop %v3692
        %v3694 = vmul.f32 %v3635, 1.442695
        %v3695 = vpow.pop %v3694
        %v3696 = vmul.f32 %v3636, 1.442695
        %v3697 = vpow.pop %v3696
        %v3698 = vmul.f32 %v3637, 1.442695
        %v3699 = vpow.pop %v3698
        %v3700 = vmul.f32 %v3638, 1.442695
        %v3701 = vpow.pop %v3700
        %v3702 = vmul.f32 %v3639, 1.442695
        %v3703 = vpow.pop %v3702
        %v3704 = vadd.f32 %v3641, 1.0
        %v3705 = vadd.f32 %v3643, 1.0
        %v3706 = vadd.f32 %v3645, 1.0
        %v3707 = vadd.f32 %v3647, 1.0
        %v3708 = vadd.f32 %v3649, 1.0
        %v3709 = vadd.f32 %v3651, 1.0
        %v3710 = vadd.f32 %v3653, 1.0
        %v3711 = vadd.f32 %v3655, 1.0
        %v3712 = vadd.f32 %v3657, 1.0
        %v3713 = vadd.f32 %v3659, 1.0
        %v3714 = vadd.f32 %v3661, 1.0
        %v3715 = vadd.f32 %v3663, 1.0
        %v3716 = vadd.f32 %v3665, 1.0
        %v3717 = vadd.f32 %v3667, 1.0
        %v3718 = vadd.f32 %v3669, 1.0
        %v3719 = vadd.f32 %v3671, 1.0
        %v3720 = vadd.f32 %v3673, 1.0
        %v3721 = vadd.f32 %v3675, 1.0
        %v3722 = vadd.f32 %v3677, 1.0
        %v3723 = vadd.f32 %v3679, 1.0
        %v3724 = vadd.f32 %v3681, 1.0
        %v3725 = vadd.f32 %v3683, 1.0
        %v3726 = vadd.f32 %v3685, 1.0
        %v3727 = vadd.f32 %v3687, 1.0
        %v3728 = vadd.f32 %v3689, 1.0
        %v3729 = vadd.f32 %v3691, 1.0
        %v3730 = vadd.f32 %v3693, 1.0
        %v3731 = vadd.f32 %v3695, 1.0
        %v3732 = vadd.f32 %v3697, 1.0
        %v3733 = vadd.f32 %v3699, 1.0
        %v3734 = vadd.f32 %v3701, 1.0
        %v3735 = vadd.f32 %v3703, 1.0
        %v3736 = vrcp.pop %v3704
        %v3737 = vrcp.pop %v3705
        %v3738 = vrcp.pop %v3706
        %v3739 = vrcp.pop %v3707
        %v3740 = vrcp.pop %v3708
        %v3741 = vrcp.pop %v3709
        %v3742 = vrcp.pop %v3710
        %v3743 = vrcp.pop %v3711
        %v3744 = vrcp.pop %v3712
        %v3745 = vrcp.pop %v3713
        %v3746 = vrcp.pop %v3714
        %v3747 = vrcp.pop %v3715
        %v3748 = vrcp.pop %v3716
        %v3749 = vrcp.pop %v3717
        %v3750 = vrcp.pop %v3718
        %v3751 = vrcp.pop %v3719
        %v3752 = vrcp.pop %v3720
        %v3753 = vrcp.pop %v3721
        %v3754 = vrcp.pop %v3722
        %v3755 = vrcp.pop %v3723
        %v3756 = vrcp.pop %v3724
        %v3757 = vrcp.pop %v3725
        %v3758 = vrcp.pop %v3726
        %v3759 = vrcp.pop %v3727
        %v3760 = vrcp.pop %v3728
        %v3761 = vrcp.pop %v3729
        %v3762 = vrcp.pop %v3730
        %v3763 = vrcp.pop %v3731
        %v3764 = vrcp.pop %v3732
        %v3765 = vrcp.pop %v3733
        %v3766 = vrcp.pop %v3734
        %v3767 = vrcp.pop %v3735
        %v3768 = vmul.f32 %v3576, %v3736
        %v3769 = vmul.f32 %v3577, %v3737
        %v3770 = vmul.f32 %v3578, %v3738
        %v3771 = vmul.f32 %v3579, %v3739
        %v3772 = vmul.f32 %v3580, %v3740
        %v3773 = vmul.f32 %v3581, %v3741
        %v3774 = vmul.f32 %v3582, %v3742
        %v3775 = vmul.f32 %v3583, %v3743
        %v3776 = vmul.f32 %v3584, %v3744
        %v3777 = vmul.f32 %v3585, %v3745
        %v3778 = vmul.f32 %v3586, %v3746
        %v3779 = vmul.f32 %v3587, %v3747
        %v3780 = vmul.f32 %v3588, %v3748
        %v3781 = vmul.f32 %v3589, %v3749
        %v3782 = vmul.f32 %v3590, %v3750
        %v3783 = vmul.f32 %v3591, %v3751
        %v3784 = vmul.f32 %v3592, %v3752
        %v3785 = vmul.f32 %v3593, %v3753
        %v3786 = vmul.f32 %v3594, %v3754
        %v3787 = vmul.f32 %v3595, %v3755
        %v3788 = vmul.f32 %v3596, %v3756
        %v3789 = vmul.f32 %v3597, %v3757
        %v3790 = vmul.f32 %v3598, %v3758
        %v3791 = vmul.f32 %v3599, %v3759
        %v3792 = vmul.f32 %v3600, %v3760
        %v3793 = vmul.f32 %v3601, %v3761
        %v3794 = vmul.f32 %v3602, %v3762
        %v3795 = vmul.f32 %v3603, %v3763
        %v3796 = vmul.f32 %v3604, %v3764
        %v3797 = vmul.f32 %v3605, %v3765
        %v3798 = vmul.f32 %v3606, %v3766
        %v3799 = vmul.f32 %v3607, %v3767
        %v3800 = vld [vmem:[%s7] sm:$0xf]
        %v3801 = vld [vmem:[%s7 + $0x4] sm:$0xf]
        %v3802 = vld [vmem:[%s7 + $0x8] sm:$0xf]
        %v3803 = vld [vmem:[%s7 + $0xc] sm:$0xf]
        %v3804 = vld [vmem:[%s7 + $0x10] sm:$0xf]
        %v3805 = vld [vmem:[%s7 + $0x14] sm:$0xf]
        %v3806 = vld [vmem:[%s7 + $0x18] sm:$0xf]
        %v3807 = vld [vmem:[%s7 + $0x1c] sm:$0xf]
        %v3808 = vld [vmem:[%s7 + $0x20] sm:$0xf]
        %v3809 = vld [vmem:[%s7 + $0x24] sm:$0xf]
        %v3810 = vld [vmem:[%s7 + $0x28] sm:$0xf]
        %v3811 = vld [vmem:[%s7 + $0x2c] sm:$0xf]
        %v3812 = vld [vmem:[%s7 + $0x30] sm:$0xf]
        %v3813 = vld [vmem:[%s7 + $0x34] sm:$0xf]
        %v3814 = vld [vmem:[%s7 + $0x38] sm:$0xf]
        %v3815 = vld [vmem:[%s7 + $0x3c] sm:$0xf]
        %v3816 = vld [vmem:[%s7 + $0x40] sm:$0xf]
        %v3817 = vld [vmem:[%s7 + $0x44] sm:$0xf]
        %v3818 = vld [vmem:[%s7 + $0x48] sm:$0xf]
        %v3819 = vld [vmem:[%s7 + $0x4c] sm:$0xf]
        %v3820 = vld [vmem:[%s7 + $0x50] sm:$0xf]
        %v3821 = vld [vmem:[%s7 + $0x54] sm:$0xf]
        %v3822 = vld [vmem:[%s7 + $0x58] sm:$0xf]
        %v3823 = vld [vmem:[%s7 + $0x5c] sm:$0xf]
        %v3824 = vld [vmem:[%s7 + $0x60] sm:$0xf]
        %v3825 = vld [vmem:[%s7 + $0x64] sm:$0xf]
        %v3826 = vld [vmem:[%s7 + $0x68] sm:$0xf]
        %v3827 = vld [vmem:[%s7 + $0x6c] sm:$0xf]
        %v3828 = vld [vmem:[%s7 + $0x70] sm:$0xf]
        %v3829 = vld [vmem:[%s7 + $0x74] sm:$0xf]
        %v3830 = vld [vmem:[%s7 + $0x78] sm:$0xf]
        %v3831 = vld [vmem:[%s7 + $0x7c] sm:$0xf]
        %v3832 = vld [vmem:[%s7 + $0x80] sm:$0xf]
        %v3833 = vld [vmem:[%s7 + $0x84] sm:$0xf]
        %v3834 = vld [vmem:[%s7 + $0x88] sm:$0xf]
        %v3835 = vld [vmem:[%s7 + $0x8c] sm:$0xf]
        %v3836 = vld [vmem:[%s7 + $0x90] sm:$0xf]
        %v3837 = vld [vmem:[%s7 + $0x94] sm:$0xf]
        %v3838 = vld [vmem:[%s7 + $0x98] sm:$0xf]
        %v3839 = vld [vmem:[%s7 + $0x9c] sm:$0xf]
        %v3840 = vld [vmem:[%s7 + $0xa0] sm:$0xf]
        %v3841 = vld [vmem:[%s7 + $0xa4] sm:$0xf]
        %v3842 = vld [vmem:[%s7 + $0xa8] sm:$0xf]
        %v3843 = vld [vmem:[%s7 + $0xac] sm:$0xf]
        %v3844 = vld [vmem:[%s7 + $0xb0] sm:$0xf]
        %v3845 = vld [vmem:[%s7 + $0xb4] sm:$0xf]
        %v3846 = vld [vmem:[%s7 + $0xb8] sm:$0xf]
        %v3847 = vld [vmem:[%s7 + $0xbc] sm:$0xf]
        %v3848 = vld [vmem:[%s7 + $0xc0] sm:$0xf]
        %v3849 = vld [vmem:[%s7 + $0xc4] sm:$0xf]
        %v3850 = vld [vmem:[%s7 + $0xc8] sm:$0xf]
        %v3851 = vld [vmem:[%s7 + $0xcc] sm:$0xf]
        %v3852 = vld [vmem:[%s7 + $0xd0] sm:$0xf]
        %v3853 = vld [vmem:[%s7 + $0xd4] sm:$0xf]
        %v3854 = vld [vmem:[%s7 + $0xd8] sm:$0xf]
        %v3855 = vld [vmem:[%s7 + $0xdc] sm:$0xf]
        %v3856 = vld [vmem:[%s7 + $0xe0] sm:$0xf]
        %v3857 = vld [vmem:[%s7 + $0xe4] sm:$0xf]
        %v3858 = vld [vmem:[%s7 + $0xe8] sm:$0xf]
        %v3859 = vld [vmem:[%s7 + $0xec] sm:$0xf]
        %v3860 = vld [vmem:[%s7 + $0xf0] sm:$0xf]
        %v3861 = vld [vmem:[%s7 + $0xf4] sm:$0xf]
        %v3862 = vld [vmem:[%s7 + $0xf8] sm:$0xf]
        %v3863 = vld [vmem:[%s7 + $0xfc] sm:$0xf]
        %v3864 = vld [vmem:[%s7 + $0x100] sm:$0xf]
        %v3865 = vld [vmem:[%s7 + $0x104] sm:$0xf]
        %v3866 = vld [vmem:[%s7 + $0x108] sm:$0xf]
        %v3867 = vld [vmem:[%s7 + $0x10c] sm:$0xf]
        %v3868 = vld [vmem:[%s7 + $0x110] sm:$0xf]
        %v3869 = vld [vmem:[%s7 + $0x114] sm:$0xf]
        %v3870 = vld [vmem:[%s7 + $0x118] sm:$0xf]
        %v3871 = vld [vmem:[%s7 + $0x11c] sm:$0xf]
        %v3904 = vrot.slane %v3768, 1
        %v3905 = vrot.slane %v3769, 1
        %v3906 = vsel %vm1361, %v3904, %v3905
        %v3907 = vrot.slane %v3770, 1
        %v3908 = vrot.slane %v3771, 1
        %v3909 = vsel %vm1361, %v3907, %v3908
        %v3910 = vrot.slane %v3772, 1
        %v3911 = vrot.slane %v3773, 1
        %v3912 = vsel %vm1361, %v3910, %v3911
        %v3913 = vrot.slane %v3774, 1
        %v3914 = vrot.slane %v3775, 1
        %v3915 = vsel %vm1361, %v3913, %v3914
        %v3916 = vrot.slane %v3776, 1
        %v3917 = vrot.slane %v3777, 1
        %v3918 = vsel %vm1361, %v3916, %v3917
        %v3919 = vrot.slane %v3778, 1
        %v3920 = vrot.slane %v3779, 1
        %v3921 = vsel %vm1361, %v3919, %v3920
        %v3922 = vrot.slane %v3780, 1
        %v3923 = vrot.slane %v3781, 1
        %v3924 = vsel %vm1361, %v3922, %v3923
        %v3925 = vrot.slane %v3782, 1
        %v3926 = vrot.slane %v3783, 1
        %v3927 = vsel %vm1361, %v3925, %v3926
        %v3928 = vrot.slane %v3784, 1
        %v3929 = vrot.slane %v3785, 1
        %v3930 = vsel %vm1361, %v3928, %v3929
        %v3931 = vrot.slane %v3786, 1
        %v3932 = vrot.slane %v3787, 1
        %v3933 = vsel %vm1361, %v3931, %v3932
        %v3934 = vrot.slane %v3788, 1
        %v3935 = vrot.slane %v3789, 1
        %v3936 = vsel %vm1361, %v3934, %v3935
        %v3937 = vrot.slane %v3790, 1
        %v3938 = vrot.slane %v3791, 1
        %v3939 = vsel %vm1361, %v3937, %v3938
        %v3940 = vrot.slane %v3792, 1
        %v3941 = vrot.slane %v3793, 1
        %v3942 = vsel %vm1361, %v3940, %v3941
        %v3943 = vrot.slane %v3794, 1
        %v3944 = vrot.slane %v3795, 1
        %v3945 = vsel %vm1361, %v3943, %v3944
        %v3946 = vrot.slane %v3796, 1
        %v3947 = vrot.slane %v3797, 1
        %v3948 = vsel %vm1361, %v3946, %v3947
        %v3949 = vrot.slane %v3798, 1
        %v3950 = vrot.slane %v3799, 1
        %v3951 = vsel %vm1361, %v3949, %v3950
        %3952 = vrot.lane.b32.xlu0 %v1362, 64
        %v3953 = vpop.permute.xlu0 %3952
        %3954 = vrot.lane.b32.xlu0 %v1363, 64
        %v3955 = vpop.permute.xlu0 %3954
        %3956 = vrot.lane.b32.xlu0 %v3904, 64
        %v3957 = vpop.permute.xlu0 %3956
        %3958 = vrot.lane.b32.xlu0 %v3906, 64
        %v3959 = vpop.permute.xlu0 %3958
        %3960 = vrot.lane.b32.xlu0 %v3905, 64
        %v3961 = vpop.permute.xlu0 %3960
        %3962 = vrot.lane.b32.xlu0 %v3907, 64
        %v3963 = vpop.permute.xlu0 %3962
        %3964 = vrot.lane.b32.xlu0 %v3909, 64
        %v3965 = vpop.permute.xlu0 %3964
        %3966 = vrot.lane.b32.xlu0 %v3908, 64
        %v3967 = vpop.permute.xlu0 %3966
        %3968 = vrot.lane.b32.xlu0 %v3910, 64
        %v3969 = vpop.permute.xlu0 %3968
        %3970 = vrot.lane.b32.xlu0 %v3912, 64
        %v3971 = vpop.permute.xlu0 %3970
        %3972 = vrot.lane.b32.xlu0 %v3911, 64
        %v3973 = vpop.permute.xlu0 %3972
        %3974 = vrot.lane.b32.xlu0 %v3913, 64
        %v3975 = vpop.permute.xlu0 %3974
        %3976 = vrot.lane.b32.xlu0 %v3915, 64
        %v3977 = vpop.permute.xlu0 %3976
        %3978 = vrot.lane.b32.xlu0 %v3914, 64
        %v3979 = vpop.permute.xlu0 %3978
        %3980 = vrot.lane.b32.xlu0 %v3916, 64
        %v3981 = vpop.permute.xlu0 %3980
        %3982 = vrot.lane.b32.xlu0 %v3918, 64
        %v3983 = vpop.permute.xlu0 %3982
        %3984 = vrot.lane.b32.xlu0 %v3917, 64
        %v3985 = vpop.permute.xlu0 %3984
        %3986 = vrot.lane.b32.xlu0 %v3919, 64
        %v3987 = vpop.permute.xlu0 %3986
        %3988 = vrot.lane.b32.xlu0 %v3921, 64
        %v3989 = vpop.permute.xlu0 %3988
        %3990 = vrot.lane.b32.xlu0 %v3920, 64
        %v3991 = vpop.permute.xlu0 %3990
        %3992 = vrot.lane.b32.xlu0 %v3922, 64
        %v3993 = vpop.permute.xlu0 %3992
        %3994 = vrot.lane.b32.xlu0 %v3924, 64
        %v3995 = vpop.permute.xlu0 %3994
        %3996 = vrot.lane.b32.xlu0 %v3923, 64
        %v3997 = vpop.permute.xlu0 %3996
        %3998 = vrot.lane.b32.xlu0 %v3925, 64
        %v3999 = vpop.permute.xlu0 %3998
        %4000 = vrot.lane.b32.xlu0 %v3927, 64
        %v4001 = vpop.permute.xlu0 %4000
        %4002 = vrot.lane.b32.xlu0 %v3926, 64
        %v4003 = vpop.permute.xlu0 %4002
        %4004 = vrot.lane.b32.xlu0 %v3928, 64
        %v4005 = vpop.permute.xlu0 %4004
        %4006 = vrot.lane.b32.xlu0 %v3930, 64
        %v4007 = vpop.permute.xlu0 %4006
        %4008 = vrot.lane.b32.xlu0 %v3929, 64
        %v4009 = vpop.permute.xlu0 %4008
        %4010 = vrot.lane.b32.xlu0 %v3931, 64
        %v4011 = vpop.permute.xlu0 %4010
        %4012 = vrot.lane.b32.xlu0 %v3933, 64
        %v4013 = vpop.permute.xlu0 %4012
        %4014 = vrot.lane.b32.xlu0 %v3932, 64
        %v4015 = vpop.permute.xlu0 %4014
        %4016 = vrot.lane.b32.xlu0 %v3934, 64
        %v4017 = vpop.permute.xlu0 %4016
        %4018 = vrot.lane.b32.xlu0 %v3936, 64
        %v4019 = vpop.permute.xlu0 %4018
        %4020 = vrot.lane.b32.xlu0 %v3935, 64
        %v4021 = vpop.permute.xlu0 %4020
        %4022 = vrot.lane.b32.xlu0 %v3937, 64
        %v4023 = vpop.permute.xlu0 %4022
        %4024 = vrot.lane.b32.xlu0 %v3939, 64
        %v4025 = vpop.permute.xlu0 %4024
        %4026 = vrot.lane.b32.xlu0 %v3938, 64
        %v4027 = vpop.permute.xlu0 %4026
        %4028 = vrot.lane.b32.xlu0 %v3940, 64
        %v4029 = vpop.permute.xlu0 %4028
        %4030 = vrot.lane.b32.xlu0 %v3942, 64
        %v4031 = vpop.permute.xlu0 %4030
        %4032 = vrot.lane.b32.xlu0 %v3941, 64
        %v4033 = vpop.permute.xlu0 %4032
        %4034 = vrot.lane.b32.xlu0 %v3943, 64
        %v4035 = vpop.permute.xlu0 %4034
        %4036 = vrot.lane.b32.xlu0 %v3945, 64
        %v4037 = vpop.permute.xlu0 %4036
        %4038 = vrot.lane.b32.xlu0 %v3944, 64
        %v4039 = vpop.permute.xlu0 %4038
        %4040 = vrot.lane.b32.xlu0 %v3946, 64
        %v4041 = vpop.permute.xlu0 %4040
        %4042 = vrot.lane.b32.xlu0 %v3948, 64
        %v4043 = vpop.permute.xlu0 %4042
        %4044 = vrot.lane.b32.xlu0 %v3947, 64
        %v4045 = vpop.permute.xlu0 %4044
        %4046 = vrot.lane.b32.xlu0 %v3949, 64
        %v4047 = vpop.permute.xlu0 %4046
        %4048 = vrot.lane.b32.xlu0 %v3951, 64
        %v4049 = vpop.permute.xlu0 %4048
        %4050 = vrot.lane.b32.xlu0 %v3950, 64
        %v4051 = vpop.permute.xlu0 %4050
        %v4102 = vrot.slane %v3768, 2
        %v4103 = vrot.slane %v3769, 2
        %v4104 = vsel %vm1562, %v4102, %v4103
        %v4105 = vsel %vm1562, %v4103, %v1563
        %v4106 = vrot.slane %v3770, 2
        %v4107 = vrot.slane %v3771, 2
        %v4108 = vsel %vm1562, %v4106, %v4107
        %v4109 = vsel %vm1562, %v4107, %v1563
        %v4110 = vrot.slane %v3772, 2
        %v4111 = vrot.slane %v3773, 2
        %v4112 = vsel %vm1562, %v4110, %v4111
        %v4113 = vsel %vm1562, %v4111, %v1563
        %v4114 = vrot.slane %v3774, 2
        %v4115 = vrot.slane %v3775, 2
        %v4116 = vsel %vm1562, %v4114, %v4115
        %v4117 = vsel %vm1562, %v4115, %v1563
        %v4118 = vrot.slane %v3776, 2
        %v4119 = vrot.slane %v3777, 2
        %v4120 = vsel %vm1562, %v4118, %v4119
        %v4121 = vsel %vm1562, %v4119, %v1563
        %v4122 = vrot.slane %v3778, 2
        %v4123 = vrot.slane %v3779, 2
        %v4124 = vsel %vm1562, %v4122, %v4123
        %v4125 = vsel %vm1562, %v4123, %v1563
        %v4126 = vrot.slane %v3780, 2
        %v4127 = vrot.slane %v3781, 2
        %v4128 = vsel %vm1562, %v4126, %v4127
        %v4129 = vsel %vm1562, %v4127, %v1563
        %v4130 = vrot.slane %v3782, 2
        %v4131 = vrot.slane %v3783, 2
        %v4132 = vsel %vm1562, %v4130, %v4131
        %v4133 = vsel %vm1562, %v4131, %v1563
        %v4134 = vrot.slane %v3784, 2
        %v4135 = vrot.slane %v3785, 2
        %v4136 = vsel %vm1562, %v4134, %v4135
        %v4137 = vsel %vm1562, %v4135, %v1563
        %v4138 = vrot.slane %v3786, 2
        %v4139 = vrot.slane %v3787, 2
        %v4140 = vsel %vm1562, %v4138, %v4139
        %v4141 = vsel %vm1562, %v4139, %v1563
        %v4142 = vrot.slane %v3788, 2
        %v4143 = vrot.slane %v3789, 2
        %v4144 = vsel %vm1562, %v4142, %v4143
        %v4145 = vsel %vm1562, %v4143, %v1563
        %v4146 = vrot.slane %v3790, 2
        %v4147 = vrot.slane %v3791, 2
        %v4148 = vsel %vm1562, %v4146, %v4147
        %v4149 = vsel %vm1562, %v4147, %v1563
        %v4150 = vrot.slane %v3792, 2
        %v4151 = vrot.slane %v3793, 2
        %v4152 = vsel %vm1562, %v4150, %v4151
        %v4153 = vsel %vm1562, %v4151, %v1563
        %v4154 = vrot.slane %v3794, 2
        %v4155 = vrot.slane %v3795, 2
        %v4156 = vsel %vm1562, %v4154, %v4155
        %v4157 = vsel %vm1562, %v4155, %v1563
        %v4158 = vrot.slane %v3796, 2
        %v4159 = vrot.slane %v3797, 2
        %v4160 = vsel %vm1562, %v4158, %v4159
        %v4161 = vsel %vm1562, %v4159, %v1563
        %v4162 = vrot.slane %v3798, 2
        %v4163 = vrot.slane %v3799, 2
        %v4164 = vsel %vm1562, %v4162, %v4163
        %v4165 = vsel %vm1562, %v4163, %v1563
        %v4216 = vsel %vm1829, 0.0, %v3953
        %v4217 = vsel %vm1829, 0.0, %v3955
        %v4218 = vsel %vm1829, 0.0, %v3957
        %v4219 = vsel %vm1829, %v3768, %v3959
        %v4220 = vsel %vm1829, %v3769, %v3961
        %v4221 = vsel %vm1829, 0.0, %v3963
        %v4222 = vsel %vm1829, %v3770, %v3965
        %v4223 = vsel %vm1829, %v3771, %v3967
        %v4224 = vsel %vm1829, 0.0, %v3969
        %v4225 = vsel %vm1829, %v3772, %v3971
        %v4226 = vsel %vm1829, %v3773, %v3973
        %v4227 = vsel %vm1829, 0.0, %v3975
        %v4228 = vsel %vm1829, %v3774, %v3977
        %v4229 = vsel %vm1829, %v3775, %v3979
        %v4230 = vsel %vm1829, 0.0, %v3981
        %v4231 = vsel %vm1829, %v3776, %v3983
        %v4232 = vsel %vm1829, %v3777, %v3985
        %v4233 = vsel %vm1829, 0.0, %v3987
        %v4234 = vsel %vm1829, %v3778, %v3989
        %v4235 = vsel %vm1829, %v3779, %v3991
        %v4236 = vsel %vm1829, 0.0, %v3993
        %v4237 = vsel %vm1829, %v3780, %v3995
        %v4238 = vsel %vm1829, %v3781, %v3997
        %v4239 = vsel %vm1829, 0.0, %v3999
        %v4240 = vsel %vm1829, %v3782, %v4001
        %v4241 = vsel %vm1829, %v3783, %v4003
        %v4242 = vsel %vm1829, 0.0, %v4005
        %v4243 = vsel %vm1829, %v3784, %v4007
        %v4244 = vsel %vm1829, %v3785, %v4009
        %v4245 = vsel %vm1829, 0.0, %v4011
        %v4246 = vsel %vm1829, %v3786, %v4013
        %v4247 = vsel %vm1829, %v3787, %v4015
        %v4248 = vsel %vm1829, 0.0, %v4017
        %v4249 = vsel %vm1829, %v3788, %v4019
        %v4250 = vsel %vm1829, %v3789, %v4021
        %v4251 = vsel %vm1829, 0.0, %v4023
        %v4252 = vsel %vm1829, %v3790, %v4025
        %v4253 = vsel %vm1829, %v3791, %v4027
        %v4254 = vsel %vm1829, 0.0, %v4029
        %v4255 = vsel %vm1829, %v3792, %v4031
        %v4256 = vsel %vm1829, %v3793, %v4033
        %v4257 = vsel %vm1829, 0.0, %v4035
        %v4258 = vsel %vm1829, %v3794, %v4037
        %v4259 = vsel %vm1829, %v3795, %v4039
        %v4260 = vsel %vm1829, 0.0, %v4041
        %v4261 = vsel %vm1829, %v3796, %v4043
        %v4262 = vsel %vm1829, %v3797, %v4045
        %v4263 = vsel %vm1829, 0.0, %v4047
        %v4264 = vsel %vm1829, %v3798, %v4049
        %v4265 = vsel %vm1829, %v3799, %v4051
        %v4266 = vpack.c.bf16 %v4217, %v4216
        %v4267 = vpack.c.bf16 %v1564, %v1563
        %v4268 = vpack.c.bf16 %v4216, %v4216
        %v4269 = vpack.c.bf16 %v1564, %v1564
        %v4270 = vpack.c.bf16 %v4219, %v4218
        %v4271 = vpack.c.bf16 %v4104, %v4102
        %v4272 = vpack.c.bf16 %v4220, %v4220
        %v4273 = vpack.c.bf16 %v4105, %v4105
        %v4274 = vpack.c.bf16 %v4222, %v4221
        %v4275 = vpack.c.bf16 %v4108, %v4106
        %v4276 = vpack.c.bf16 %v4223, %v4223
        %v4277 = vpack.c.bf16 %v4109, %v4109
        %v4278 = vpack.c.bf16 %v4225, %v4224
        %v4279 = vpack.c.bf16 %v4112, %v4110
        %v4280 = vpack.c.bf16 %v4226, %v4226
        %v4281 = vpack.c.bf16 %v4113, %v4113
        %v4282 = vpack.c.bf16 %v4228, %v4227
        %v4283 = vpack.c.bf16 %v4116, %v4114
        %v4284 = vpack.c.bf16 %v4229, %v4229
        %v4285 = vpack.c.bf16 %v4117, %v4117
        %v4286 = vpack.c.bf16 %v4231, %v4230
        %v4287 = vpack.c.bf16 %v4120, %v4118
        %v4288 = vpack.c.bf16 %v4232, %v4232
        %v4289 = vpack.c.bf16 %v4121, %v4121
        %v4290 = vpack.c.bf16 %v4234, %v4233
        %v4291 = vpack.c.bf16 %v4124, %v4122
        %v4292 = vpack.c.bf16 %v4235, %v4235
        %v4293 = vpack.c.bf16 %v4125, %v4125
        %v4294 = vpack.c.bf16 %v4237, %v4236
        %v4295 = vpack.c.bf16 %v4128, %v4126
        %v4296 = vpack.c.bf16 %v4238, %v4238
        %v4297 = vpack.c.bf16 %v4129, %v4129
        %v4298 = vpack.c.bf16 %v4240, %v4239
        %v4299 = vpack.c.bf16 %v4132, %v4130
        %v4300 = vpack.c.bf16 %v4241, %v4241
        %v4301 = vpack.c.bf16 %v4133, %v4133
        %v4302 = vpack.c.bf16 %v4243, %v4242
        %v4303 = vpack.c.bf16 %v4136, %v4134
        %v4304 = vpack.c.bf16 %v4244, %v4244
        %v4305 = vpack.c.bf16 %v4137, %v4137
        %v4306 = vpack.c.bf16 %v4246, %v4245
        %v4307 = vpack.c.bf16 %v4140, %v4138
        %v4308 = vpack.c.bf16 %v4247, %v4247
        %v4309 = vpack.c.bf16 %v4141, %v4141
        %v4310 = vpack.c.bf16 %v4249, %v4248
        %v4311 = vpack.c.bf16 %v4144, %v4142
        %v4312 = vpack.c.bf16 %v4250, %v4250
        %v4313 = vpack.c.bf16 %v4145, %v4145
        %v4314 = vpack.c.bf16 %v4252, %v4251
        %v4315 = vpack.c.bf16 %v4148, %v4146
        %v4316 = vpack.c.bf16 %v4253, %v4253
        %v4317 = vpack.c.bf16 %v4149, %v4149
        %v4318 = vpack.c.bf16 %v4255, %v4254
        %v4319 = vpack.c.bf16 %v4152, %v4150
        %v4320 = vpack.c.bf16 %v4256, %v4256
        %v4321 = vpack.c.bf16 %v4153, %v4153
        %v4322 = vpack.c.bf16 %v4258, %v4257
        %v4323 = vpack.c.bf16 %v4156, %v4154
        %v4324 = vpack.c.bf16 %v4259, %v4259
        %v4325 = vpack.c.bf16 %v4157, %v4157
        %v4326 = vpack.c.bf16 %v4261, %v4260
        %v4327 = vpack.c.bf16 %v4160, %v4158
        %v4328 = vpack.c.bf16 %v4262, %v4262
        %v4329 = vpack.c.bf16 %v4161, %v4161
        %v4330 = vpack.c.bf16 %v4264, %v4263
        %v4331 = vpack.c.bf16 %v4164, %v4162
        %v4332 = vpack.c.bf16 %v4265, %v4265
        %v4333 = vpack.c.bf16 %v4165, %v4165
        %v4335 = vshrl.u32 %v4266, 16
        %v4337 = vrot.slane %v4335, 3
        %v4338 = vshll.u32 %v4266, 16
        %v4340 = vrot.slane %v4338, 4
        %v4341 = vor.u32 %v4337, %v4340
        %v4343 = vshrl.u32 %v4268, 16
        %v4345 = vrot.slane %v4343, 3
        %v4346 = vshll.u32 %v4268, 16
        %v4348 = vrot.slane %v4346, 4
        %v4349 = vor.u32 %v4345, %v4348
        %v4350 = vsel %vm1915, %v4341, %v4349
        %v4352 = vshrl.u32 %v4267, 16
        %v4354 = vrot.slane %v4352, 3
        %v4355 = vshll.u32 %v4267, 16
        %v4357 = vrot.slane %v4355, 4
        %v4358 = vor.u32 %v4354, %v4357
        %v4360 = vshrl.u32 %v4269, 16
        %v4362 = vrot.slane %v4360, 3
        %v4363 = vshll.u32 %v4269, 16
        %v4365 = vrot.slane %v4363, 4
        %v4366 = vor.u32 %v4362, %v4365
        %v4367 = vsel %vm1915, %v4358, %v4366
        %v4369 = vshrl.u32 %v4270, 16
        %v4371 = vrot.slane %v4369, 3
        %v4372 = vshll.u32 %v4270, 16
        %v4374 = vrot.slane %v4372, 4
        %v4375 = vor.u32 %v4371, %v4374
        %v4377 = vshrl.u32 %v4272, 16
        %v4379 = vrot.slane %v4377, 3
        %v4380 = vshll.u32 %v4272, 16
        %v4382 = vrot.slane %v4380, 4
        %v4383 = vor.u32 %v4379, %v4382
        %v4384 = vsel %vm1915, %v4375, %v4383
        %v4386 = vshrl.u32 %v4271, 16
        %v4388 = vrot.slane %v4386, 3
        %v4389 = vshll.u32 %v4271, 16
        %v4391 = vrot.slane %v4389, 4
        %v4392 = vor.u32 %v4388, %v4391
        %v4394 = vshrl.u32 %v4273, 16
        %v4396 = vrot.slane %v4394, 3
        %v4397 = vshll.u32 %v4273, 16
        %v4399 = vrot.slane %v4397, 4
        %v4400 = vor.u32 %v4396, %v4399
        %v4401 = vsel %vm1915, %v4392, %v4400
        %v4403 = vshrl.u32 %v4274, 16
        %v4405 = vrot.slane %v4403, 3
        %v4406 = vshll.u32 %v4274, 16
        %v4408 = vrot.slane %v4406, 4
        %v4409 = vor.u32 %v4405, %v4408
        %v4411 = vshrl.u32 %v4276, 16
        %v4413 = vrot.slane %v4411, 3
        %v4414 = vshll.u32 %v4276, 16
        %v4416 = vrot.slane %v4414, 4
        %v4417 = vor.u32 %v4413, %v4416
        %v4418 = vsel %vm1915, %v4409, %v4417
        %v4420 = vshrl.u32 %v4275, 16
        %v4422 = vrot.slane %v4420, 3
        %v4423 = vshll.u32 %v4275, 16
        %v4425 = vrot.slane %v4423, 4
        %v4426 = vor.u32 %v4422, %v4425
        %v4428 = vshrl.u32 %v4277, 16
        %v4430 = vrot.slane %v4428, 3
        %v4431 = vshll.u32 %v4277, 16
        %v4433 = vrot.slane %v4431, 4
        %v4434 = vor.u32 %v4430, %v4433
        %v4435 = vsel %vm1915, %v4426, %v4434
        %v4437 = vshrl.u32 %v4278, 16
        %v4439 = vrot.slane %v4437, 3
        %v4440 = vshll.u32 %v4278, 16
        %v4442 = vrot.slane %v4440, 4
        %v4443 = vor.u32 %v4439, %v4442
        %v4445 = vshrl.u32 %v4280, 16
        %v4447 = vrot.slane %v4445, 3
        %v4448 = vshll.u32 %v4280, 16
        %v4450 = vrot.slane %v4448, 4
        %v4451 = vor.u32 %v4447, %v4450
        %v4452 = vsel %vm1915, %v4443, %v4451
        %v4454 = vshrl.u32 %v4279, 16
        %v4456 = vrot.slane %v4454, 3
        %v4457 = vshll.u32 %v4279, 16
        %v4459 = vrot.slane %v4457, 4
        %v4460 = vor.u32 %v4456, %v4459
        %v4462 = vshrl.u32 %v4281, 16
        %v4464 = vrot.slane %v4462, 3
        %v4465 = vshll.u32 %v4281, 16
        %v4467 = vrot.slane %v4465, 4
        %v4468 = vor.u32 %v4464, %v4467
        %v4469 = vsel %vm1915, %v4460, %v4468
        %v4471 = vshrl.u32 %v4282, 16
        %v4473 = vrot.slane %v4471, 3
        %v4474 = vshll.u32 %v4282, 16
        %v4476 = vrot.slane %v4474, 4
        %v4477 = vor.u32 %v4473, %v4476
        %v4479 = vshrl.u32 %v4284, 16
        %v4481 = vrot.slane %v4479, 3
        %v4482 = vshll.u32 %v4284, 16
        %v4484 = vrot.slane %v4482, 4
        %v4485 = vor.u32 %v4481, %v4484
        %v4486 = vsel %vm1915, %v4477, %v4485
        %v4488 = vshrl.u32 %v4283, 16
        %v4490 = vrot.slane %v4488, 3
        %v4491 = vshll.u32 %v4283, 16
        %v4493 = vrot.slane %v4491, 4
        %v4494 = vor.u32 %v4490, %v4493
        %v4496 = vshrl.u32 %v4285, 16
        %v4498 = vrot.slane %v4496, 3
        %v4499 = vshll.u32 %v4285, 16
        %v4501 = vrot.slane %v4499, 4
        %v4502 = vor.u32 %v4498, %v4501
        %v4503 = vsel %vm1915, %v4494, %v4502
        %v4505 = vshrl.u32 %v4286, 16
        %v4507 = vrot.slane %v4505, 3
        %v4508 = vshll.u32 %v4286, 16
        %v4510 = vrot.slane %v4508, 4
        %v4511 = vor.u32 %v4507, %v4510
        %v4513 = vshrl.u32 %v4288, 16
        %v4515 = vrot.slane %v4513, 3
        %v4516 = vshll.u32 %v4288, 16
        %v4518 = vrot.slane %v4516, 4
        %v4519 = vor.u32 %v4515, %v4518
        %v4520 = vsel %vm1915, %v4511, %v4519
        %v4522 = vshrl.u32 %v4287, 16
        %v4524 = vrot.slane %v4522, 3
        %v4525 = vshll.u32 %v4287, 16
        %v4527 = vrot.slane %v4525, 4
        %v4528 = vor.u32 %v4524, %v4527
        %v4530 = vshrl.u32 %v4289, 16
        %v4532 = vrot.slane %v4530, 3
        %v4533 = vshll.u32 %v4289, 16
        %v4535 = vrot.slane %v4533, 4
        %v4536 = vor.u32 %v4532, %v4535
        %v4537 = vsel %vm1915, %v4528, %v4536
        %v4539 = vshrl.u32 %v4290, 16
        %v4541 = vrot.slane %v4539, 3
        %v4542 = vshll.u32 %v4290, 16
        %v4544 = vrot.slane %v4542, 4
        %v4545 = vor.u32 %v4541, %v4544
        %v4547 = vshrl.u32 %v4292, 16
        %v4549 = vrot.slane %v4547, 3
        %v4550 = vshll.u32 %v4292, 16
        %v4552 = vrot.slane %v4550, 4
        %v4553 = vor.u32 %v4549, %v4552
        %v4554 = vsel %vm1915, %v4545, %v4553
        %v4556 = vshrl.u32 %v4291, 16
        %v4558 = vrot.slane %v4556, 3
        %v4559 = vshll.u32 %v4291, 16
        %v4561 = vrot.slane %v4559, 4
        %v4562 = vor.u32 %v4558, %v4561
        %v4564 = vshrl.u32 %v4293, 16
        %v4566 = vrot.slane %v4564, 3
        %v4567 = vshll.u32 %v4293, 16
        %v4569 = vrot.slane %v4567, 4
        %v4570 = vor.u32 %v4566, %v4569
        %v4571 = vsel %vm1915, %v4562, %v4570
        %v4573 = vshrl.u32 %v4294, 16
        %v4575 = vrot.slane %v4573, 3
        %v4576 = vshll.u32 %v4294, 16
        %v4578 = vrot.slane %v4576, 4
        %v4579 = vor.u32 %v4575, %v4578
        %v4581 = vshrl.u32 %v4296, 16
        %v4583 = vrot.slane %v4581, 3
        %v4584 = vshll.u32 %v4296, 16
        %v4586 = vrot.slane %v4584, 4
        %v4587 = vor.u32 %v4583, %v4586
        %v4588 = vsel %vm1915, %v4579, %v4587
        %v4590 = vshrl.u32 %v4295, 16
        %v4592 = vrot.slane %v4590, 3
        %v4593 = vshll.u32 %v4295, 16
        %v4595 = vrot.slane %v4593, 4
        %v4596 = vor.u32 %v4592, %v4595
        %v4598 = vshrl.u32 %v4297, 16
        %v4600 = vrot.slane %v4598, 3
        %v4601 = vshll.u32 %v4297, 16
        %v4603 = vrot.slane %v4601, 4
        %v4604 = vor.u32 %v4600, %v4603
        %v4605 = vsel %vm1915, %v4596, %v4604
        %v4607 = vshrl.u32 %v4298, 16
        %v4609 = vrot.slane %v4607, 3
        %v4610 = vshll.u32 %v4298, 16
        %v4612 = vrot.slane %v4610, 4
        %v4613 = vor.u32 %v4609, %v4612
        %v4615 = vshrl.u32 %v4300, 16
        %v4617 = vrot.slane %v4615, 3
        %v4618 = vshll.u32 %v4300, 16
        %v4620 = vrot.slane %v4618, 4
        %v4621 = vor.u32 %v4617, %v4620
        %v4622 = vsel %vm1915, %v4613, %v4621
        %v4624 = vshrl.u32 %v4299, 16
        %v4626 = vrot.slane %v4624, 3
        %v4627 = vshll.u32 %v4299, 16
        %v4629 = vrot.slane %v4627, 4
        %v4630 = vor.u32 %v4626, %v4629
        %v4632 = vshrl.u32 %v4301, 16
        %v4634 = vrot.slane %v4632, 3
        %v4635 = vshll.u32 %v4301, 16
        %v4637 = vrot.slane %v4635, 4
        %v4638 = vor.u32 %v4634, %v4637
        %v4639 = vsel %vm1915, %v4630, %v4638
        %v4641 = vshrl.u32 %v4302, 16
        %v4643 = vrot.slane %v4641, 3
        %v4644 = vshll.u32 %v4302, 16
        %v4646 = vrot.slane %v4644, 4
        %v4647 = vor.u32 %v4643, %v4646
        %v4649 = vshrl.u32 %v4304, 16
        %v4651 = vrot.slane %v4649, 3
        %v4652 = vshll.u32 %v4304, 16
        %v4654 = vrot.slane %v4652, 4
        %v4655 = vor.u32 %v4651, %v4654
        %v4656 = vsel %vm1915, %v4647, %v4655
        %v4658 = vshrl.u32 %v4303, 16
        %v4660 = vrot.slane %v4658, 3
        %v4661 = vshll.u32 %v4303, 16
        %v4663 = vrot.slane %v4661, 4
        %v4664 = vor.u32 %v4660, %v4663
        %v4666 = vshrl.u32 %v4305, 16
        %v4668 = vrot.slane %v4666, 3
        %v4669 = vshll.u32 %v4305, 16
        %v4671 = vrot.slane %v4669, 4
        %v4672 = vor.u32 %v4668, %v4671
        %v4673 = vsel %vm1915, %v4664, %v4672
        %v4675 = vshrl.u32 %v4306, 16
        %v4677 = vrot.slane %v4675, 3
        %v4678 = vshll.u32 %v4306, 16
        %v4680 = vrot.slane %v4678, 4
        %v4681 = vor.u32 %v4677, %v4680
        %v4683 = vshrl.u32 %v4308, 16
        %v4685 = vrot.slane %v4683, 3
        %v4686 = vshll.u32 %v4308, 16
        %v4688 = vrot.slane %v4686, 4
        %v4689 = vor.u32 %v4685, %v4688
        %v4690 = vsel %vm1915, %v4681, %v4689
        %v4692 = vshrl.u32 %v4307, 16
        %v4694 = vrot.slane %v4692, 3
        %v4695 = vshll.u32 %v4307, 16
        %v4697 = vrot.slane %v4695, 4
        %v4698 = vor.u32 %v4694, %v4697
        %v4700 = vshrl.u32 %v4309, 16
        %v4702 = vrot.slane %v4700, 3
        %v4703 = vshll.u32 %v4309, 16
        %v4705 = vrot.slane %v4703, 4
        %v4706 = vor.u32 %v4702, %v4705
        %v4707 = vsel %vm1915, %v4698, %v4706
        %v4709 = vshrl.u32 %v4310, 16
        %v4711 = vrot.slane %v4709, 3
        %v4712 = vshll.u32 %v4310, 16
        %v4714 = vrot.slane %v4712, 4
        %v4715 = vor.u32 %v4711, %v4714
        %v4717 = vshrl.u32 %v4312, 16
        %v4719 = vrot.slane %v4717, 3
        %v4720 = vshll.u32 %v4312, 16
        %v4722 = vrot.slane %v4720, 4
        %v4723 = vor.u32 %v4719, %v4722
        %v4724 = vsel %vm1915, %v4715, %v4723
        %v4726 = vshrl.u32 %v4311, 16
        %v4728 = vrot.slane %v4726, 3
        %v4729 = vshll.u32 %v4311, 16
        %v4731 = vrot.slane %v4729, 4
        %v4732 = vor.u32 %v4728, %v4731
        %v4734 = vshrl.u32 %v4313, 16
        %v4736 = vrot.slane %v4734, 3
        %v4737 = vshll.u32 %v4313, 16
        %v4739 = vrot.slane %v4737, 4
        %v4740 = vor.u32 %v4736, %v4739
        %v4741 = vsel %vm1915, %v4732, %v4740
        %v4743 = vshrl.u32 %v4314, 16
        %v4745 = vrot.slane %v4743, 3
        %v4746 = vshll.u32 %v4314, 16
        %v4748 = vrot.slane %v4746, 4
        %v4749 = vor.u32 %v4745, %v4748
        %v4751 = vshrl.u32 %v4316, 16
        %v4753 = vrot.slane %v4751, 3
        %v4754 = vshll.u32 %v4316, 16
        %v4756 = vrot.slane %v4754, 4
        %v4757 = vor.u32 %v4753, %v4756
        %v4758 = vsel %vm1915, %v4749, %v4757
        %v4760 = vshrl.u32 %v4315, 16
        %v4762 = vrot.slane %v4760, 3
        %v4763 = vshll.u32 %v4315, 16
        %v4765 = vrot.slane %v4763, 4
        %v4766 = vor.u32 %v4762, %v4765
        %v4768 = vshrl.u32 %v4317, 16
        %v4770 = vrot.slane %v4768, 3
        %v4771 = vshll.u32 %v4317, 16
        %v4773 = vrot.slane %v4771, 4
        %v4774 = vor.u32 %v4770, %v4773
        %v4775 = vsel %vm1915, %v4766, %v4774
        %v4777 = vshrl.u32 %v4318, 16
        %v4779 = vrot.slane %v4777, 3
        %v4780 = vshll.u32 %v4318, 16
        %v4782 = vrot.slane %v4780, 4
        %v4783 = vor.u32 %v4779, %v4782
        %v4785 = vshrl.u32 %v4320, 16
        %v4787 = vrot.slane %v4785, 3
        %v4788 = vshll.u32 %v4320, 16
        %v4790 = vrot.slane %v4788, 4
        %v4791 = vor.u32 %v4787, %v4790
        %v4792 = vsel %vm1915, %v4783, %v4791
        %v4794 = vshrl.u32 %v4319, 16
        %v4796 = vrot.slane %v4794, 3
        %v4797 = vshll.u32 %v4319, 16
        %v4799 = vrot.slane %v4797, 4
        %v4800 = vor.u32 %v4796, %v4799
        %v4802 = vshrl.u32 %v4321, 16
        %v4804 = vrot.slane %v4802, 3
        %v4805 = vshll.u32 %v4321, 16
        %v4807 = vrot.slane %v4805, 4
        %v4808 = vor.u32 %v4804, %v4807
        %v4809 = vsel %vm1915, %v4800, %v4808
        %v4811 = vshrl.u32 %v4322, 16
        %v4813 = vrot.slane %v4811, 3
        %v4814 = vshll.u32 %v4322, 16
        %v4816 = vrot.slane %v4814, 4
        %v4817 = vor.u32 %v4813, %v4816
        %v4819 = vshrl.u32 %v4324, 16
        %v4821 = vrot.slane %v4819, 3
        %v4822 = vshll.u32 %v4324, 16
        %v4824 = vrot.slane %v4822, 4
        %v4825 = vor.u32 %v4821, %v4824
        %v4826 = vsel %vm1915, %v4817, %v4825
        %v4828 = vshrl.u32 %v4323, 16
        %v4830 = vrot.slane %v4828, 3
        %v4831 = vshll.u32 %v4323, 16
        %v4833 = vrot.slane %v4831, 4
        %v4834 = vor.u32 %v4830, %v4833
        %v4836 = vshrl.u32 %v4325, 16
        %v4838 = vrot.slane %v4836, 3
        %v4839 = vshll.u32 %v4325, 16
        %v4841 = vrot.slane %v4839, 4
        %v4842 = vor.u32 %v4838, %v4841
        %v4843 = vsel %vm1915, %v4834, %v4842
        %v4845 = vshrl.u32 %v4326, 16
        %v4847 = vrot.slane %v4845, 3
        %v4848 = vshll.u32 %v4326, 16
        %v4850 = vrot.slane %v4848, 4
        %v4851 = vor.u32 %v4847, %v4850
        %v4853 = vshrl.u32 %v4328, 16
        %v4855 = vrot.slane %v4853, 3
        %v4856 = vshll.u32 %v4328, 16
        %v4858 = vrot.slane %v4856, 4
        %v4859 = vor.u32 %v4855, %v4858
        %v4860 = vsel %vm1915, %v4851, %v4859
        %v4862 = vshrl.u32 %v4327, 16
        %v4864 = vrot.slane %v4862, 3
        %v4865 = vshll.u32 %v4327, 16
        %v4867 = vrot.slane %v4865, 4
        %v4868 = vor.u32 %v4864, %v4867
        %v4870 = vshrl.u32 %v4329, 16
        %v4872 = vrot.slane %v4870, 3
        %v4873 = vshll.u32 %v4329, 16
        %v4875 = vrot.slane %v4873, 4
        %v4876 = vor.u32 %v4872, %v4875
        %v4877 = vsel %vm1915, %v4868, %v4876
        %v4895 = vshrl.u32 %v4330, 16
        %v4897 = vrot.slane %v4895, 3
        %v4898 = vshll.u32 %v4330, 16
        %v4900 = vrot.slane %v4898, 4
        %v4901 = vor.u32 %v4897, %v4900
        %v4903 = vshrl.u32 %v4332, 16
        %v4905 = vrot.slane %v4903, 3
        %v4906 = vshll.u32 %v4332, 16
        %v4908 = vrot.slane %v4906, 4
        %v4909 = vor.u32 %v4905, %v4908
        %v4910 = vsel %vm1915, %v4901, %v4909
        %v4912 = vshrl.u32 %v4331, 16
        %v4914 = vrot.slane %v4912, 3
        %v4915 = vshll.u32 %v4331, 16
        %v4917 = vrot.slane %v4915, 4
        %v4918 = vor.u32 %v4914, %v4917
        %v4920 = vshrl.u32 %v4333, 16
        %v4922 = vrot.slane %v4920, 3
        %v4923 = vshll.u32 %v4333, 16
        %v4925 = vrot.slane %v4923, 4
        %v4926 = vor.u32 %v4922, %v4925
        %v4927 = vsel %vm1915, %v4918, %v4926
        %v4953 = vunpack.c.l.b16 %v3824
        %v4954 = vunpack.c.l.b16 %v3825
        %v4955 = vunpack.c.l.b16 %v3826
        %v4956 = vunpack.c.l.b16 %v3827
        %v4957 = vunpack.c.l.b16 %v3828
        %v4958 = vunpack.c.l.b16 %v3829
        %v4959 = vunpack.c.l.b16 %v3830
        %v4960 = vunpack.c.l.b16 %v3831
        %v4961 = vunpack.c.l.b16 %v3832
        %v4962 = vunpack.c.l.b16 %v3833
        %v4963 = vunpack.c.l.b16 %v3834
        %v4964 = vunpack.c.l.b16 %v3835
        %v4965 = vunpack.c.l.b16 %v3836
        %v4966 = vunpack.c.l.b16 %v3837
        %v4967 = vunpack.c.l.b16 %v3838
        %v4968 = vunpack.c.l.b16 %v3839
        %v4969 = vunpack.c.l.b16 %v3840
        %v4970 = vunpack.c.l.b16 %v3841
        %v4971 = vunpack.c.l.b16 %v3842
        %v4972 = vunpack.c.l.b16 %v3843
        %v4973 = vunpack.c.l.b16 %v3844
        %v4974 = vunpack.c.l.b16 %v3845
        %v4975 = vunpack.c.l.b16 %v3846
        %v4976 = vunpack.c.l.b16 %v3847
        %v4977 = vpack.c.b16 %v4954, %v4953
        %v4978 = vpack.c.b16 %v4956, %v4955
        %v4979 = vpack.c.b16 %v4958, %v4957
        %v4980 = vpack.c.b16 %v4960, %v4959
        %v4981 = vpack.c.b16 %v4962, %v4961
        %v4982 = vpack.c.b16 %v4964, %v4963
        %v4983 = vpack.c.b16 %v4966, %v4965
        %v4984 = vpack.c.b16 %v4968, %v4967
        %v4985 = vpack.c.b16 %v4970, %v4969
        %v4986 = vpack.c.b16 %v4972, %v4971
        %v4987 = vpack.c.b16 %v4974, %v4973
        %v4988 = vpack.c.b16 %v4976, %v4975
        %v5002 = vsel %vm1829, %v4401, 0
        %v5005 = vsel %vm1829, %v4435, 0
        %v5008 = vsel %vm1829, %v4469, 0
        %v5011 = vsel %vm1829, %v4503, 0
        %v5014 = vsel %vm1829, %v4537, 0
        %v5017 = vsel %vm1829, %v4571, 0
        %v5020 = vsel %vm1829, %v4605, 0
        %v5023 = vsel %vm1829, %v4639, 0
        %v5026 = vsel %vm1829, %v4673, 0
        %v5029 = vsel %vm1829, %v4707, 0
        %v5032 = vsel %vm1829, %v4741, 0
        %v5035 = vsel %vm1829, %v4775, 0
        %v5038 = vsel %vm1829, %v4809, 0
        %v5041 = vsel %vm1829, %v4843, 0
        %v5044 = vsel %vm1829, %v4877, 0
        %v5047 = vsel %vm1829, %v4927, 0
        %5049 = vmatprep.subr.bf16.mxu0 0
        %5050 = vmatpush1.bf16.msra.mxu0 %v4984
        %5051 = vmatprep.subr.bf16.mxu0 0
        %5052 = vmatpush1.bf16.msra.mxu0 %v4983
        %5053 = vmatprep.subr.bf16.mxu0 0
        %5054 = vmatpush1.bf16.msra.mxu0 %v4982
        %5055 = vmatprep.subr.bf16.mxu0 0
        %5056 = vmatpush1.bf16.msra.mxu0 %v4981
        %5057 = vmatprep.subr.bf16.mxu0 0
        %5058 = vmatpush1.bf16.msra.mxu0 %v4980
        %5059 = vmatprep.subr.bf16.mxu0 0
        %5060 = vmatpush1.bf16.msra.mxu0 %v4979
        %5061 = vmatprep.subr.bf16.mxu0 0
        %5062 = vmatpush1.bf16.msra.mxu0 %v4978
        %5063 = vmatprep.subr.bf16.mxu0 0
        %5064 = vmatpush1.bf16.msra.mxu0 %v4977
        %5065 = vmatprep.subr.bf16.mxu0 0
        %5066 = vmatpush2.bf16.msra.mxu0 0
        %5067 = vmatprep.subr.bf16.mxu0 0
        %5068 = vmatpush2.bf16.msra.mxu0 0
        %5069 = vmatprep.subr.bf16.mxu0 0
        %5070 = vmatpush2.bf16.msra.mxu0 0
        %5071 = vmatprep.subr.bf16.mxu0 0
        %5072 = vmatpush2.bf16.msra.mxu0 0
        %5073 = vmatprep.subr.bf16.mxu0 0
        %5074 = vmatpush2.bf16.msra.mxu0 %v4988
        %5075 = vmatprep.subr.bf16.mxu0 0
        %5076 = vmatpush2.bf16.msra.mxu0 %v4987
        %5077 = vmatprep.subr.bf16.mxu0 0
        %5078 = vmatpush2.bf16.msra.mxu0 %v4986
        %5079 = vmatprep.subr.bf16.mxu0 0
        %5080 = vmatpush2.bf16.msra.mxu0 %v4985
        %5081 = vmatprep.mubr.bf16.mxu0 %v5002
        %5082 = vmatmul.mubr.bf16.gmra.mxu0 %v4384
        %v5083 = vpop.f32.mrf.mxu0
        %v5084 = vadd.f32 0.0, %v5083
        %v5085 = vpop.f32.mrf.mxu0
        %v5086 = vpop.f32.mrf.mxu0
        %v5087 = vadd.f32 0.0, %v5086
        %v5088 = vpop.f32.mrf.mxu0
        %5089 = vmatprep.mubr.bf16.mxu0 %v5005
        %5090 = vmatmul.mubr.bf16.gmra.mxu0 %v4418
        %v5091 = vpop.f32.mrf.mxu0
        %v5092 = vadd.f32 0.0, %v5091
        %v5093 = vpop.f32.mrf.mxu0
        %v5094 = vpop.f32.mrf.mxu0
        %v5095 = vadd.f32 0.0, %v5094
        %v5096 = vpop.f32.mrf.mxu0
        %5097 = vmatprep.mubr.bf16.mxu0 %v5008
        %5098 = vmatmul.mubr.bf16.gmra.mxu0 %v4452
        %v5099 = vpop.f32.mrf.mxu0
        %v5100 = vadd.f32 0.0, %v5099
        %v5101 = vpop.f32.mrf.mxu0
        %v5102 = vpop.f32.mrf.mxu0
        %v5103 = vadd.f32 0.0, %v5102
        %v5104 = vpop.f32.mrf.mxu0
        %5105 = vmatprep.mubr.bf16.mxu0 %v5011
        %5106 = vmatmul.mubr.bf16.gmra.mxu0 %v4486
        %v5107 = vpop.f32.mrf.mxu0
        %v5108 = vadd.f32 0.0, %v5107
        %v5109 = vpop.f32.mrf.mxu0
        %v5110 = vpop.f32.mrf.mxu0
        %v5111 = vadd.f32 0.0, %v5110
        %v5112 = vpop.f32.mrf.mxu0
        %5113 = vmatprep.mubr.bf16.mxu0 %v5014
        %5114 = vmatmul.mubr.bf16.gmra.mxu0 %v4520
        %v5115 = vpop.f32.mrf.mxu0
        %v5116 = vadd.f32 0.0, %v5115
        %v5117 = vpop.f32.mrf.mxu0
        %v5118 = vpop.f32.mrf.mxu0
        %v5119 = vadd.f32 0.0, %v5118
        %v5120 = vpop.f32.mrf.mxu0
        %5121 = vmatprep.mubr.bf16.mxu0 %v5017
        %5122 = vmatmul.mubr.bf16.gmra.mxu0 %v4554
        %v5123 = vpop.f32.mrf.mxu0
        %v5124 = vadd.f32 0.0, %v5123
        %v5125 = vpop.f32.mrf.mxu0
        %v5126 = vpop.f32.mrf.mxu0
        %v5127 = vadd.f32 0.0, %v5126
        %v5128 = vpop.f32.mrf.mxu0
        %5129 = vmatprep.mubr.bf16.mxu0 %v5020
        %5130 = vmatmul.mubr.bf16.gmra.mxu0 %v4588
        %v5131 = vpop.f32.mrf.mxu0
        %v5132 = vadd.f32 0.0, %v5131
        %v5133 = vpop.f32.mrf.mxu0
        %v5134 = vpop.f32.mrf.mxu0
        %v5135 = vadd.f32 0.0, %v5134
        %v5136 = vpop.f32.mrf.mxu0
        %5137 = vmatprep.mubr.bf16.mxu0 %v5023
        %5138 = vmatmul.mubr.bf16.gmra.mxu0 %v4622
        %v5139 = vpop.f32.mrf.mxu0
        %v5140 = vadd.f32 0.0, %v5139
        %v5141 = vpop.f32.mrf.mxu0
        %v5142 = vpop.f32.mrf.mxu0
        %v5143 = vadd.f32 0.0, %v5142
        %v5144 = vpop.f32.mrf.mxu0
        %5145 = vmatprep.mubr.bf16.mxu0 %v5026
        %5146 = vmatmul.mubr.bf16.gmra.mxu0 %v4656
        %v5147 = vpop.f32.mrf.mxu0
        %v5148 = vadd.f32 0.0, %v5147
        %v5149 = vpop.f32.mrf.mxu0
        %v5150 = vpop.f32.mrf.mxu0
        %v5151 = vadd.f32 0.0, %v5150
        %v5152 = vpop.f32.mrf.mxu0
        %5153 = vmatprep.mubr.bf16.mxu0 %v5029
        %5154 = vmatmul.mubr.bf16.gmra.mxu0 %v4690
        %v5155 = vpop.f32.mrf.mxu0
        %v5156 = vadd.f32 0.0, %v5155
        %v5157 = vpop.f32.mrf.mxu0
        %v5158 = vpop.f32.mrf.mxu0
        %v5159 = vadd.f32 0.0, %v5158
        %v5160 = vpop.f32.mrf.mxu0
        %5161 = vmatprep.mubr.bf16.mxu0 %v5032
        %5162 = vmatmul.mubr.bf16.gmra.mxu0 %v4724
        %v5163 = vpop.f32.mrf.mxu0
        %v5164 = vadd.f32 0.0, %v5163
        %v5165 = vpop.f32.mrf.mxu0
        %v5166 = vpop.f32.mrf.mxu0
        %v5167 = vadd.f32 0.0, %v5166
        %v5168 = vpop.f32.mrf.mxu0
        %5169 = vmatprep.mubr.bf16.mxu0 %v5035
        %5170 = vmatmul.mubr.bf16.gmra.mxu0 %v4758
        %v5171 = vpop.f32.mrf.mxu0
        %v5172 = vadd.f32 0.0, %v5171
        %v5173 = vpop.f32.mrf.mxu0
        %v5174 = vpop.f32.mrf.mxu0
        %v5175 = vadd.f32 0.0, %v5174
        %v5176 = vpop.f32.mrf.mxu0
        %5177 = vmatprep.mubr.bf16.mxu0 %v5038
        %5178 = vmatmul.mubr.bf16.gmra.mxu0 %v4792
        %v5179 = vpop.f32.mrf.mxu0
        %v5180 = vadd.f32 0.0, %v5179
        %v5181 = vpop.f32.mrf.mxu0
        %v5182 = vpop.f32.mrf.mxu0
        %v5183 = vadd.f32 0.0, %v5182
        %v5184 = vpop.f32.mrf.mxu0
        %5185 = vmatprep.mubr.bf16.mxu0 %v5041
        %5186 = vmatmul.mubr.bf16.gmra.mxu0 %v4826
        %v5187 = vpop.f32.mrf.mxu0
        %v5188 = vadd.f32 0.0, %v5187
        %v5189 = vpop.f32.mrf.mxu0
        %v5190 = vpop.f32.mrf.mxu0
        %v5191 = vadd.f32 0.0, %v5190
        %v5192 = vpop.f32.mrf.mxu0
        %5193 = vmatprep.mubr.bf16.mxu0 %v5044
        %5194 = vmatmul.mubr.bf16.gmra.mxu0 %v4860
        %v5195 = vpop.f32.mrf.mxu0
        %v5196 = vadd.f32 0.0, %v5195
        %v5197 = vpop.f32.mrf.mxu0
        %v5198 = vpop.f32.mrf.mxu0
        %v5199 = vadd.f32 0.0, %v5198
        %v5200 = vpop.f32.mrf.mxu0
        %5201 = vmatprep.mubr.bf16.mxu0 %v5047
        %5202 = vmatmul.mubr.bf16.gmra.mxu0 %v4910
        %v5203 = vpop.f32.mrf.mxu0
        %v5204 = vadd.f32 0.0, %v5203
        %v5205 = vpop.f32.mrf.mxu0
        %v5206 = vpop.f32.mrf.mxu0
        %v5207 = vadd.f32 0.0, %v5206
        %v5208 = vpop.f32.mrf.mxu0
        %5209 = vdwg.mxu0
        %v5234 = vunpack.c.l.b16 %v3800
        %v5235 = vunpack.c.l.b16 %v3801
        %v5236 = vunpack.c.l.b16 %v3802
        %v5237 = vunpack.c.l.b16 %v3803
        %v5238 = vunpack.c.l.b16 %v3804
        %v5239 = vunpack.c.l.b16 %v3805
        %v5240 = vunpack.c.l.b16 %v3806
        %v5241 = vunpack.c.l.b16 %v3807
        %v5242 = vunpack.c.l.b16 %v3808
        %v5243 = vunpack.c.l.b16 %v3809
        %v5244 = vunpack.c.l.b16 %v3810
        %v5245 = vunpack.c.l.b16 %v3811
        %v5246 = vunpack.c.l.b16 %v3812
        %v5247 = vunpack.c.l.b16 %v3813
        %v5248 = vunpack.c.l.b16 %v3814
        %v5249 = vunpack.c.l.b16 %v3815
        %v5250 = vunpack.c.l.b16 %v3816
        %v5251 = vunpack.c.l.b16 %v3817
        %v5252 = vunpack.c.l.b16 %v3818
        %v5253 = vunpack.c.l.b16 %v3819
        %v5254 = vunpack.c.l.b16 %v3820
        %v5255 = vunpack.c.l.b16 %v3821
        %v5256 = vunpack.c.l.b16 %v3822
        %v5257 = vunpack.c.l.b16 %v3823
        %v5258 = vpack.c.b16 %v5235, %v5234
        %v5259 = vpack.c.b16 %v5237, %v5236
        %v5260 = vpack.c.b16 %v5239, %v5238
        %v5261 = vpack.c.b16 %v5241, %v5240
        %v5262 = vpack.c.b16 %v5243, %v5242
        %v5263 = vpack.c.b16 %v5245, %v5244
        %v5264 = vpack.c.b16 %v5247, %v5246
        %v5265 = vpack.c.b16 %v5249, %v5248
        %v5266 = vpack.c.b16 %v5251, %v5250
        %v5267 = vpack.c.b16 %v5253, %v5252
        %v5268 = vpack.c.b16 %v5255, %v5254
        %v5269 = vpack.c.b16 %v5257, %v5256
        %v5283 = vsel %vm1829, %v4367, 0
        %5285 = vmatprep.subr.bf16.mxu0 0
        %5286 = vmatpush1.bf16.msra.mxu0 %v5265
        %5287 = vmatprep.subr.bf16.mxu0 0
        %5288 = vmatpush1.bf16.msra.mxu0 %v5264
        %5289 = vmatprep.subr.bf16.mxu0 0
        %5290 = vmatpush1.bf16.msra.mxu0 %v5263
        %5291 = vmatprep.subr.bf16.mxu0 0
        %5292 = vmatpush1.bf16.msra.mxu0 %v5262
        %5293 = vmatprep.subr.bf16.mxu0 0
        %5294 = vmatpush1.bf16.msra.mxu0 %v5261
        %5295 = vmatprep.subr.bf16.mxu0 0
        %5296 = vmatpush1.bf16.msra.mxu0 %v5260
        %5297 = vmatprep.subr.bf16.mxu0 0
        %5298 = vmatpush1.bf16.msra.mxu0 %v5259
        %5299 = vmatprep.subr.bf16.mxu0 0
        %5300 = vmatpush1.bf16.msra.mxu0 %v5258
        %5301 = vmatprep.subr.bf16.mxu0 0
        %5302 = vmatpush2.bf16.msra.mxu0 0
        %5303 = vmatprep.subr.bf16.mxu0 0
        %5304 = vmatpush2.bf16.msra.mxu0 0
        %5305 = vmatprep.subr.bf16.mxu0 0
        %5306 = vmatpush2.bf16.msra.mxu0 0
        %5307 = vmatprep.subr.bf16.mxu0 0
        %5308 = vmatpush2.bf16.msra.mxu0 0
        %5309 = vmatprep.subr.bf16.mxu0 0
        %5310 = vmatpush2.bf16.msra.mxu0 %v5269
        %5311 = vmatprep.subr.bf16.mxu0 0
        %5312 = vmatpush2.bf16.msra.mxu0 %v5268
        %5313 = vmatprep.subr.bf16.mxu0 0
        %5314 = vmatpush2.bf16.msra.mxu0 %v5267
        %5315 = vmatprep.subr.bf16.mxu0 0
        %5316 = vmatpush2.bf16.msra.mxu0 %v5266
        %5317 = vmatprep.mubr.bf16.mxu0 %v5283
        %5318 = vmatmul.mubr.bf16.gmra.mxu0 %v4350
        %v5319 = vpop.f32.mrf.mxu0
        %v5320 = vadd.f32 %v5084, %v5319
        %v5321 = vpop.f32.mrf.mxu0
        %v5322 = vpop.f32.mrf.mxu0
        %v5323 = vadd.f32 %v5087, %v5322
        %v5324 = vpop.f32.mrf.mxu0
        %5325 = vmatprep.mubr.bf16.mxu0 %v5002
        %5326 = vmatmul.mubr.bf16.gmra.mxu0 %v4384
        %v5327 = vpop.f32.mrf.mxu0
        %v5328 = vadd.f32 %v5092, %v5327
        %v5329 = vpop.f32.mrf.mxu0
        %v5330 = vpop.f32.mrf.mxu0
        %v5331 = vadd.f32 %v5095, %v5330
        %v5332 = vpop.f32.mrf.mxu0
        %5333 = vmatprep.mubr.bf16.mxu0 %v5005
        %5334 = vmatmul.mubr.bf16.gmra.mxu0 %v4418
        %v5335 = vpop.f32.mrf.mxu0
        %v5336 = vadd.f32 %v5100, %v5335
        %v5337 = vpop.f32.mrf.mxu0
        %v5338 = vpop.f32.mrf.mxu0
        %v5339 = vadd.f32 %v5103, %v5338
        %v5340 = vpop.f32.mrf.mxu0
        %5341 = vmatprep.mubr.bf16.mxu0 %v5008
        %5342 = vmatmul.mubr.bf16.gmra.mxu0 %v4452
        %v5343 = vpop.f32.mrf.mxu0
        %v5344 = vadd.f32 %v5108, %v5343
        %v5345 = vpop.f32.mrf.mxu0
        %v5346 = vpop.f32.mrf.mxu0
        %v5347 = vadd.f32 %v5111, %v5346
        %v5348 = vpop.f32.mrf.mxu0
        %5349 = vmatprep.mubr.bf16.mxu0 %v5011
        %5350 = vmatmul.mubr.bf16.gmra.mxu0 %v4486
        %v5351 = vpop.f32.mrf.mxu0
        %v5352 = vadd.f32 %v5116, %v5351
        %v5353 = vpop.f32.mrf.mxu0
        %v5354 = vpop.f32.mrf.mxu0
        %v5355 = vadd.f32 %v5119, %v5354
        %v5356 = vpop.f32.mrf.mxu0
        %5357 = vmatprep.mubr.bf16.mxu0 %v5014
        %5358 = vmatmul.mubr.bf16.gmra.mxu0 %v4520
        %v5359 = vpop.f32.mrf.mxu0
        %v5360 = vadd.f32 %v5124, %v5359
        %v5361 = vpop.f32.mrf.mxu0
        %v5362 = vpop.f32.mrf.mxu0
        %v5363 = vadd.f32 %v5127, %v5362
        %v5364 = vpop.f32.mrf.mxu0
        %5365 = vmatprep.mubr.bf16.mxu0 %v5017
        %5366 = vmatmul.mubr.bf16.gmra.mxu0 %v4554
        %v5367 = vpop.f32.mrf.mxu0
        %v5368 = vadd.f32 %v5132, %v5367
        %v5369 = vpop.f32.mrf.mxu0
        %v5370 = vpop.f32.mrf.mxu0
        %v5371 = vadd.f32 %v5135, %v5370
        %v5372 = vpop.f32.mrf.mxu0
        %5373 = vmatprep.mubr.bf16.mxu0 %v5020
        %5374 = vmatmul.mubr.bf16.gmra.mxu0 %v4588
        %v5375 = vpop.f32.mrf.mxu0
        %v5376 = vadd.f32 %v5140, %v5375
        %v5377 = vpop.f32.mrf.mxu0
        %v5378 = vpop.f32.mrf.mxu0
        %v5379 = vadd.f32 %v5143, %v5378
        %v5380 = vpop.f32.mrf.mxu0
        %5381 = vmatprep.mubr.bf16.mxu0 %v5023
        %5382 = vmatmul.mubr.bf16.gmra.mxu0 %v4622
        %v5383 = vpop.f32.mrf.mxu0
        %v5384 = vadd.f32 %v5148, %v5383
        %v5385 = vpop.f32.mrf.mxu0
        %v5386 = vpop.f32.mrf.mxu0
        %v5387 = vadd.f32 %v5151, %v5386
        %v5388 = vpop.f32.mrf.mxu0
        %5389 = vmatprep.mubr.bf16.mxu0 %v5026
        %5390 = vmatmul.mubr.bf16.gmra.mxu0 %v4656
        %v5391 = vpop.f32.mrf.mxu0
        %v5392 = vadd.f32 %v5156, %v5391
        %v5393 = vpop.f32.mrf.mxu0
        %v5394 = vpop.f32.mrf.mxu0
        %v5395 = vadd.f32 %v5159, %v5394
        %v5396 = vpop.f32.mrf.mxu0
        %5397 = vmatprep.mubr.bf16.mxu0 %v5029
        %5398 = vmatmul.mubr.bf16.gmra.mxu0 %v4690
        %v5399 = vpop.f32.mrf.mxu0
        %v5400 = vadd.f32 %v5164, %v5399
        %v5401 = vpop.f32.mrf.mxu0
        %v5402 = vpop.f32.mrf.mxu0
        %v5403 = vadd.f32 %v5167, %v5402
        %v5404 = vpop.f32.mrf.mxu0
        %5405 = vmatprep.mubr.bf16.mxu0 %v5032
        %5406 = vmatmul.mubr.bf16.gmra.mxu0 %v4724
        %v5407 = vpop.f32.mrf.mxu0
        %v5408 = vadd.f32 %v5172, %v5407
        %v5409 = vpop.f32.mrf.mxu0
        %v5410 = vpop.f32.mrf.mxu0
        %v5411 = vadd.f32 %v5175, %v5410
        %v5412 = vpop.f32.mrf.mxu0
        %5413 = vmatprep.mubr.bf16.mxu0 %v5035
        %5414 = vmatmul.mubr.bf16.gmra.mxu0 %v4758
        %v5415 = vpop.f32.mrf.mxu0
        %v5416 = vadd.f32 %v5180, %v5415
        %v5417 = vpop.f32.mrf.mxu0
        %v5418 = vpop.f32.mrf.mxu0
        %v5419 = vadd.f32 %v5183, %v5418
        %v5420 = vpop.f32.mrf.mxu0
        %5421 = vmatprep.mubr.bf16.mxu0 %v5038
        %5422 = vmatmul.mubr.bf16.gmra.mxu0 %v4792
        %v5423 = vpop.f32.mrf.mxu0
        %v5424 = vadd.f32 %v5188, %v5423
        %v5425 = vpop.f32.mrf.mxu0
        %v5426 = vpop.f32.mrf.mxu0
        %v5427 = vadd.f32 %v5191, %v5426
        %v5428 = vpop.f32.mrf.mxu0
        %5429 = vmatprep.mubr.bf16.mxu0 %v5041
        %5430 = vmatmul.mubr.bf16.gmra.mxu0 %v4826
        %v5431 = vpop.f32.mrf.mxu0
        %v5432 = vadd.f32 %v5196, %v5431
        %v5433 = vpop.f32.mrf.mxu0
        %v5434 = vpop.f32.mrf.mxu0
        %v5435 = vadd.f32 %v5199, %v5434
        %v5436 = vpop.f32.mrf.mxu0
        %5437 = vmatprep.mubr.bf16.mxu0 %v5044
        %5438 = vmatmul.mubr.bf16.gmra.mxu0 %v4860
        %v5439 = vpop.f32.mrf.mxu0
        %v5440 = vadd.f32 %v5204, %v5439
        %v5441 = vpop.f32.mrf.mxu0
        %v5442 = vpop.f32.mrf.mxu0
        %v5443 = vadd.f32 %v5207, %v5442
        %v5444 = vpop.f32.mrf.mxu0
        %5445 = vdwg.mxu0
        %v5470 = vunpack.c.l.b16 %v3848
        %v5471 = vunpack.c.l.b16 %v3849
        %v5472 = vunpack.c.l.b16 %v3850
        %v5473 = vunpack.c.l.b16 %v3851
        %v5474 = vunpack.c.l.b16 %v3852
        %v5475 = vunpack.c.l.b16 %v3853
        %v5476 = vunpack.c.l.b16 %v3854
        %v5477 = vunpack.c.l.b16 %v3855
        %v5478 = vunpack.c.l.b16 %v3856
        %v5479 = vunpack.c.l.b16 %v3857
        %v5480 = vunpack.c.l.b16 %v3858
        %v5481 = vunpack.c.l.b16 %v3859
        %v5482 = vunpack.c.l.b16 %v3860
        %v5483 = vunpack.c.l.b16 %v3861
        %v5484 = vunpack.c.l.b16 %v3862
        %v5485 = vunpack.c.l.b16 %v3863
        %v5486 = vunpack.c.l.b16 %v3864
        %v5487 = vunpack.c.l.b16 %v3865
        %v5488 = vunpack.c.l.b16 %v3866
        %v5489 = vunpack.c.l.b16 %v3867
        %v5490 = vunpack.c.l.b16 %v3868
        %v5491 = vunpack.c.l.b16 %v3869
        %v5492 = vunpack.c.l.b16 %v3870
        %v5493 = vunpack.c.l.b16 %v3871
        %v5494 = vpack.c.b16 %v5471, %v5470
        %v5495 = vpack.c.b16 %v5473, %v5472
        %v5496 = vpack.c.b16 %v5475, %v5474
        %v5497 = vpack.c.b16 %v5477, %v5476
        %v5498 = vpack.c.b16 %v5479, %v5478
        %v5499 = vpack.c.b16 %v5481, %v5480
        %v5500 = vpack.c.b16 %v5483, %v5482
        %v5501 = vpack.c.b16 %v5485, %v5484
        %v5502 = vpack.c.b16 %v5487, %v5486
        %v5503 = vpack.c.b16 %v5489, %v5488
        %v5504 = vpack.c.b16 %v5491, %v5490
        %v5505 = vpack.c.b16 %v5493, %v5492
        %5518 = vmatprep.subr.bf16.mxu0 0
        %5519 = vmatpush1.bf16.msra.mxu0 %v5501
        %5520 = vmatprep.subr.bf16.mxu0 0
        %5521 = vmatpush1.bf16.msra.mxu0 %v5500
        %5522 = vmatprep.subr.bf16.mxu0 0
        %5523 = vmatpush1.bf16.msra.mxu0 %v5499
        %5524 = vmatprep.subr.bf16.mxu0 0
        %5525 = vmatpush1.bf16.msra.mxu0 %v5498
        %5526 = vmatprep.subr.bf16.mxu0 0
        %5527 = vmatpush1.bf16.msra.mxu0 %v5497
        %5528 = vmatprep.subr.bf16.mxu0 0
        %5529 = vmatpush1.bf16.msra.mxu0 %v5496
        %5530 = vmatprep.subr.bf16.mxu0 0
        %5531 = vmatpush1.bf16.msra.mxu0 %v5495
        %5532 = vmatprep.subr.bf16.mxu0 0
        %5533 = vmatpush1.bf16.msra.mxu0 %v5494
        %5534 = vmatprep.subr.bf16.mxu0 0
        %5535 = vmatpush2.bf16.msra.mxu0 0
        %5536 = vmatprep.subr.bf16.mxu0 0
        %5537 = vmatpush2.bf16.msra.mxu0 0
        %5538 = vmatprep.subr.bf16.mxu0 0
        %5539 = vmatpush2.bf16.msra.mxu0 0
        %5540 = vmatprep.subr.bf16.mxu0 0
        %5541 = vmatpush2.bf16.msra.mxu0 0
        %5542 = vmatprep.subr.bf16.mxu0 0
        %5543 = vmatpush2.bf16.msra.mxu0 %v5505
        %5544 = vmatprep.subr.bf16.mxu0 0
        %5545 = vmatpush2.bf16.msra.mxu0 %v5504
        %5546 = vmatprep.subr.bf16.mxu0 0
        %5547 = vmatpush2.bf16.msra.mxu0 %v5503
        %5548 = vmatprep.subr.bf16.mxu0 0
        %5549 = vmatpush2.bf16.msra.mxu0 %v5502
        %5550 = vmatprep.mubr.bf16.mxu0 %v5005
        %5551 = vmatmul.mubr.bf16.gmra.mxu0 %v4418
        %v5552 = vpop.f32.mrf.mxu0
        %v5553 = vadd.f32 0.0, %v5552
        %v5554 = vpop.f32.mrf.mxu0
        %v5555 = vpop.f32.mrf.mxu0
        %v5556 = vadd.f32 0.0, %v5555
        %v5557 = vpop.f32.mrf.mxu0
        %5558 = vmatprep.mubr.bf16.mxu0 %v5008
        %5559 = vmatmul.mubr.bf16.gmra.mxu0 %v4452
        %v5560 = vpop.f32.mrf.mxu0
        %v5561 = vadd.f32 0.0, %v5560
        %v5562 = vpop.f32.mrf.mxu0
        %v5563 = vpop.f32.mrf.mxu0
        %v5564 = vadd.f32 0.0, %v5563
        %v5565 = vpop.f32.mrf.mxu0
        %5566 = vmatprep.mubr.bf16.mxu0 %v5011
        %5567 = vmatmul.mubr.bf16.gmra.mxu0 %v4486
        %v5568 = vpop.f32.mrf.mxu0
        %v5569 = vadd.f32 0.0, %v5568
        %v5570 = vpop.f32.mrf.mxu0
        %v5571 = vpop.f32.mrf.mxu0
        %v5572 = vadd.f32 0.0, %v5571
        %v5573 = vpop.f32.mrf.mxu0
        %5574 = vmatprep.mubr.bf16.mxu0 %v5014
        %5575 = vmatmul.mubr.bf16.gmra.mxu0 %v4520
        %v5576 = vpop.f32.mrf.mxu0
        %v5577 = vadd.f32 0.0, %v5576
        %v5578 = vpop.f32.mrf.mxu0
        %v5579 = vpop.f32.mrf.mxu0
        %v5580 = vadd.f32 0.0, %v5579
        %v5581 = vpop.f32.mrf.mxu0
        %5582 = vmatprep.mubr.bf16.mxu0 %v5017
        %5583 = vmatmul.mubr.bf16.gmra.mxu0 %v4554
        %v5584 = vpop.f32.mrf.mxu0
        %v5585 = vadd.f32 0.0, %v5584
        %v5586 = vpop.f32.mrf.mxu0
        %v5587 = vpop.f32.mrf.mxu0
        %v5588 = vadd.f32 0.0, %v5587
        %v5589 = vpop.f32.mrf.mxu0
        %5590 = vmatprep.mubr.bf16.mxu0 %v5020
        %5591 = vmatmul.mubr.bf16.gmra.mxu0 %v4588
        %v5592 = vpop.f32.mrf.mxu0
        %v5593 = vadd.f32 0.0, %v5592
        %v5594 = vpop.f32.mrf.mxu0
        %v5595 = vpop.f32.mrf.mxu0
        %v5596 = vadd.f32 0.0, %v5595
        %v5597 = vpop.f32.mrf.mxu0
        %5598 = vmatprep.mubr.bf16.mxu0 %v5023
        %5599 = vmatmul.mubr.bf16.gmra.mxu0 %v4622
        %v5600 = vpop.f32.mrf.mxu0
        %v5601 = vadd.f32 0.0, %v5600
        %v5602 = vpop.f32.mrf.mxu0
        %v5603 = vpop.f32.mrf.mxu0
        %v5604 = vadd.f32 0.0, %v5603
        %v5605 = vpop.f32.mrf.mxu0
        %5606 = vmatprep.mubr.bf16.mxu0 %v5026
        %5607 = vmatmul.mubr.bf16.gmra.mxu0 %v4656
        %v5608 = vpop.f32.mrf.mxu0
        %v5609 = vadd.f32 0.0, %v5608
        %v5610 = vpop.f32.mrf.mxu0
        %v5611 = vpop.f32.mrf.mxu0
        %v5612 = vadd.f32 0.0, %v5611
        %v5613 = vpop.f32.mrf.mxu0
        %5614 = vmatprep.mubr.bf16.mxu0 %v5029
        %5615 = vmatmul.mubr.bf16.gmra.mxu0 %v4690
        %v5616 = vpop.f32.mrf.mxu0
        %v5617 = vadd.f32 0.0, %v5616
        %v5618 = vpop.f32.mrf.mxu0
        %v5619 = vpop.f32.mrf.mxu0
        %v5620 = vadd.f32 0.0, %v5619
        %v5621 = vpop.f32.mrf.mxu0
        %5622 = vmatprep.mubr.bf16.mxu0 %v5032
        %5623 = vmatmul.mubr.bf16.gmra.mxu0 %v4724
        %v5624 = vpop.f32.mrf.mxu0
        %v5625 = vadd.f32 0.0, %v5624
        %v5626 = vpop.f32.mrf.mxu0
        %v5627 = vpop.f32.mrf.mxu0
        %v5628 = vadd.f32 0.0, %v5627
        %v5629 = vpop.f32.mrf.mxu0
        %5630 = vmatprep.mubr.bf16.mxu0 %v5035
        %5631 = vmatmul.mubr.bf16.gmra.mxu0 %v4758
        %v5632 = vpop.f32.mrf.mxu0
        %v5633 = vadd.f32 0.0, %v5632
        %v5634 = vpop.f32.mrf.mxu0
        %v5635 = vpop.f32.mrf.mxu0
        %v5636 = vadd.f32 0.0, %v5635
        %v5637 = vpop.f32.mrf.mxu0
        %5638 = vmatprep.mubr.bf16.mxu0 %v5038
        %5639 = vmatmul.mubr.bf16.gmra.mxu0 %v4792
        %v5640 = vpop.f32.mrf.mxu0
        %v5641 = vadd.f32 0.0, %v5640
        %v5642 = vpop.f32.mrf.mxu0
        %v5643 = vpop.f32.mrf.mxu0
        %v5644 = vadd.f32 0.0, %v5643
        %v5645 = vpop.f32.mrf.mxu0
        %5646 = vmatprep.mubr.bf16.mxu0 %v5041
        %5647 = vmatmul.mubr.bf16.gmra.mxu0 %v4826
        %v5648 = vpop.f32.mrf.mxu0
        %v5649 = vadd.f32 0.0, %v5648
        %v5650 = vpop.f32.mrf.mxu0
        %v5651 = vpop.f32.mrf.mxu0
        %v5652 = vadd.f32 0.0, %v5651
        %v5653 = vpop.f32.mrf.mxu0
        %5654 = vmatprep.mubr.bf16.mxu0 %v5044
        %5655 = vmatmul.mubr.bf16.gmra.mxu0 %v4860
        %v5656 = vpop.f32.mrf.mxu0
        %v5657 = vadd.f32 0.0, %v5656
        %v5658 = vpop.f32.mrf.mxu0
        %v5659 = vpop.f32.mrf.mxu0
        %v5660 = vadd.f32 0.0, %v5659
        %v5661 = vpop.f32.mrf.mxu0
        %5662 = vmatprep.mubr.bf16.mxu0 %v5047
        %5663 = vmatmul.mubr.bf16.gmra.mxu0 %v4910
        %v5664 = vpop.f32.mrf.mxu0
        %v5665 = vadd.f32 0.0, %v5664
        %v5666 = vpop.f32.mrf.mxu0
        %v5667 = vpop.f32.mrf.mxu0
        %v5668 = vadd.f32 0.0, %v5667
        %v5669 = vpop.f32.mrf.mxu0
        %5670 = vmatprep.mubr.bf16.mxu0 %v5283
        %5671 = vmatmul.mubr.bf16.gmra.mxu0 %v4350
        %v5672 = vpop.f32.mrf.mxu0
        %v5673 = vadd.f32 0.0, %v5672
        %v5674 = vpop.f32.mrf.mxu0
        %v5675 = vpop.f32.mrf.mxu0
        %v5676 = vadd.f32 0.0, %v5675
        %v5677 = vpop.f32.mrf.mxu0
        %5678 = vdwg.mxu0
        %v5679 = vadd.f32 %v5320, %v5553
        %v5680 = vadd.f32 %v5323, %v5556
        %v5681 = vadd.f32 %v5328, %v5561
        %v5682 = vadd.f32 %v5331, %v5564
        %v5683 = vadd.f32 %v5336, %v5569
        %v5684 = vadd.f32 %v5339, %v5572
        %v5685 = vadd.f32 %v5344, %v5577
        %v5686 = vadd.f32 %v5347, %v5580
        %v5687 = vadd.f32 %v5352, %v5585
        %v5688 = vadd.f32 %v5355, %v5588
        %v5689 = vadd.f32 %v5360, %v5593
        %v5690 = vadd.f32 %v5363, %v5596
        %v5691 = vadd.f32 %v5368, %v5601
        %v5692 = vadd.f32 %v5371, %v5604
        %v5693 = vadd.f32 %v5376, %v5609
        %v5694 = vadd.f32 %v5379, %v5612
        %v5695 = vadd.f32 %v5384, %v5617
        %v5696 = vadd.f32 %v5387, %v5620
        %v5697 = vadd.f32 %v5392, %v5625
        %v5698 = vadd.f32 %v5395, %v5628
        %v5699 = vadd.f32 %v5400, %v5633
        %v5700 = vadd.f32 %v5403, %v5636
        %v5701 = vadd.f32 %v5408, %v5641
        %v5702 = vadd.f32 %v5411, %v5644
        %v5703 = vadd.f32 %v5416, %v5649
        %v5704 = vadd.f32 %v5419, %v5652
        %v5705 = vadd.f32 %v5424, %v5657
        %v5706 = vadd.f32 %v5427, %v5660
        %v5707 = vadd.f32 %v5432, %v5665
        %v5708 = vadd.f32 %v5435, %v5668
        %v5709 = vadd.f32 %v5440, %v5673
        %v5710 = vadd.f32 %v5443, %v5676
        %v5711 = vld [vmem:[%s8] sm:$0x1]
        %v5713 = vlaneseq
        %v5714 = vshrl.u32 %v5713, 7
        %v5715 = vsub.s32 0, %v5714
        %v5716 = vrot.slane %v5711, %v5715
        %v5718 = vadd.f32 %v5679, %v5716
        %v5719 = vadd.f32 %v5680, %v5716
        %v5720 = vadd.f32 %v5681, %v5716
        %v5721 = vadd.f32 %v5682, %v5716
        %v5722 = vadd.f32 %v5683, %v5716
        %v5723 = vadd.f32 %v5684, %v5716
        %v5724 = vadd.f32 %v5685, %v5716
        %v5725 = vadd.f32 %v5686, %v5716
        %v5726 = vadd.f32 %v5687, %v5716
        %v5727 = vadd.f32 %v5688, %v5716
        %v5728 = vadd.f32 %v5689, %v5716
        %v5729 = vadd.f32 %v5690, %v5716
        %v5730 = vadd.f32 %v5691, %v5716
        %v5731 = vadd.f32 %v5692, %v5716
        %v5732 = vadd.f32 %v5693, %v5716
        %v5733 = vadd.f32 %v5694, %v5716
        %v5734 = vadd.f32 %v5695, %v5716
        %v5735 = vadd.f32 %v5696, %v5716
        %v5736 = vadd.f32 %v5697, %v5716
        %v5737 = vadd.f32 %v5698, %v5716
        %v5738 = vadd.f32 %v5699, %v5716
        %v5739 = vadd.f32 %v5700, %v5716
        %v5740 = vadd.f32 %v5701, %v5716
        %v5741 = vadd.f32 %v5702, %v5716
        %v5742 = vadd.f32 %v5703, %v5716
        %v5743 = vadd.f32 %v5704, %v5716
        %v5744 = vadd.f32 %v5705, %v5716
        %v5745 = vadd.f32 %v5706, %v5716
        %v5746 = vadd.f32 %v5707, %v5716
        %v5747 = vadd.f32 %v5708, %v5716
        %v5748 = vadd.f32 %v5709, %v5716
        %v5749 = vadd.f32 %v5710, %v5716
        %v5750 = vpack.c.bf16 %v401, %v400
        %v5751 = vpack.c.bf16 %v403, %v402
        %v5752 = vpack.c.bf16 %v405, %v404
        %v5753 = vpack.c.bf16 %v407, %v406
        %v5754 = vpack.c.bf16 %v409, %v408
        %v5755 = vpack.c.bf16 %v411, %v410
        %v5756 = vpack.c.bf16 %v413, %v412
        %v5757 = vpack.c.bf16 %v415, %v414
        %v5758 = vpack.c.bf16 %v417, %v416
        %v5759 = vpack.c.bf16 %v419, %v418
        %v5760 = vpack.c.bf16 %v421, %v420
        %v5761 = vpack.c.bf16 %v423, %v422
        %v5762 = vpack.c.bf16 %v425, %v424
        %v5763 = vpack.c.bf16 %v427, %v426
        %v5764 = vpack.c.bf16 %v429, %v428
        %v5765 = vpack.c.bf16 %v431, %v430
        %v5766 = vld [vmem:[%s9] sm:$0xf]
        %v5767 = vld [vmem:[%s9 + $0x4] sm:$0xf]
        %v5768 = vld [vmem:[%s9 + $0x8] sm:$0xf]
        %v5769 = vld [vmem:[%s9 + $0xc] sm:$0xf]
        %v5770 = vld [vmem:[%s10] sm:$0x1]
        %v5772 = vlaneseq
        %v5773 = vshrl.u32 %v5772, 7
        %v5774 = vsub.s32 0, %v5773
        %v5775 = vrot.slane %v5770, %v5774
        %v5781 = vunpack.c.l.b16 %v5766
        %v5782 = vunpack.c.l.b16 %v5767
        %v5783 = vunpack.c.l.b16 %v5768
        %v5784 = vunpack.c.l.b16 %v5769
        %v5785 = vpack.c.b16 %v5782, %v5781
        %v5786 = vpack.c.b16 %v5784, %v5783
        %v5790 = vsel %vm486, %v5750, 0
        %v5793 = vsel %vm486, %v5751, 0
        %v5796 = vsel %vm486, %v5752, 0
        %v5799 = vsel %vm486, %v5753, 0
        %v5802 = vsel %vm486, %v5754, 0
        %v5805 = vsel %vm486, %v5755, 0
        %v5808 = vsel %vm486, %v5756, 0
        %v5811 = vsel %vm486, %v5757, 0
        %v5814 = vsel %vm486, %v5758, 0
        %v5817 = vsel %vm486, %v5759, 0
        %v5820 = vsel %vm486, %v5760, 0
        %v5823 = vsel %vm486, %v5761, 0
        %v5826 = vsel %vm486, %v5762, 0
        %v5829 = vsel %vm486, %v5763, 0
        %v5832 = vsel %vm486, %v5764, 0
        %v5835 = vsel %vm486, %v5765, 0
        %5837 = vmatprep.subr.bf16.mxu0 0
        %5838 = vmatpush1.bf16.msra.mxu0 0
        %5839 = vmatprep.subr.bf16.mxu0 0
        %5840 = vmatpush1.bf16.msra.mxu0 0
        %5841 = vmatprep.subr.bf16.mxu0 0
        %5842 = vmatpush1.bf16.msra.mxu0 0
        %5843 = vmatprep.subr.bf16.mxu0 0
        %5844 = vmatpush1.bf16.msra.mxu0 0
        %5845 = vmatprep.subr.bf16.mxu0 0
        %5846 = vmatpush1.bf16.msra.mxu0 0
        %5847 = vmatprep.subr.bf16.mxu0 0
        %5848 = vmatpush1.bf16.msra.mxu0 0
        %5849 = vmatprep.subr.bf16.mxu0 0
        %5850 = vmatpush1.bf16.msra.mxu0 %v5786
        %5851 = vmatprep.subr.bf16.mxu0 0
        %5852 = vmatpush1.bf16.msra.mxu0 %v5785
        %5853 = vmatprep.subr.bf16.mxu0 0
        %5854 = vmatpush2.bf16.msra.mxu0 0
        %5855 = vmatprep.subr.bf16.mxu0 0
        %5856 = vmatpush2.bf16.msra.mxu0 0
        %5857 = vmatprep.subr.bf16.mxu0 0
        %5858 = vmatpush2.bf16.msra.mxu0 0
        %5859 = vmatprep.subr.bf16.mxu0 0
        %5860 = vmatpush2.bf16.msra.mxu0 0
        %5861 = vmatprep.subr.bf16.mxu0 0
        %5862 = vmatpush2.bf16.msra.mxu0 0
        %5863 = vmatprep.subr.bf16.mxu0 0
        %5864 = vmatpush2.bf16.msra.mxu0 0
        %5865 = vmatprep.subr.bf16.mxu0 0
        %5866 = vmatpush2.bf16.msra.mxu0 0
        %5867 = vmatprep.subr.bf16.mxu0 0
        %5868 = vmatpush2.bf16.msra.mxu0 0
        %5869 = vmatprep.mubr.bf16.mxu0 0
        %5870 = vmatmul.mubr.bf16.gmra.mxu0 %v5790
        %v5871 = vpop.f32.mrf.mxu0
        %v5872 = vadd.f32 %v5775, %v5871
        %v5873 = vpop.f32.mrf.mxu0
        %v5874 = vpop.f32.mrf.mxu0
        %v5875 = vadd.f32 %v5775, %v5874
        %v5876 = vpop.f32.mrf.mxu0
        %5877 = vmatprep.mubr.bf16.mxu0 0
        %5878 = vmatmul.mubr.bf16.gmra.mxu0 %v5793
        %v5879 = vpop.f32.mrf.mxu0
        %v5880 = vadd.f32 %v5775, %v5879
        %v5881 = vpop.f32.mrf.mxu0
        %v5882 = vpop.f32.mrf.mxu0
        %v5883 = vadd.f32 %v5775, %v5882
        %v5884 = vpop.f32.mrf.mxu0
        %5885 = vmatprep.mubr.bf16.mxu0 0
        %5886 = vmatmul.mubr.bf16.gmra.mxu0 %v5796
        %v5887 = vpop.f32.mrf.mxu0
        %v5888 = vadd.f32 %v5775, %v5887
        %v5889 = vpop.f32.mrf.mxu0
        %v5890 = vpop.f32.mrf.mxu0
        %v5891 = vadd.f32 %v5775, %v5890
        %v5892 = vpop.f32.mrf.mxu0
        %5893 = vmatprep.mubr.bf16.mxu0 0
        %5894 = vmatmul.mubr.bf16.gmra.mxu0 %v5799
        %v5895 = vpop.f32.mrf.mxu0
        %v5896 = vadd.f32 %v5775, %v5895
        %v5897 = vpop.f32.mrf.mxu0
        %v5898 = vpop.f32.mrf.mxu0
        %v5899 = vadd.f32 %v5775, %v5898
        %v5900 = vpop.f32.mrf.mxu0
        %5901 = vmatprep.mubr.bf16.mxu0 0
        %5902 = vmatmul.mubr.bf16.gmra.mxu0 %v5802
        %v5903 = vpop.f32.mrf.mxu0
        %v5904 = vadd.f32 %v5775, %v5903
        %v5905 = vpop.f32.mrf.mxu0
        %v5906 = vpop.f32.mrf.mxu0
        %v5907 = vadd.f32 %v5775, %v5906
        %v5908 = vpop.f32.mrf.mxu0
        %5909 = vmatprep.mubr.bf16.mxu0 0
        %5910 = vmatmul.mubr.bf16.gmra.mxu0 %v5805
        %v5911 = vpop.f32.mrf.mxu0
        %v5912 = vadd.f32 %v5775, %v5911
        %v5913 = vpop.f32.mrf.mxu0
        %v5914 = vpop.f32.mrf.mxu0
        %v5915 = vadd.f32 %v5775, %v5914
        %v5916 = vpop.f32.mrf.mxu0
        %5917 = vmatprep.mubr.bf16.mxu0 0
        %5918 = vmatmul.mubr.bf16.gmra.mxu0 %v5808
        %v5919 = vpop.f32.mrf.mxu0
        %v5920 = vadd.f32 %v5775, %v5919
        %v5921 = vpop.f32.mrf.mxu0
        %v5922 = vpop.f32.mrf.mxu0
        %v5923 = vadd.f32 %v5775, %v5922
        %v5924 = vpop.f32.mrf.mxu0
        %5925 = vmatprep.mubr.bf16.mxu0 0
        %5926 = vmatmul.mubr.bf16.gmra.mxu0 %v5811
        %v5927 = vpop.f32.mrf.mxu0
        %v5928 = vadd.f32 %v5775, %v5927
        %v5929 = vpop.f32.mrf.mxu0
        %v5930 = vpop.f32.mrf.mxu0
        %v5931 = vadd.f32 %v5775, %v5930
        %v5932 = vpop.f32.mrf.mxu0
        %5933 = vmatprep.mubr.bf16.mxu0 0
        %5934 = vmatmul.mubr.bf16.gmra.mxu0 %v5814
        %v5935 = vpop.f32.mrf.mxu0
        %v5936 = vadd.f32 %v5775, %v5935
        %v5937 = vpop.f32.mrf.mxu0
        %v5938 = vpop.f32.mrf.mxu0
        %v5939 = vadd.f32 %v5775, %v5938
        %v5940 = vpop.f32.mrf.mxu0
        %5941 = vmatprep.mubr.bf16.mxu0 0
        %5942 = vmatmul.mubr.bf16.gmra.mxu0 %v5817
        %v5943 = vpop.f32.mrf.mxu0
        %v5944 = vadd.f32 %v5775, %v5943
        %v5945 = vpop.f32.mrf.mxu0
        %v5946 = vpop.f32.mrf.mxu0
        %v5947 = vadd.f32 %v5775, %v5946
        %v5948 = vpop.f32.mrf.mxu0
        %5949 = vmatprep.mubr.bf16.mxu0 0
        %5950 = vmatmul.mubr.bf16.gmra.mxu0 %v5820
        %v5951 = vpop.f32.mrf.mxu0
        %v5952 = vadd.f32 %v5775, %v5951
        %v5953 = vpop.f32.mrf.mxu0
        %v5954 = vpop.f32.mrf.mxu0
        %v5955 = vadd.f32 %v5775, %v5954
        %v5956 = vpop.f32.mrf.mxu0
        %5957 = vmatprep.mubr.bf16.mxu0 0
        %5958 = vmatmul.mubr.bf16.gmra.mxu0 %v5823
        %v5959 = vpop.f32.mrf.mxu0
        %v5960 = vadd.f32 %v5775, %v5959
        %v5961 = vpop.f32.mrf.mxu0
        %v5962 = vpop.f32.mrf.mxu0
        %v5963 = vadd.f32 %v5775, %v5962
        %v5964 = vpop.f32.mrf.mxu0
        %5965 = vmatprep.mubr.bf16.mxu0 0
        %5966 = vmatmul.mubr.bf16.gmra.mxu0 %v5826
        %v5967 = vpop.f32.mrf.mxu0
        %v5968 = vadd.f32 %v5775, %v5967
        %v5969 = vpop.f32.mrf.mxu0
        %v5970 = vpop.f32.mrf.mxu0
        %v5971 = vadd.f32 %v5775, %v5970
        %v5972 = vpop.f32.mrf.mxu0
        %5973 = vmatprep.mubr.bf16.mxu0 0
        %5974 = vmatmul.mubr.bf16.gmra.mxu0 %v5829
        %v5975 = vpop.f32.mrf.mxu0
        %v5976 = vadd.f32 %v5775, %v5975
        %v5977 = vpop.f32.mrf.mxu0
        %v5978 = vpop.f32.mrf.mxu0
        %v5979 = vadd.f32 %v5775, %v5978
        %v5980 = vpop.f32.mrf.mxu0
        %5981 = vmatprep.mubr.bf16.mxu0 0
        %5982 = vmatmul.mubr.bf16.gmra.mxu0 %v5832
        %v5983 = vpop.f32.mrf.mxu0
        %v5984 = vadd.f32 %v5775, %v5983
        %v5985 = vpop.f32.mrf.mxu0
        %v5986 = vpop.f32.mrf.mxu0
        %v5987 = vadd.f32 %v5775, %v5986
        %v5988 = vpop.f32.mrf.mxu0
        %5989 = vmatprep.mubr.bf16.mxu0 0
        %5990 = vmatmul.mubr.bf16.gmra.mxu0 %v5835
        %v5991 = vpop.f32.mrf.mxu0
        %v5992 = vadd.f32 %v5775, %v5991
        %v5993 = vpop.f32.mrf.mxu0
        %v5994 = vpop.f32.mrf.mxu0
        %v5995 = vadd.f32 %v5775, %v5994
        %v5996 = vpop.f32.mrf.mxu0
        %5997 = vdwg.mxu0
        %v5998 = vadd.f32 %v5718, %v5872
        %v5999 = vadd.f32 %v5719, %v5875
        %v6000 = vadd.f32 %v5720, %v5880
        %v6001 = vadd.f32 %v5721, %v5883
        %v6002 = vadd.f32 %v5722, %v5888
        %v6003 = vadd.f32 %v5723, %v5891
        %v6004 = vadd.f32 %v5724, %v5896
        %v6005 = vadd.f32 %v5725, %v5899
        %v6006 = vadd.f32 %v5726, %v5904
        %v6007 = vadd.f32 %v5727, %v5907
        %v6008 = vadd.f32 %v5728, %v5912
        %v6009 = vadd.f32 %v5729, %v5915
        %v6010 = vadd.f32 %v5730, %v5920
        %v6011 = vadd.f32 %v5731, %v5923
        %v6012 = vadd.f32 %v5732, %v5928
        %v6013 = vadd.f32 %v5733, %v5931
        %v6014 = vadd.f32 %v5734, %v5936
        %v6015 = vadd.f32 %v5735, %v5939
        %v6016 = vadd.f32 %v5736, %v5944
        %v6017 = vadd.f32 %v5737, %v5947
        %v6018 = vadd.f32 %v5738, %v5952
        %v6019 = vadd.f32 %v5739, %v5955
        %v6020 = vadd.f32 %v5740, %v5960
        %v6021 = vadd.f32 %v5741, %v5963
        %v6022 = vadd.f32 %v5742, %v5968
        %v6023 = vadd.f32 %v5743, %v5971
        %v6024 = vadd.f32 %v5744, %v5976
        %v6025 = vadd.f32 %v5745, %v5979
        %v6026 = vadd.f32 %v5746, %v5984
        %v6027 = vadd.f32 %v5747, %v5987
        %v6028 = vadd.f32 %v5748, %v5992
        %v6029 = vadd.f32 %v5749, %v5995
        %6030 = vst.msk [vmem:[%s390] sm:$0xff] %vm1829, %v5998
        %6031 = vst.msk [vmem:[%s390 + $0x8] sm:$0xff] %vm1829, %v5999
        %6032 = vst.msk [vmem:[%s390 + $0x10] sm:$0xff] %vm1829, %v6000
        %6033 = vst.msk [vmem:[%s390 + $0x18] sm:$0xff] %vm1829, %v6001
        %6034 = vst.msk [vmem:[%s390 + $0x20] sm:$0xff] %vm1829, %v6002
        %6035 = vst.msk [vmem:[%s390 + $0x28] sm:$0xff] %vm1829, %v6003
        %6036 = vst.msk [vmem:[%s390 + $0x30] sm:$0xff] %vm1829, %v6004
        %6037 = vst.msk [vmem:[%s390 + $0x38] sm:$0xff] %vm1829, %v6005
        %6038 = vst.msk [vmem:[%s390 + $0x40] sm:$0xff] %vm1829, %v6006
        %6039 = vst.msk [vmem:[%s390 + $0x48] sm:$0xff] %vm1829, %v6007
        %6040 = vst.msk [vmem:[%s390 + $0x50] sm:$0xff] %vm1829, %v6008
        %6041 = vst.msk [vmem:[%s390 + $0x58] sm:$0xff] %vm1829, %v6009
        %6042 = vst.msk [vmem:[%s390 + $0x60] sm:$0xff] %vm1829, %v6010
        %6043 = vst.msk [vmem:[%s390 + $0x68] sm:$0xff] %vm1829, %v6011
        %6044 = vst.msk [vmem:[%s390 + $0x70] sm:$0xff] %vm1829, %v6012
        %6045 = vst.msk [vmem:[%s390 + $0x78] sm:$0xff] %vm1829, %v6013
        %6046 = vst.msk [vmem:[%s390 + $0x80] sm:$0xff] %vm1829, %v6014
        %6047 = vst.msk [vmem:[%s390 + $0x88] sm:$0xff] %vm1829, %v6015
        %6048 = vst.msk [vmem:[%s390 + $0x90] sm:$0xff] %vm1829, %v6016
        %6049 = vst.msk [vmem:[%s390 + $0x98] sm:$0xff] %vm1829, %v6017
        %6050 = vst.msk [vmem:[%s390 + $0xa0] sm:$0xff] %vm1829, %v6018
        %6051 = vst.msk [vmem:[%s390 + $0xa8] sm:$0xff] %vm1829, %v6019
        %6052 = vst.msk [vmem:[%s390 + $0xb0] sm:$0xff] %vm1829, %v6020
        %6053 = vst.msk [vmem:[%s390 + $0xb8] sm:$0xff] %vm1829, %v6021
        %6054 = vst.msk [vmem:[%s390 + $0xc0] sm:$0xff] %vm1829, %v6022
        %6055 = vst.msk [vmem:[%s390 + $0xc8] sm:$0xff] %vm1829, %v6023
        %6056 = vst.msk [vmem:[%s390 + $0xd0] sm:$0xff] %vm1829, %v6024
        %6057 = vst.msk [vmem:[%s390 + $0xd8] sm:$0xff] %vm1829, %v6025
        %6058 = vst.msk [vmem:[%s390 + $0xe0] sm:$0xff] %vm1829, %v6026
        %6059 = vst.msk [vmem:[%s390 + $0xe8] sm:$0xff] %vm1829, %v6027
        %6060 = vst.msk [vmem:[%s390 + $0xf0] sm:$0xff] %vm1829, %v6028
        %6061 = vst.msk [vmem:[%s390 + $0xf8] sm:$0xff] %vm1829, %v6029
        %s6062 = sand.u32 %s274, 1
        %s6063 = scalar_lea.sflag [#allocation3], %s6062
        %s6064 = sand.u32 %s274, 1
        %s6065 = smul.addr %s6064, 256
        %s6066 = scalar_lea.vmem [#allocation2], %s6065
        // Predicated region
        $region65: #{resnet_block_2d.1} parent=63 // pred_check
          %p6067 = pneg %p284
        $region66: #{resnet_block_2d.1} parent=63 // pred_check_branch
          %6069 = sbr.rel (%p6067) target = $region68
        $region67: #{resnet_block_2d.1} parent=63 // pred_region
          %s6071 = ssub.s32 4096, 4096
          %6072 = vsyncadd %s6063, %s6071
          %s6073 = smul.addr %s25, 32
          %s6074 = smul.addr %s6073, 128
          %s6075 = scalar_lea.hbm %s11, %s6074
          %s6076 = sshll.u32 %s6066, 4
          %s6077 = int_to_ptr.vmem [resolvable:$true] %s6076
          %6082 = dma.vmem_to_hbm [thread:$0]  %s6077, 4096, %s6075, %s6063, 128, 128, 8
        $region68: #{resnet_block_2d.1} parent=63 // pred_fallthru
          _
      $region64: #{resnet_block_2d.1} parent=5 // pred_fallthru
        _
      %p6083 = scmp.le.s32.totalorder 2, %s20
      // Predicated region
      $region69: #{resnet_block_2d.1} parent=5 // pred_check
        %p6084 = pneg %p6083
      $region70: #{resnet_block_2d.1} parent=5 // pred_check_branch
        %6086 = sbr.rel (%p6084) target = $region72
      $region71: #{resnet_block_2d.1} parent=5 // pred_region
        %s6087 = ssub.s32 %s20, 2
        // Predicated region
        $region73: #{resnet_block_2d.1} parent=71 // pred_check
          %p6088 = pneg %p290
        $region74: #{resnet_block_2d.1} parent=71 // pred_check_branch
          %6090 = sbr.rel (%p6088) target = $region76
        $region75: #{resnet_block_2d.1} parent=71 // pred_region
          %s6091 = sand.u32 %s275, 1
          %s6092 = scalar_lea.sflag [#allocation3], %s6091
          %s6093 = sand.u32 %s275, 1
          %s6094 = smul.addr %s6093, 256
          %s6095 = scalar_lea.vmem [#allocation2], %s6094
          %6096 = dma.done %s6092, 4096
        $region76: #{resnet_block_2d.1} parent=71 // pred_fallthru
          _
      $region72: #{resnet_block_2d.1} parent=5 // pred_fallthru
        _
    $region6: #{resnet_block_2d.1} parent=1 // loop_footer
      %s24 = sadd.s32 1, %s20
    $region7: #{resnet_block_2d.1} parent=1 // loop_footer_branch
      %19 = sbr.rel target = $region3
    $region8: #{resnet_block_2d.1} parent=1 // loop_exit
      _
    %6097 = vsyncpa [#allocation3], 1
    %s6098 = scalar_lea.sflag [#allocation3], 1
    %6099 = vsyncpa %s6098, 1

</llo_original>
